<compile_context>
chip_gen: v7x
topology: tpu7x:2x2x1
jax: 0.10.0
libtpu: 0.0.40
codegen_flags: <defaults>
</compile_context>

<pallas_src>
import math
import jax
import jax.numpy as jnp
from jax import lax
from jax.experimental import pallas as pl
from jax.experimental.pallas import tpu as pltpu

# ---- problem sizes (small, consistent with the module's forward) ----
B = 2        # batch
T = 8        # target sequence length
S = 8        # source (memory) sequence length   (== T, needed for bias stacking)
D = 32       # d_model (layer.size)
H = 4        # attention heads
DK = D // H  # per-head dim
DFF = 64     # feed-forward hidden dim
NLAYERS = 2  # N decoder layers
EPS = 1e-6
NEG = -1e9
SCALE = 1.0 / math.sqrt(DK)

# packed small-parameter table layout (biases / LayerNorm params, f32)
PVEC_W = 128               # lane width of the packed param table
RPL = 12                   # param rows per layer
NROWS = NLAYERS * RPL + 2  # + final-norm a/b

# packed weight slab layout (bf16, 128 lanes wide)
WPL = 5 * D + DFF          # weight-slab rows per layer (wqkv0|wqkv1|wo0|wo1|w1|w2)
WROWS = NLAYERS * WPL


# ----------------------- in-kernel math helpers -----------------------
def _ln(v, a, b):
    """Paper's LayerNorm: a*(x-mean)/(std+eps)+b, unbiased std (D-1), exact
    f32 divide (approx reciprocal dropped per correctness review)."""
    mean = jnp.mean(v, axis=-1, keepdims=True)
    var = jnp.sum((v - mean) ** 2, axis=-1, keepdims=True) * (1.0 / (D - 1))
    return a * (v - mean) / (jnp.sqrt(var) + EPS) + b


def _attend(q, k, v, wo_bf, bo, bias, pv_ref):
    """Multi-head attention on the batch-folded rows.  Heads attend
    independently (DK=8 lane slices -> some relayout work, hidden under the
    MXU per review); each head's PV is written into its lane block of the
    VMEM scratch, then ONE fused output-projection matmul."""
    qb = q.astype(jnp.bfloat16)
    kb = k.astype(jnp.bfloat16)
    vb = v.astype(jnp.bfloat16)
    for h in range(H):
        lo = h * DK
        # q_h @ k_h^T without an explicit transpose (trans-B dot_general).
        sc = lax.dot_general(
            qb[:, lo:lo + DK], kb[:, lo:lo + DK],
            (((1,), (1,)), ((), ())),
            preferred_element_type=jnp.float32) * SCALE + bias
        # NOTE: a fully-masked row would give 0/0 here; cannot happen with the
        # causal tgt mask / all-ones src mask used by this module.
        sc = sc - jnp.max(sc, axis=-1, keepdims=True)
        p = jnp.exp(sc)
        p = p / jnp.sum(p, axis=-1, keepdims=True)          # exact divide
        pv_ref[:, lo:lo + DK] = jnp.dot(
            p.astype(jnp.bfloat16), vb[:, lo:lo + DK],
            preferred_element_type=jnp.float32)
    return jnp.dot(pv_ref[...].astype(jnp.bfloat16), wo_bf,
                   preferred_element_type=jnp.float32) + bo


# ----------------------------- kernel ---------------------------------
def decoder_kernel(x_ref, mem_ref, bias_ref, w_ref, p_ref, out_ref, pv_ref):
    x = x_ref[...]                               # (B*T, D) f32, batch folded
    mem_bf = mem_ref[...].astype(jnp.bfloat16)   # cast once for the MXU
    self_bias = bias_ref[:B * T, :]              # (B*T, B*T) additive bias
    src_bias = bias_ref[B * T:, :]               # (B*T, B*S)

    for l in range(NLAYERS):                     # static unroll (NLAYERS=2)
        pr = l * RPL
        wr = l * WPL
        # ---- sublayer 0: x + self_attn(norm(x), norm(x), norm(x), tgt_mask)
        xn = _ln(x, p_ref[pr + 6:pr + 7, :D], p_ref[pr + 7:pr + 8, :D])
        qkv = jnp.dot(xn.astype(jnp.bfloat16), w_ref[wr:wr + D, :3 * D],
                      preferred_element_type=jnp.float32) + p_ref[pr:pr + 1, :3 * D]
        x = x + _attend(qkv[:, :D], qkv[:, D:2 * D], qkv[:, 2 * D:3 * D],
                        w_ref[wr + 2 * D:wr + 3 * D, :D],
                        p_ref[pr + 2:pr + 3, :D], self_bias, pv_ref)
        # ---- sublayer 1: x + src_attn(norm(x), memory, memory, src_mask)
        xn = _ln(x, p_ref[pr + 8:pr + 9, :D], p_ref[pr + 9:pr + 10, :D])
        q = jnp.dot(xn.astype(jnp.bfloat16), w_ref[wr + D:wr + 2 * D, :D],
                    preferred_element_type=jnp.float32) + p_ref[pr + 1:pr + 2, :D]
        kv = jnp.dot(mem_bf, w_ref[wr + D:wr + 2 * D, D:3 * D],
                     preferred_element_type=jnp.float32) + p_ref[pr + 1:pr + 2, D:3 * D]
        x = x + _attend(q, kv[:, :D], kv[:, D:2 * D],
                        w_ref[wr + 3 * D:wr + 4 * D, :D],
                        p_ref[pr + 3:pr + 4, :D], src_bias, pv_ref)
        # ---- sublayer 2: x + FFN(norm(x))
        xn = _ln(x, p_ref[pr + 10:pr + 11, :D], p_ref[pr + 11:pr + 12, :D])
        hid = jnp.maximum(
            jnp.dot(xn.astype(jnp.bfloat16), w_ref[wr + 4 * D:wr + 5 * D, :DFF],
                    preferred_element_type=jnp.float32) + p_ref[pr + 4:pr + 5, :DFF],
            0.0)
        x = x + jnp.dot(hid.astype(jnp.bfloat16),
                        w_ref[wr + 5 * D:wr + 5 * D + DFF, :D],
                        preferred_element_type=jnp.float32) + p_ref[pr + 5:pr + 6, :D]

    # final Decoder.norm
    x = _ln(x, p_ref[NLAYERS * RPL:NLAYERS * RPL + 1, :D],
            p_ref[NLAYERS * RPL + 1:NLAYERS * RPL + 2, :D])
    out_ref[...] = x.astype(out_ref.dtype)


# ------------------------ wrapper-side packing --------------------------
def pack_params(params):
    """Pack all weight matrices into ONE bf16 (WROWS, 128) slab and all small
    1-D params (biases, LN gains) into ONE f32 (NROWS, 128) table."""
    (wq, bq, wk, bk, wv, bv, wo, bo, w1, b1, w2, b2, lna, lnb, fa, fb) = params
    wqkv = jnp.concatenate([wq, wk, wv], axis=-1)   # (NL, 2, D, 3D)
    bqkv = jnp.concatenate([bq, bk, bv], axis=-1)   # (NL, 2, 3D)

    def pad_lanes(m):
        return jnp.pad(m, ((0, 0), (0, PVEC_W - m.shape[1])))

    blocks = []
    for l in range(NLAYERS):
        blocks += [pad_lanes(wqkv[l, 0]), pad_lanes(wqkv[l, 1]),
                   pad_lanes(wo[l, 0]), pad_lanes(wo[l, 1]),
                   pad_lanes(w1[l]), pad_lanes(w2[l])]
    wslab = jnp.concatenate(blocks, axis=0).astype(jnp.bfloat16)  # (WROWS,128)

    def row(v):
        v = jnp.asarray(v, jnp.float32).reshape(-1)
        return jnp.pad(v, (0, PVEC_W - v.shape[0]))

    rows = []
    for l in range(NLAYERS):
        rows += [row(bqkv[l, 0]), row(bqkv[l, 1]),
                 row(bo[l, 0]), row(bo[l, 1]),
                 row(b1[l]), row(b2[l])]
        for s in range(3):
            rows += [row(lna[l, s]), row(lnb[l, s])]
    rows += [row(fa), row(fb)]
    pvec = jnp.stack(rows, axis=0)                                # (NROWS,128)
    return wslab, pvec


def build_attn_biases(src_mask, tgt_mask):
    """One stacked additive-bias slab (mask plumbing hoisted out of the
    kernel): rows [0, B*T) = self-attn bias (block-diagonal + causal), rows
    [B*T, 2*B*T) = src-attn bias.  -1e9 on masked / cross-batch positions."""
    tgt_blocks = jnp.where(tgt_mask == 0.0, NEG, 0.0)            # (B,T,T)
    src_rows = jnp.where(src_mask[:, 0, :] == 0.0, NEG, 0.0)     # (B,S)
    self_bias = jnp.full((B * T, B * T), NEG, jnp.float32)
    src_bias = jnp.full((B * T, B * S), NEG, jnp.float32)
    for b in range(B):
        self_bias = self_bias.at[b * T:(b + 1) * T,
                                 b * T:(b + 1) * T].set(tgt_blocks[b])
        src_bias = src_bias.at[b * T:(b + 1) * T, b * S:(b + 1) * S].set(
            jnp.broadcast_to(src_rows[b][None, :], (T, S)))
    return jnp.concatenate([self_bias, src_bias], axis=0)        # (2*B*T, B*T)


def _full_spec(shape):
    n = len(shape)
    return pl.BlockSpec(shape, lambda i, n=n: (0,) * n)


def decoder_forward(x, memory, src_mask, tgt_mask, params):
    wslab, pvec = pack_params(params)
    bias_slab = build_attn_biases(src_mask, tgt_mask)
    x2 = x.reshape(B * T, D)          # batch folded into the sublane dim
    mem2 = memory.reshape(B * S, D)

    in_specs = [
        _full_spec((B * T, D)),           # x
        _full_spec((B * S, D)),           # memory
        _full_spec((2 * B * T, B * T)),   # stacked additive attn biases
        _full_spec((WROWS, PVEC_W)),      # packed bf16 weight slab
        _full_spec((NROWS, PVEC_W)),      # packed f32 biases / LN params
    ]
    out = pl.pallas_call(
        decoder_kernel,
        out_shape=jax.ShapeDtypeStruct((B * T, D), jnp.float32),
        grid_spec=pltpu.PrefetchScalarGridSpec(
            num_scalar_prefetch=0,
            grid=(1,),                    # single step: batch folded, tiny sizes
            in_specs=in_specs,
            out_specs=_full_spec((B * T, D)),
            scratch_shapes=[pltpu.VMEM((B * T, D), jnp.float32)],  # per-head PV
        ),
        compiler_params=pltpu.CompilerParams(
            dimension_semantics=("arbitrary",)),
    )(x2, mem2, bias_slab, wslab, pvec)
    return out.reshape(B, T, D)


# --------------------- pure-JAX reference (sanity) ----------------------
# Mirrors the TPU-native numerics the kernel uses (bf16 matmul operands with
# f32 accumulation); everything else follows the PyTorch module in f32.
def _bdot(a, b):
    return jnp.dot(a.astype(jnp.bfloat16), b.astype(jnp.bfloat16),
                   preferred_element_type=jnp.float32)


def _ref_layer_norm(v, a, b):
    mean = jnp.mean(v, axis=-1, keepdims=True)
    var = jnp.sum((v - mean) ** 2, axis=-1, keepdims=True) * (1.0 / (D - 1))
    return a * (v - mean) / (jnp.sqrt(var) + EPS) + b


def _ref_mha(q_in, kv_in, mask, wq, bq, wk, bk, wv, bv, wo, bo):
    q = _bdot(q_in, wq) + bq
    k = _bdot(kv_in, wk) + bk
    v = _bdot(kv_in, wv) + bv
    outs = []
    for h in range(H):
        qs = q[:, h * DK:(h + 1) * DK]
        ks = k[:, h * DK:(h + 1) * DK]
        vs = v[:, h * DK:(h + 1) * DK]
        sc = _bdot(qs, ks.T) * SCALE
        sc = jnp.where(mask == 0.0, NEG, sc)
        sc = sc - jnp.max(sc, axis=-1, keepdims=True)
        p = jnp.exp(sc)
        p = p / jnp.sum(p, axis=-1, keepdims=True)
        outs.append(_bdot(p, vs))
    return _bdot(jnp.concatenate(outs, axis=-1), wo) + bo


def decoder_reference(x, memory, src_mask, tgt_mask, params):
    (wq, bq, wk, bk, wv, bv, wo, bo, w1, b1, w2, b2, lna, lnb, fa, fb) = params
    out = []
    for bi in range(B):
        xb = x[bi]
        mb = memory[bi]
        sm = src_mask[bi]   # (1, S)
        tm = tgt_mask[bi]   # (T, T)
        for l in range(NLAYERS):
            xn = _ref_layer_norm(xb, lna[l, 0], lnb[l, 0])
            xb = xb + _ref_mha(xn, xn, tm, wq[l, 0], bq[l, 0], wk[l, 0],
                               bk[l, 0], wv[l, 0], bv[l, 0], wo[l, 0], bo[l, 0])
            xn = _ref_layer_norm(xb, lna[l, 1], lnb[l, 1])
            xb = xb + _ref_mha(xn, mb, sm, wq[l, 1], bq[l, 1], wk[l, 1],
                               bk[l, 1], wv[l, 1], bv[l, 1], wo[l, 1], bo[l, 1])
            xn = _ref_layer_norm(xb, lna[l, 2], lnb[l, 2])
            hid = jnp.maximum(_bdot(xn, w1[l]) + b1[l], 0.0)
            xb = xb + _bdot(hid, w2[l]) + b2[l]
        out.append(_ref_layer_norm(xb, fa, fb))
    return jnp.stack(out, axis=0)


def make_params(key):
    ks = jax.random.split(key, 10)
    sc = 1.0 / math.sqrt(D)
    wq = jax.random.normal(ks[0], (NLAYERS, 2, D, D), jnp.float32) * sc
    wk = jax.random.normal(ks[1], (NLAYERS, 2, D, D), jnp.float32) * sc
    wv = jax.random.normal(ks[2], (NLAYERS, 2, D, D), jnp.float32) * sc
    wo = jax.random.normal(ks[3], (NLAYERS, 2, D, D), jnp.float32) * sc
    bq = jax.random.normal(ks[4], (NLAYERS, 2, D), jnp.float32) * 0.01
    bk = jnp.zeros((NLAYERS, 2, D), jnp.float32)
    bv = jnp.zeros((NLAYERS, 2, D), jnp.float32)
    bo = jax.random.normal(ks[5], (NLAYERS, 2, D), jnp.float32) * 0.01
    w1 = jax.random.normal(ks[6], (NLAYERS, D, DFF), jnp.float32) * sc
    b1 = jnp.zeros((NLAYERS, DFF), jnp.float32)
    w2 = jax.random.normal(ks[7], (NLAYERS, DFF, D), jnp.float32) * (1.0 / math.sqrt(DFF))
    b2 = jnp.zeros((NLAYERS, D), jnp.float32)
    lna = jnp.ones((NLAYERS, 3, D), jnp.float32)
    lnb = jnp.zeros((NLAYERS, 3, D), jnp.float32)
    fa = jnp.ones((D,), jnp.float32)
    fb = jnp.zeros((D,), jnp.float32)
    return (wq, bq, wk, bk, wv, bv, wo, bo, w1, b1, w2, b2, lna, lnb, fa, fb)


if __name__ == "__main__":
    key = jax.random.PRNGKey(0)
    kx, km, kp = jax.random.split(key, 3)
    x = jax.random.normal(kx, (B, T, D), jnp.float32)
    memory = jax.random.normal(km, (B, S, D), jnp.float32)
    # src_mask: all positions visible; tgt_mask: causal (subsequent) mask.
    src_mask = jnp.ones((B, 1, S), jnp.float32)
    tgt_mask = jnp.tril(jnp.ones((T, T), jnp.float32))[None].repeat(B, axis=0)
    params = make_params(kp)

    out = decoder_forward(x, memory, src_mask, tgt_mask, params)
    out = jax.block_until_ready(out)

    ref = decoder_reference(x, memory, src_mask, tgt_mask, params)
    assert out.shape == (B, T, D)
    assert jnp.allclose(out, ref, atol=3e-3, rtol=3e-3), "mismatch vs reference"
    print("KERNEL_OK")
</pallas_src>

<mosaic_0001>
module attributes {stable_mosaic.version = 11 : i64} {
  func.func @decoder_kernel(%arg0: i32, %arg1: memref<16x32xf32, #tpu.memory_space<vmem>>, %arg2: memref<16x32xf32, #tpu.memory_space<vmem>>, %arg3: memref<32x16xf32, #tpu.memory_space<vmem>>, %arg4: memref<448x128xbf16, #tpu.memory_space<vmem>>, %arg5: memref<26x128xf32, #tpu.memory_space<vmem>>, %arg6: memref<16x32xf32, #tpu.memory_space<vmem>>, %arg7: memref<16x32xf32, #tpu.memory_space<vmem>>) attributes {dimension_semantics = [#tpu.dimension_semantics<arbitrary>], iteration_bounds = array<i64: 1>, scalar_prefetch = 0 : i64, scratch_operands = 1 : i64, tpu.core_type = #tpu.core_type<tc>, window_params = [{pipeline_mode = #tpu.pipeline_mode<synchronous>, transform_indices = @transform_0, window_bounds = array<i64: 16, 32>}, {pipeline_mode = #tpu.pipeline_mode<synchronous>, transform_indices = @transform_1, window_bounds = array<i64: 16, 32>}, {pipeline_mode = #tpu.pipeline_mode<synchronous>, transform_indices = @transform_2, window_bounds = array<i64: 32, 16>}, {pipeline_mode = #tpu.pipeline_mode<synchronous>, transform_indices = @transform_3, window_bounds = array<i64: 448, 128>}, {pipeline_mode = #tpu.pipeline_mode<synchronous>, transform_indices = @transform_4, window_bounds = array<i64: 26, 128>}, {pipeline_mode = #tpu.pipeline_mode<synchronous>, transform_indices = @transform_5, window_bounds = array<i64: 16, 32>}]} {
    %c0 = arith.constant 0 : index
    %c0_0 = arith.constant 0 : index
    %0 = vector.load %arg1[%c0, %c0_0] : memref<16x32xf32, #tpu.memory_space<vmem>>, vector<16x32xf32>
    %c0_1 = arith.constant 0 : index
    %c0_2 = arith.constant 0 : index
    %1 = vector.load %arg2[%c0_1, %c0_2] : memref<16x32xf32, #tpu.memory_space<vmem>>, vector<16x32xf32>
    %2 = arith.truncf %1 : vector<16x32xf32> to vector<16x32xbf16>
    %c0_3 = arith.constant 0 : index
    %c0_4 = arith.constant 0 : index
    %3 = vector.load %arg3[%c0_3, %c0_4] : memref<32x16xf32, #tpu.memory_space<vmem>>, vector<16x16xf32>
    %c16 = arith.constant 16 : index
    %c0_5 = arith.constant 0 : index
    %4 = vector.load %arg3[%c16, %c0_5] : memref<32x16xf32, #tpu.memory_space<vmem>>, vector<16x16xf32>
    %c6 = arith.constant 6 : index
    %c0_6 = arith.constant 0 : index
    %5 = vector.load %arg5[%c6, %c0_6] : memref<26x128xf32, #tpu.memory_space<vmem>>, vector<1x32xf32>
    %c7 = arith.constant 7 : index
    %c0_7 = arith.constant 0 : index
    %6 = vector.load %arg5[%c7, %c0_7] : memref<26x128xf32, #tpu.memory_space<vmem>>, vector<1x32xf32>
    %cst = arith.constant dense<0.000000e+00> : vector<16xf32>
    %7 = vector.multi_reduction <add>, %0, %cst [1] : vector<16x32xf32> to vector<16xf32>
    %8 = vector.shape_cast %7 : vector<16xf32> to vector<16x1xf32>
    %cst_8 = arith.constant 3.200000e+01 : f32
    %9 = vector.broadcast %cst_8 : f32 to vector<16x1xf32>
    %10 = arith.divf %8, %9 : vector<16x1xf32>
    %11 = vector.broadcast %10 : vector<16x1xf32> to vector<16x32xf32>
    %12 = arith.subf %0, %11 : vector<16x32xf32>
    %13 = arith.mulf %12, %12 : vector<16x32xf32>
    %cst_9 = arith.constant dense<0.000000e+00> : vector<16xf32>
    %14 = vector.multi_reduction <add>, %13, %cst_9 [1] : vector<16x32xf32> to vector<16xf32>
    %15 = vector.shape_cast %14 : vector<16xf32> to vector<16x1xf32>
    %cst_10 = arith.constant 0.0322580636 : f32
    %16 = vector.broadcast %cst_10 : f32 to vector<16x1xf32>
    %17 = arith.mulf %15, %16 : vector<16x1xf32>
    %18 = vector.broadcast %10 : vector<16x1xf32> to vector<16x32xf32>
    %19 = arith.subf %0, %18 : vector<16x32xf32>
    %20 = vector.broadcast %5 : vector<1x32xf32> to vector<16x32xf32>
    %21 = arith.mulf %20, %19 : vector<16x32xf32>
    %22 = math.sqrt %17 : vector<16x1xf32>
    %cst_11 = arith.constant 9.99999997E-7 : f32
    %23 = vector.broadcast %cst_11 : f32 to vector<16x1xf32>
    %24 = arith.addf %22, %23 : vector<16x1xf32>
    %25 = vector.broadcast %24 : vector<16x1xf32> to vector<16x32xf32>
    %26 = arith.divf %21, %25 : vector<16x32xf32>
    %27 = vector.broadcast %6 : vector<1x32xf32> to vector<16x32xf32>
    %28 = arith.addf %26, %27 : vector<16x32xf32>
    %29 = arith.truncf %28 : vector<16x32xf32> to vector<16x32xbf16>
    %c0_12 = arith.constant 0 : index
    %c0_13 = arith.constant 0 : index
    %30 = vector.load %arg4[%c0_12, %c0_13] : memref<448x128xbf16, #tpu.memory_space<vmem>>, vector<32x96xbf16>
    %cst_14 = arith.constant dense<0.000000e+00> : vector<16x96xf32>
    %31 = tpu.matmul %29, %30, %cst_14 {dimension_numbers = #tpu.dot_dimension_numbers<[1], [0], [0], [1], [0, 0, 1, 1], [], []>} : vector<16x32xbf16>, vector<32x96xbf16>, vector<16x96xf32> -> vector<16x96xf32>
    %c0_15 = arith.constant 0 : index
    %c0_16 = arith.constant 0 : index
    %32 = vector.load %arg5[%c0_15, %c0_16] : memref<26x128xf32, #tpu.memory_space<vmem>>, vector<1x96xf32>
    %33 = vector.broadcast %32 : vector<1x96xf32> to vector<16x96xf32>
    %34 = arith.addf %31, %33 : vector<16x96xf32>
    %35 = vector.extract_strided_slice %34 {offsets = [0, 0], sizes = [16, 32], strides = [1, 1]} : vector<16x96xf32> to vector<16x32xf32>
    %36 = vector.extract_strided_slice %34 {offsets = [0, 32], sizes = [16, 32], strides = [1, 1]} : vector<16x96xf32> to vector<16x32xf32>
    %37 = vector.extract_strided_slice %34 {offsets = [0, 64], sizes = [16, 32], strides = [1, 1]} : vector<16x96xf32> to vector<16x32xf32>
    %c64 = arith.constant 64 : index
    %c0_17 = arith.constant 0 : index
    %38 = vector.load %arg4[%c64, %c0_17] : memref<448x128xbf16, #tpu.memory_space<vmem>>, vector<32x32xbf16>
    %c2 = arith.constant 2 : index
    %c0_18 = arith.constant 0 : index
    %39 = vector.load %arg5[%c2, %c0_18] : memref<26x128xf32, #tpu.memory_space<vmem>>, vector<1x32xf32>
    %40 = arith.truncf %35 : vector<16x32xf32> to vector<16x32xbf16>
    %41 = arith.truncf %36 : vector<16x32xf32> to vector<16x32xbf16>
    %42 = arith.truncf %37 : vector<16x32xf32> to vector<16x32xbf16>
    %43 = vector.extract_strided_slice %40 {offsets = [0, 0], sizes = [16, 8], strides = [1, 1]} : vector<16x32xbf16> to vector<16x8xbf16>
    %44 = vector.extract_strided_slice %41 {offsets = [0, 0], sizes = [16, 8], strides = [1, 1]} : vector<16x32xbf16> to vector<16x8xbf16>
    %cst_19 = arith.constant dense<0.000000e+00> : vector<16x16xf32>
    %45 = tpu.matmul %43, %44, %cst_19 {dimension_numbers = #tpu.dot_dimension_numbers<[1], [1], [0], [0], [0, 0, 1, 0], [], []>} : vector<16x8xbf16>, vector<16x8xbf16>, vector<16x16xf32> -> vector<16x16xf32>
    %cst_20 = arith.constant 0.353553385 : f32
    %46 = vector.broadcast %cst_20 : f32 to vector<16x16xf32>
    %47 = arith.mulf %45, %46 : vector<16x16xf32>
    %48 = arith.addf %47, %3 : vector<16x16xf32>
    %cst_21 = arith.constant dense<0xFF800000> : vector<16xf32>
    %49 = vector.multi_reduction <maximumf>, %48, %cst_21 [1] : vector<16x16xf32> to vector<16xf32>
    %50 = vector.shape_cast %49 : vector<16xf32> to vector<16x1xf32>
    %51 = vector.broadcast %50 : vector<16x1xf32> to vector<16x16xf32>
    %52 = arith.subf %48, %51 : vector<16x16xf32>
    %53 = math.exp %52 : vector<16x16xf32>
    %cst_22 = arith.constant dense<0.000000e+00> : vector<16xf32>
    %54 = vector.multi_reduction <add>, %53, %cst_22 [1] : vector<16x16xf32> to vector<16xf32>
    %55 = vector.shape_cast %54 : vector<16xf32> to vector<16x1xf32>
    %56 = vector.broadcast %55 : vector<16x1xf32> to vector<16x16xf32>
    %57 = arith.divf %53, %56 : vector<16x16xf32>
    %58 = arith.truncf %57 : vector<16x16xf32> to vector<16x16xbf16>
    %59 = vector.extract_strided_slice %42 {offsets = [0, 0], sizes = [16, 8], strides = [1, 1]} : vector<16x32xbf16> to vector<16x8xbf16>
    %cst_23 = arith.constant dense<0.000000e+00> : vector<16x8xf32>
    %60 = tpu.matmul %58, %59, %cst_23 {dimension_numbers = #tpu.dot_dimension_numbers<[1], [0], [0], [1], [0, 0, 1, 1], [], []>} : vector<16x16xbf16>, vector<16x8xbf16>, vector<16x8xf32> -> vector<16x8xf32>
    %c0_24 = arith.constant 0 : index
    %c0_25 = arith.constant 0 : index
    %61 = vector.load %arg7[%c0_24, %c0_25] : memref<16x32xf32, #tpu.memory_space<vmem>>, vector<16x8xf32>
    tpu.vector_store %arg7[%c0_24, %c0_25], %60 {strides = array<i32>} : memref<16x32xf32, #tpu.memory_space<vmem>>, vector<16x8xf32>,
    %62 = vector.extract_strided_slice %40 {offsets = [0, 8], sizes = [16, 8], strides = [1, 1]} : vector<16x32xbf16> to vector<16x8xbf16>
    %63 = vector.extract_strided_slice %41 {offsets = [0, 8], sizes = [16, 8], strides = [1, 1]} : vector<16x32xbf16> to vector<16x8xbf16>
    %cst_26 = arith.constant dense<0.000000e+00> : vector<16x16xf32>
    %64 = tpu.matmul %62, %63, %cst_26 {dimension_numbers = #tpu.dot_dimension_numbers<[1], [1], [0], [0], [0, 0, 1, 0], [], []>} : vector<16x8xbf16>, vector<16x8xbf16>, vector<16x16xf32> -> vector<16x16xf32>
    %cst_27 = arith.constant 0.353553385 : f32
    %65 = vector.broadcast %cst_27 : f32 to vector<16x16xf32>
    %66 = arith.mulf %64, %65 : vector<16x16xf32>
    %67 = arith.addf %66, %3 : vector<16x16xf32>
    %cst_28 = arith.constant dense<0xFF800000> : vector<16xf32>
    %68 = vector.multi_reduction <maximumf>, %67, %cst_28 [1] : vector<16x16xf32> to vector<16xf32>
    %69 = vector.shape_cast %68 : vector<16xf32> to vector<16x1xf32>
    %70 = vector.broadcast %69 : vector<16x1xf32> to vector<16x16xf32>
    %71 = arith.subf %67, %70 : vector<16x16xf32>
    %72 = math.exp %71 : vector<16x16xf32>
    %cst_29 = arith.constant dense<0.000000e+00> : vector<16xf32>
    %73 = vector.multi_reduction <add>, %72, %cst_29 [1] : vector<16x16xf32> to vector<16xf32>
    %74 = vector.shape_cast %73 : vector<16xf32> to vector<16x1xf32>
    %75 = vector.broadcast %74 : vector<16x1xf32> to vector<16x16xf32>
    %76 = arith.divf %72, %75 : vector<16x16xf32>
    %77 = arith.truncf %76 : vector<16x16xf32> to vector<16x16xbf16>
    %78 = vector.extract_strided_slice %42 {offsets = [0, 8], sizes = [16, 8], strides = [1, 1]} : vector<16x32xbf16> to vector<16x8xbf16>
    %cst_30 = arith.constant dense<0.000000e+00> : vector<16x8xf32>
    %79 = tpu.matmul %77, %78, %cst_30 {dimension_numbers = #tpu.dot_dimension_numbers<[1], [0], [0], [1], [0, 0, 1, 1], [], []>} : vector<16x16xbf16>, vector<16x8xbf16>, vector<16x8xf32> -> vector<16x8xf32>
    %c0_31 = arith.constant 0 : index
    %c8 = arith.constant 8 : index
    %80 = vector.load %arg7[%c0_31, %c8] : memref<16x32xf32, #tpu.memory_space<vmem>>, vector<16x8xf32>
    tpu.vector_store %arg7[%c0_31, %c8], %79 {strides = array<i32>} : memref<16x32xf32, #tpu.memory_space<vmem>>, vector<16x8xf32>,
    %81 = vector.extract_strided_slice %40 {offsets = [0, 16], sizes = [16, 8], strides = [1, 1]} : vector<16x32xbf16> to vector<16x8xbf16>
    %82 = vector.extract_strided_slice %41 {offsets = [0, 16], sizes = [16, 8], strides = [1, 1]} : vector<16x32xbf16> to vector<16x8xbf16>
    %cst_32 = arith.constant dense<0.000000e+00> : vector<16x16xf32>
    %83 = tpu.matmul %81, %82, %cst_32 {dimension_numbers = #tpu.dot_dimension_numbers<[1], [1], [0], [0], [0, 0, 1, 0], [], []>} : vector<16x8xbf16>, vector<16x8xbf16>, vector<16x16xf32> -> vector<16x16xf32>
    %cst_33 = arith.constant 0.353553385 : f32
    %84 = vector.broadcast %cst_33 : f32 to vector<16x16xf32>
    %85 = arith.mulf %83, %84 : vector<16x16xf32>
    %86 = arith.addf %85, %3 : vector<16x16xf32>
    %cst_34 = arith.constant dense<0xFF800000> : vector<16xf32>
    %87 = vector.multi_reduction <maximumf>, %86, %cst_34 [1] : vector<16x16xf32> to vector<16xf32>
    %88 = vector.shape_cast %87 : vector<16xf32> to vector<16x1xf32>
    %89 = vector.broadcast %88 : vector<16x1xf32> to vector<16x16xf32>
    %90 = arith.subf %86, %89 : vector<16x16xf32>
    %91 = math.exp %90 : vector<16x16xf32>
    %cst_35 = arith.constant dense<0.000000e+00> : vector<16xf32>
    %92 = vector.multi_reduction <add>, %91, %cst_35 [1] : vector<16x16xf32> to vector<16xf32>
    %93 = vector.shape_cast %92 : vector<16xf32> to vector<16x1xf32>
    %94 = vector.broadcast %93 : vector<16x1xf32> to vector<16x16xf32>
    %95 = arith.divf %91, %94 : vector<16x16xf32>
    %96 = arith.truncf %95 : vector<16x16xf32> to vector<16x16xbf16>
    %97 = vector.extract_strided_slice %42 {offsets = [0, 16], sizes = [16, 8], strides = [1, 1]} : vector<16x32xbf16> to vector<16x8xbf16>
    %cst_36 = arith.constant dense<0.000000e+00> : vector<16x8xf32>
    %98 = tpu.matmul %96, %97, %cst_36 {dimension_numbers = #tpu.dot_dimension_numbers<[1], [0], [0], [1], [0, 0, 1, 1], [], []>} : vector<16x16xbf16>, vector<16x8xbf16>, vector<16x8xf32> -> vector<16x8xf32>
    %c0_37 = arith.constant 0 : index
    %c16_38 = arith.constant 16 : index
    %99 = vector.load %arg7[%c0_37, %c16_38] : memref<16x32xf32, #tpu.memory_space<vmem>>, vector<16x8xf32>
    tpu.vector_store %arg7[%c0_37, %c16_38], %98 {strides = array<i32>} : memref<16x32xf32, #tpu.memory_space<vmem>>, vector<16x8xf32>,
    %100 = vector.extract_strided_slice %40 {offsets = [0, 24], sizes = [16, 8], strides = [1, 1]} : vector<16x32xbf16> to vector<16x8xbf16>
    %101 = vector.extract_strided_slice %41 {offsets = [0, 24], sizes = [16, 8], strides = [1, 1]} : vector<16x32xbf16> to vector<16x8xbf16>
    %cst_39 = arith.constant dense<0.000000e+00> : vector<16x16xf32>
    %102 = tpu.matmul %100, %101, %cst_39 {dimension_numbers = #tpu.dot_dimension_numbers<[1], [1], [0], [0], [0, 0, 1, 0], [], []>} : vector<16x8xbf16>, vector<16x8xbf16>, vector<16x16xf32> -> vector<16x16xf32>
    %cst_40 = arith.constant 0.353553385 : f32
    %103 = vector.broadcast %cst_40 : f32 to vector<16x16xf32>
    %104 = arith.mulf %102, %103 : vector<16x16xf32>
    %105 = arith.addf %104, %3 : vector<16x16xf32>
    %cst_41 = arith.constant dense<0xFF800000> : vector<16xf32>
    %106 = vector.multi_reduction <maximumf>, %105, %cst_41 [1] : vector<16x16xf32> to vector<16xf32>
    %107 = vector.shape_cast %106 : vector<16xf32> to vector<16x1xf32>
    %108 = vector.broadcast %107 : vector<16x1xf32> to vector<16x16xf32>
    %109 = arith.subf %105, %108 : vector<16x16xf32>
    %110 = math.exp %109 : vector<16x16xf32>
    %cst_42 = arith.constant dense<0.000000e+00> : vector<16xf32>
    %111 = vector.multi_reduction <add>, %110, %cst_42 [1] : vector<16x16xf32> to vector<16xf32>
    %112 = vector.shape_cast %111 : vector<16xf32> to vector<16x1xf32>
    %113 = vector.broadcast %112 : vector<16x1xf32> to vector<16x16xf32>
    %114 = arith.divf %110, %113 : vector<16x16xf32>
    %115 = arith.truncf %114 : vector<16x16xf32> to vector<16x16xbf16>
    %116 = vector.extract_strided_slice %42 {offsets = [0, 24], sizes = [16, 8], strides = [1, 1]} : vector<16x32xbf16> to vector<16x8xbf16>
    %cst_43 = arith.constant dense<0.000000e+00> : vector<16x8xf32>
    %117 = tpu.matmul %115, %116, %cst_43 {dimension_numbers = #tpu.dot_dimension_numbers<[1], [0], [0], [1], [0, 0, 1, 1], [], []>} : vector<16x16xbf16>, vector<16x8xbf16>, vector<16x8xf32> -> vector<16x8xf32>
    %c0_44 = arith.constant 0 : index
    %c24 = arith.constant 24 : index
    %118 = vector.load %arg7[%c0_44, %c24] : memref<16x32xf32, #tpu.memory_space<vmem>>, vector<16x8xf32>
    tpu.vector_store %arg7[%c0_44, %c24], %117 {strides = array<i32>} : memref<16x32xf32, #tpu.memory_space<vmem>>, vector<16x8xf32>,
    %c0_45 = arith.constant 0 : index
    %c0_46 = arith.constant 0 : index
    %119 = vector.load %arg7[%c0_45, %c0_46] : memref<16x32xf32, #tpu.memory_space<vmem>>, vector<16x32xf32>
    %120 = arith.truncf %119 : vector<16x32xf32> to vector<16x32xbf16>
    %cst_47 = arith.constant dense<0.000000e+00> : vector<16x32xf32>
    %121 = tpu.matmul %120, %38, %cst_47 {dimension_numbers = #tpu.dot_dimension_numbers<[1], [0], [0], [1], [0, 0, 1, 1], [], []>} : vector<16x32xbf16>, vector<32x32xbf16>, vector<16x32xf32> -> vector<16x32xf32>
    %122 = vector.broadcast %39 : vector<1x32xf32> to vector<16x32xf32>
    %123 = arith.addf %121, %122 : vector<16x32xf32>
    %124 = arith.addf %0, %123 : vector<16x32xf32>
    %c8_48 = arith.constant 8 : index
    %c0_49 = arith.constant 0 : index
    %125 = vector.load %arg5[%c8_48, %c0_49] : memref<26x128xf32, #tpu.memory_space<vmem>>, vector<1x32xf32>
    %c9 = arith.constant 9 : index
    %c0_50 = arith.constant 0 : index
    %126 = vector.load %arg5[%c9, %c0_50] : memref<26x128xf32, #tpu.memory_space<vmem>>, vector<1x32xf32>
    %cst_51 = arith.constant dense<0.000000e+00> : vector<16xf32>
    %127 = vector.multi_reduction <add>, %124, %cst_51 [1] : vector<16x32xf32> to vector<16xf32>
    %128 = vector.shape_cast %127 : vector<16xf32> to vector<16x1xf32>
    %cst_52 = arith.constant 3.200000e+01 : f32
    %129 = vector.broadcast %cst_52 : f32 to vector<16x1xf32>
    %130 = arith.divf %128, %129 : vector<16x1xf32>
    %131 = vector.broadcast %130 : vector<16x1xf32> to vector<16x32xf32>
    %132 = arith.subf %124, %131 : vector<16x32xf32>
    %133 = arith.mulf %132, %132 : vector<16x32xf32>
    %cst_53 = arith.constant dense<0.000000e+00> : vector<16xf32>
    %134 = vector.multi_reduction <add>, %133, %cst_53 [1] : vector<16x32xf32> to vector<16xf32>
    %135 = vector.shape_cast %134 : vector<16xf32> to vector<16x1xf32>
    %cst_54 = arith.constant 0.0322580636 : f32
    %136 = vector.broadcast %cst_54 : f32 to vector<16x1xf32>
    %137 = arith.mulf %135, %136 : vector<16x1xf32>
    %138 = vector.broadcast %130 : vector<16x1xf32> to vector<16x32xf32>
    %139 = arith.subf %124, %138 : vector<16x32xf32>
    %140 = vector.broadcast %125 : vector<1x32xf32> to vector<16x32xf32>
    %141 = arith.mulf %140, %139 : vector<16x32xf32>
    %142 = math.sqrt %137 : vector<16x1xf32>
    %cst_55 = arith.constant 9.99999997E-7 : f32
    %143 = vector.broadcast %cst_55 : f32 to vector<16x1xf32>
    %144 = arith.addf %142, %143 : vector<16x1xf32>
    %145 = vector.broadcast %144 : vector<16x1xf32> to vector<16x32xf32>
    %146 = arith.divf %141, %145 : vector<16x32xf32>
    %147 = vector.broadcast %126 : vector<1x32xf32> to vector<16x32xf32>
    %148 = arith.addf %146, %147 : vector<16x32xf32>
    %149 = arith.truncf %148 : vector<16x32xf32> to vector<16x32xbf16>
    %c32 = arith.constant 32 : index
    %c0_56 = arith.constant 0 : index
    %150 = vector.load %arg4[%c32, %c0_56] : memref<448x128xbf16, #tpu.memory_space<vmem>>, vector<32x32xbf16>
    %cst_57 = arith.constant dense<0.000000e+00> : vector<16x32xf32>
    %151 = tpu.matmul %149, %150, %cst_57 {dimension_numbers = #tpu.dot_dimension_numbers<[1], [0], [0], [1], [0, 0, 1, 1], [], []>} : vector<16x32xbf16>, vector<32x32xbf16>, vector<16x32xf32> -> vector<16x32xf32>
    %c1 = arith.constant 1 : index
    %c0_58 = arith.constant 0 : index
    %152 = vector.load %arg5[%c1, %c0_58] : memref<26x128xf32, #tpu.memory_space<vmem>>, vector<1x32xf32>
    %153 = vector.broadcast %152 : vector<1x32xf32> to vector<16x32xf32>
    %154 = arith.addf %151, %153 : vector<16x32xf32>
    %c32_59 = arith.constant 32 : index
    %c32_60 = arith.constant 32 : index
    %155 = vector.load %arg4[%c32_59, %c32_60] : memref<448x128xbf16, #tpu.memory_space<vmem>>, vector<32x64xbf16>
    %cst_61 = arith.constant dense<0.000000e+00> : vector<16x64xf32>
    %156 = tpu.matmul %2, %155, %cst_61 {dimension_numbers = #tpu.dot_dimension_numbers<[1], [0], [0], [1], [0, 0, 1, 1], [], []>} : vector<16x32xbf16>, vector<32x64xbf16>, vector<16x64xf32> -> vector<16x64xf32>
    %c1_62 = arith.constant 1 : index
    %c32_63 = arith.constant 32 : index
    %157 = vector.load %arg5[%c1_62, %c32_63] : memref<26x128xf32, #tpu.memory_space<vmem>>, vector<1x64xf32>
    %158 = vector.broadcast %157 : vector<1x64xf32> to vector<16x64xf32>
    %159 = arith.addf %156, %158 : vector<16x64xf32>
    %160 = vector.extract_strided_slice %159 {offsets = [0, 0], sizes = [16, 32], strides = [1, 1]} : vector<16x64xf32> to vector<16x32xf32>
    %161 = vector.extract_strided_slice %159 {offsets = [0, 32], sizes = [16, 32], strides = [1, 1]} : vector<16x64xf32> to vector<16x32xf32>
    %c96 = arith.constant 96 : index
    %c0_64 = arith.constant 0 : index
    %162 = vector.load %arg4[%c96, %c0_64] : memref<448x128xbf16, #tpu.memory_space<vmem>>, vector<32x32xbf16>
    %c3 = arith.constant 3 : index
    %c0_65 = arith.constant 0 : index
    %163 = vector.load %arg5[%c3, %c0_65] : memref<26x128xf32, #tpu.memory_space<vmem>>, vector<1x32xf32>
    %164 = arith.truncf %154 : vector<16x32xf32> to vector<16x32xbf16>
    %165 = arith.truncf %160 : vector<16x32xf32> to vector<16x32xbf16>
    %166 = arith.truncf %161 : vector<16x32xf32> to vector<16x32xbf16>
    %167 = vector.extract_strided_slice %164 {offsets = [0, 0], sizes = [16, 8], strides = [1, 1]} : vector<16x32xbf16> to vector<16x8xbf16>
    %168 = vector.extract_strided_slice %165 {offsets = [0, 0], sizes = [16, 8], strides = [1, 1]} : vector<16x32xbf16> to vector<16x8xbf16>
    %cst_66 = arith.constant dense<0.000000e+00> : vector<16x16xf32>
    %169 = tpu.matmul %167, %168, %cst_66 {dimension_numbers = #tpu.dot_dimension_numbers<[1], [1], [0], [0], [0, 0, 1, 0], [], []>} : vector<16x8xbf16>, vector<16x8xbf16>, vector<16x16xf32> -> vector<16x16xf32>
    %cst_67 = arith.constant 0.353553385 : f32
    %170 = vector.broadcast %cst_67 : f32 to vector<16x16xf32>
    %171 = arith.mulf %169, %170 : vector<16x16xf32>
    %172 = arith.addf %171, %4 : vector<16x16xf32>
    %cst_68 = arith.constant dense<0xFF800000> : vector<16xf32>
    %173 = vector.multi_reduction <maximumf>, %172, %cst_68 [1] : vector<16x16xf32> to vector<16xf32>
    %174 = vector.shape_cast %173 : vector<16xf32> to vector<16x1xf32>
    %175 = vector.broadcast %174 : vector<16x1xf32> to vector<16x16xf32>
    %176 = arith.subf %172, %175 : vector<16x16xf32>
    %177 = math.exp %176 : vector<16x16xf32>
    %cst_69 = arith.constant dense<0.000000e+00> : vector<16xf32>
    %178 = vector.multi_reduction <add>, %177, %cst_69 [1] : vector<16x16xf32> to vector<16xf32>
    %179 = vector.shape_cast %178 : vector<16xf32> to vector<16x1xf32>
    %180 = vector.broadcast %179 : vector<16x1xf32> to vector<16x16xf32>
    %181 = arith.divf %177, %180 : vector<16x16xf32>
    %182 = arith.truncf %181 : vector<16x16xf32> to vector<16x16xbf16>
    %183 = vector.extract_strided_slice %166 {offsets = [0, 0], sizes = [16, 8], strides = [1, 1]} : vector<16x32xbf16> to vector<16x8xbf16>
    %cst_70 = arith.constant dense<0.000000e+00> : vector<16x8xf32>
    %184 = tpu.matmul %182, %183, %cst_70 {dimension_numbers = #tpu.dot_dimension_numbers<[1], [0], [0], [1], [0, 0, 1, 1], [], []>} : vector<16x16xbf16>, vector<16x8xbf16>, vector<16x8xf32> -> vector<16x8xf32>
    %c0_71 = arith.constant 0 : index
    %c0_72 = arith.constant 0 : index
    %185 = vector.load %arg7[%c0_71, %c0_72] : memref<16x32xf32, #tpu.memory_space<vmem>>, vector<16x8xf32>
    tpu.vector_store %arg7[%c0_71, %c0_72], %184 {strides = array<i32>} : memref<16x32xf32, #tpu.memory_space<vmem>>, vector<16x8xf32>,
    %186 = vector.extract_strided_slice %164 {offsets = [0, 8], sizes = [16, 8], strides = [1, 1]} : vector<16x32xbf16> to vector<16x8xbf16>
    %187 = vector.extract_strided_slice %165 {offsets = [0, 8], sizes = [16, 8], strides = [1, 1]} : vector<16x32xbf16> to vector<16x8xbf16>
    %cst_73 = arith.constant dense<0.000000e+00> : vector<16x16xf32>
    %188 = tpu.matmul %186, %187, %cst_73 {dimension_numbers = #tpu.dot_dimension_numbers<[1], [1], [0], [0], [0, 0, 1, 0], [], []>} : vector<16x8xbf16>, vector<16x8xbf16>, vector<16x16xf32> -> vector<16x16xf32>
    %cst_74 = arith.constant 0.353553385 : f32
    %189 = vector.broadcast %cst_74 : f32 to vector<16x16xf32>
    %190 = arith.mulf %188, %189 : vector<16x16xf32>
    %191 = arith.addf %190, %4 : vector<16x16xf32>
    %cst_75 = arith.constant dense<0xFF800000> : vector<16xf32>
    %192 = vector.multi_reduction <maximumf>, %191, %cst_75 [1] : vector<16x16xf32> to vector<16xf32>
    %193 = vector.shape_cast %192 : vector<16xf32> to vector<16x1xf32>
    %194 = vector.broadcast %193 : vector<16x1xf32> to vector<16x16xf32>
    %195 = arith.subf %191, %194 : vector<16x16xf32>
    %196 = math.exp %195 : vector<16x16xf32>
    %cst_76 = arith.constant dense<0.000000e+00> : vector<16xf32>
    %197 = vector.multi_reduction <add>, %196, %cst_76 [1] : vector<16x16xf32> to vector<16xf32>
    %198 = vector.shape_cast %197 : vector<16xf32> to vector<16x1xf32>
    %199 = vector.broadcast %198 : vector<16x1xf32> to vector<16x16xf32>
    %200 = arith.divf %196, %199 : vector<16x16xf32>
    %201 = arith.truncf %200 : vector<16x16xf32> to vector<16x16xbf16>
    %202 = vector.extract_strided_slice %166 {offsets = [0, 8], sizes = [16, 8], strides = [1, 1]} : vector<16x32xbf16> to vector<16x8xbf16>
    %cst_77 = arith.constant dense<0.000000e+00> : vector<16x8xf32>
    %203 = tpu.matmul %201, %202, %cst_77 {dimension_numbers = #tpu.dot_dimension_numbers<[1], [0], [0], [1], [0, 0, 1, 1], [], []>} : vector<16x16xbf16>, vector<16x8xbf16>, vector<16x8xf32> -> vector<16x8xf32>
    %c0_78 = arith.constant 0 : index
    %c8_79 = arith.constant 8 : index
    %204 = vector.load %arg7[%c0_78, %c8_79] : memref<16x32xf32, #tpu.memory_space<vmem>>, vector<16x8xf32>
    tpu.vector_store %arg7[%c0_78, %c8_79], %203 {strides = array<i32>} : memref<16x32xf32, #tpu.memory_space<vmem>>, vector<16x8xf32>,
    %205 = vector.extract_strided_slice %164 {offsets = [0, 16], sizes = [16, 8], strides = [1, 1]} : vector<16x32xbf16> to vector<16x8xbf16>
    %206 = vector.extract_strided_slice %165 {offsets = [0, 16], sizes = [16, 8], strides = [1, 1]} : vector<16x32xbf16> to vector<16x8xbf16>
    %cst_80 = arith.constant dense<0.000000e+00> : vector<16x16xf32>
    %207 = tpu.matmul %205, %206, %cst_80 {dimension_numbers = #tpu.dot_dimension_numbers<[1], [1], [0], [0], [0, 0, 1, 0], [], []>} : vector<16x8xbf16>, vector<16x8xbf16>, vector<16x16xf32> -> vector<16x16xf32>
    %cst_81 = arith.constant 0.353553385 : f32
    %208 = vector.broadcast %cst_81 : f32 to vector<16x16xf32>
    %209 = arith.mulf %207, %208 : vector<16x16xf32>
    %210 = arith.addf %209, %4 : vector<16x16xf32>
    %cst_82 = arith.constant dense<0xFF800000> : vector<16xf32>
    %211 = vector.multi_reduction <maximumf>, %210, %cst_82 [1] : vector<16x16xf32> to vector<16xf32>
    %212 = vector.shape_cast %211 : vector<16xf32> to vector<16x1xf32>
    %213 = vector.broadcast %212 : vector<16x1xf32> to vector<16x16xf32>
    %214 = arith.subf %210, %213 : vector<16x16xf32>
    %215 = math.exp %214 : vector<16x16xf32>
    %cst_83 = arith.constant dense<0.000000e+00> : vector<16xf32>
    %216 = vector.multi_reduction <add>, %215, %cst_83 [1] : vector<16x16xf32> to vector<16xf32>
    %217 = vector.shape_cast %216 : vector<16xf32> to vector<16x1xf32>
    %218 = vector.broadcast %217 : vector<16x1xf32> to vector<16x16xf32>
    %219 = arith.divf %215, %218 : vector<16x16xf32>
    %220 = arith.truncf %219 : vector<16x16xf32> to vector<16x16xbf16>
    %221 = vector.extract_strided_slice %166 {offsets = [0, 16], sizes = [16, 8], strides = [1, 1]} : vector<16x32xbf16> to vector<16x8xbf16>
    %cst_84 = arith.constant dense<0.000000e+00> : vector<16x8xf32>
    %222 = tpu.matmul %220, %221, %cst_84 {dimension_numbers = #tpu.dot_dimension_numbers<[1], [0], [0], [1], [0, 0, 1, 1], [], []>} : vector<16x16xbf16>, vector<16x8xbf16>, vector<16x8xf32> -> vector<16x8xf32>
    %c0_85 = arith.constant 0 : index
    %c16_86 = arith.constant 16 : index
    %223 = vector.load %arg7[%c0_85, %c16_86] : memref<16x32xf32, #tpu.memory_space<vmem>>, vector<16x8xf32>
    tpu.vector_store %arg7[%c0_85, %c16_86], %222 {strides = array<i32>} : memref<16x32xf32, #tpu.memory_space<vmem>>, vector<16x8xf32>,
    %224 = vector.extract_strided_slice %164 {offsets = [0, 24], sizes = [16, 8], strides = [1, 1]} : vector<16x32xbf16> to vector<16x8xbf16>
    %225 = vector.extract_strided_slice %165 {offsets = [0, 24], sizes = [16, 8], strides = [1, 1]} : vector<16x32xbf16> to vector<16x8xbf16>
    %cst_87 = arith.constant dense<0.000000e+00> : vector<16x16xf32>
    %226 = tpu.matmul %224, %225, %cst_87 {dimension_numbers = #tpu.dot_dimension_numbers<[1], [1], [0], [0], [0, 0, 1, 0], [], []>} : vector<16x8xbf16>, vector<16x8xbf16>, vector<16x16xf32> -> vector<16x16xf32>
    %cst_88 = arith.constant 0.353553385 : f32
    %227 = vector.broadcast %cst_88 : f32 to vector<16x16xf32>
    %228 = arith.mulf %226, %227 : vector<16x16xf32>
    %229 = arith.addf %228, %4 : vector<16x16xf32>
    %cst_89 = arith.constant dense<0xFF800000> : vector<16xf32>
    %230 = vector.multi_reduction <maximumf>, %229, %cst_89 [1] : vector<16x16xf32> to vector<16xf32>
    %231 = vector.shape_cast %230 : vector<16xf32> to vector<16x1xf32>
    %232 = vector.broadcast %231 : vector<16x1xf32> to vector<16x16xf32>
    %233 = arith.subf %229, %232 : vector<16x16xf32>
    %234 = math.exp %233 : vector<16x16xf32>
    %cst_90 = arith.constant dense<0.000000e+00> : vector<16xf32>
    %235 = vector.multi_reduction <add>, %234, %cst_90 [1] : vector<16x16xf32> to vector<16xf32>
    %236 = vector.shape_cast %235 : vector<16xf32> to vector<16x1xf32>
    %237 = vector.broadcast %236 : vector<16x1xf32> to vector<16x16xf32>
    %238 = arith.divf %234, %237 : vector<16x16xf32>
    %239 = arith.truncf %238 : vector<16x16xf32> to vector<16x16xbf16>
    %240 = vector.extract_strided_slice %166 {offsets = [0, 24], sizes = [16, 8], strides = [1, 1]} : vector<16x32xbf16> to vector<16x8xbf16>
    %cst_91 = arith.constant dense<0.000000e+00> : vector<16x8xf32>
    %241 = tpu.matmul %239, %240, %cst_91 {dimension_numbers = #tpu.dot_dimension_numbers<[1], [0], [0], [1], [0, 0, 1, 1], [], []>} : vector<16x16xbf16>, vector<16x8xbf16>, vector<16x8xf32> -> vector<16x8xf32>
    %c0_92 = arith.constant 0 : index
    %c24_93 = arith.constant 24 : index
    %242 = vector.load %arg7[%c0_92, %c24_93] : memref<16x32xf32, #tpu.memory_space<vmem>>, vector<16x8xf32>
    tpu.vector_store %arg7[%c0_92, %c24_93], %241 {strides = array<i32>} : memref<16x32xf32, #tpu.memory_space<vmem>>, vector<16x8xf32>,
    %c0_94 = arith.constant 0 : index
    %c0_95 = arith.constant 0 : index
    %243 = vector.load %arg7[%c0_94, %c0_95] : memref<16x32xf32, #tpu.memory_space<vmem>>, vector<16x32xf32>
    %244 = arith.truncf %243 : vector<16x32xf32> to vector<16x32xbf16>
    %cst_96 = arith.constant dense<0.000000e+00> : vector<16x32xf32>
    %245 = tpu.matmul %244, %162, %cst_96 {dimension_numbers = #tpu.dot_dimension_numbers<[1], [0], [0], [1], [0, 0, 1, 1], [], []>} : vector<16x32xbf16>, vector<32x32xbf16>, vector<16x32xf32> -> vector<16x32xf32>
    %246 = vector.broadcast %163 : vector<1x32xf32> to vector<16x32xf32>
    %247 = arith.addf %245, %246 : vector<16x32xf32>
    %248 = arith.addf %124, %247 : vector<16x32xf32>
    %c10 = arith.constant 10 : index
    %c0_97 = arith.constant 0 : index
    %249 = vector.load %arg5[%c10, %c0_97] : memref<26x128xf32, #tpu.memory_space<vmem>>, vector<1x32xf32>
    %c11 = arith.constant 11 : index
    %c0_98 = arith.constant 0 : index
    %250 = vector.load %arg5[%c11, %c0_98] : memref<26x128xf32, #tpu.memory_space<vmem>>, vector<1x32xf32>
    %cst_99 = arith.constant dense<0.000000e+00> : vector<16xf32>
    %251 = vector.multi_reduction <add>, %248, %cst_99 [1] : vector<16x32xf32> to vector<16xf32>
    %252 = vector.shape_cast %251 : vector<16xf32> to vector<16x1xf32>
    %cst_100 = arith.constant 3.200000e+01 : f32
    %253 = vector.broadcast %cst_100 : f32 to vector<16x1xf32>
    %254 = arith.divf %252, %253 : vector<16x1xf32>
    %255 = vector.broadcast %254 : vector<16x1xf32> to vector<16x32xf32>
    %256 = arith.subf %248, %255 : vector<16x32xf32>
    %257 = arith.mulf %256, %256 : vector<16x32xf32>
    %cst_101 = arith.constant dense<0.000000e+00> : vector<16xf32>
    %258 = vector.multi_reduction <add>, %257, %cst_101 [1] : vector<16x32xf32> to vector<16xf32>
    %259 = vector.shape_cast %258 : vector<16xf32> to vector<16x1xf32>
    %cst_102 = arith.constant 0.0322580636 : f32
    %260 = vector.broadcast %cst_102 : f32 to vector<16x1xf32>
    %261 = arith.mulf %259, %260 : vector<16x1xf32>
    %262 = vector.broadcast %254 : vector<16x1xf32> to vector<16x32xf32>
    %263 = arith.subf %248, %262 : vector<16x32xf32>
    %264 = vector.broadcast %249 : vector<1x32xf32> to vector<16x32xf32>
    %265 = arith.mulf %264, %263 : vector<16x32xf32>
    %266 = math.sqrt %261 : vector<16x1xf32>
    %cst_103 = arith.constant 9.99999997E-7 : f32
    %267 = vector.broadcast %cst_103 : f32 to vector<16x1xf32>
    %268 = arith.addf %266, %267 : vector<16x1xf32>
    %269 = vector.broadcast %268 : vector<16x1xf32> to vector<16x32xf32>
    %270 = arith.divf %265, %269 : vector<16x32xf32>
    %271 = vector.broadcast %250 : vector<1x32xf32> to vector<16x32xf32>
    %272 = arith.addf %270, %271 : vector<16x32xf32>
    %273 = arith.truncf %272 : vector<16x32xf32> to vector<16x32xbf16>
    %c128 = arith.constant 128 : index
    %c0_104 = arith.constant 0 : index
    %274 = vector.load %arg4[%c128, %c0_104] : memref<448x128xbf16, #tpu.memory_space<vmem>>, vector<32x64xbf16>
    %cst_105 = arith.constant dense<0.000000e+00> : vector<16x64xf32>
    %275 = tpu.matmul %273, %274, %cst_105 {dimension_numbers = #tpu.dot_dimension_numbers<[1], [0], [0], [1], [0, 0, 1, 1], [], []>} : vector<16x32xbf16>, vector<32x64xbf16>, vector<16x64xf32> -> vector<16x64xf32>
    %c4 = arith.constant 4 : index
    %c0_106 = arith.constant 0 : index
    %276 = vector.load %arg5[%c4, %c0_106] : memref<26x128xf32, #tpu.memory_space<vmem>>, vector<1x64xf32>
    %277 = vector.broadcast %276 : vector<1x64xf32> to vector<16x64xf32>
    %278 = arith.addf %275, %277 : vector<16x64xf32>
    %cst_107 = arith.constant 0.000000e+00 : f32
    %279 = vector.broadcast %cst_107 : f32 to vector<16x64xf32>
    %280 = arith.maximumf %278, %279 : vector<16x64xf32>
    %281 = arith.truncf %280 : vector<16x64xf32> to vector<16x64xbf16>
    %c160 = arith.constant 160 : index
    %c0_108 = arith.constant 0 : index
    %282 = vector.load %arg4[%c160, %c0_108] : memref<448x128xbf16, #tpu.memory_space<vmem>>, vector<64x32xbf16>
    %cst_109 = arith.constant dense<0.000000e+00> : vector<16x32xf32>
    %283 = tpu.matmul %281, %282, %cst_109 {dimension_numbers = #tpu.dot_dimension_numbers<[1], [0], [0], [1], [0, 0, 1, 1], [], []>} : vector<16x64xbf16>, vector<64x32xbf16>, vector<16x32xf32> -> vector<16x32xf32>
    %284 = arith.addf %248, %283 : vector<16x32xf32>
    %c5 = arith.constant 5 : index
    %c0_110 = arith.constant 0 : index
    %285 = vector.load %arg5[%c5, %c0_110] : memref<26x128xf32, #tpu.memory_space<vmem>>, vector<1x32xf32>
    %286 = vector.broadcast %285 : vector<1x32xf32> to vector<16x32xf32>
    %287 = arith.addf %284, %286 : vector<16x32xf32>
    %c18 = arith.constant 18 : index
    %c0_111 = arith.constant 0 : index
    %288 = vector.load %arg5[%c18, %c0_111] : memref<26x128xf32, #tpu.memory_space<vmem>>, vector<1x32xf32>
    %c19 = arith.constant 19 : index
    %c0_112 = arith.constant 0 : index
    %289 = vector.load %arg5[%c19, %c0_112] : memref<26x128xf32, #tpu.memory_space<vmem>>, vector<1x32xf32>
    %cst_113 = arith.constant dense<0.000000e+00> : vector<16xf32>
    %290 = vector.multi_reduction <add>, %287, %cst_113 [1] : vector<16x32xf32> to vector<16xf32>
    %291 = vector.shape_cast %290 : vector<16xf32> to vector<16x1xf32>
    %cst_114 = arith.constant 3.200000e+01 : f32
    %292 = vector.broadcast %cst_114 : f32 to vector<16x1xf32>
    %293 = arith.divf %291, %292 : vector<16x1xf32>
    %294 = vector.broadcast %293 : vector<16x1xf32> to vector<16x32xf32>
    %295 = arith.subf %287, %294 : vector<16x32xf32>
    %296 = arith.mulf %295, %295 : vector<16x32xf32>
    %cst_115 = arith.constant dense<0.000000e+00> : vector<16xf32>
    %297 = vector.multi_reduction <add>, %296, %cst_115 [1] : vector<16x32xf32> to vector<16xf32>
    %298 = vector.shape_cast %297 : vector<16xf32> to vector<16x1xf32>
    %cst_116 = arith.constant 0.0322580636 : f32
    %299 = vector.broadcast %cst_116 : f32 to vector<16x1xf32>
    %300 = arith.mulf %298, %299 : vector<16x1xf32>
    %301 = vector.broadcast %293 : vector<16x1xf32> to vector<16x32xf32>
    %302 = arith.subf %287, %301 : vector<16x32xf32>
    %303 = vector.broadcast %288 : vector<1x32xf32> to vector<16x32xf32>
    %304 = arith.mulf %303, %302 : vector<16x32xf32>
    %305 = math.sqrt %300 : vector<16x1xf32>
    %cst_117 = arith.constant 9.99999997E-7 : f32
    %306 = vector.broadcast %cst_117 : f32 to vector<16x1xf32>
    %307 = arith.addf %305, %306 : vector<16x1xf32>
    %308 = vector.broadcast %307 : vector<16x1xf32> to vector<16x32xf32>
    %309 = arith.divf %304, %308 : vector<16x32xf32>
    %310 = vector.broadcast %289 : vector<1x32xf32> to vector<16x32xf32>
    %311 = arith.addf %309, %310 : vector<16x32xf32>
    %312 = arith.truncf %311 : vector<16x32xf32> to vector<16x32xbf16>
    %c224 = arith.constant 224 : index
    %c0_118 = arith.constant 0 : index
    %313 = vector.load %arg4[%c224, %c0_118] : memref<448x128xbf16, #tpu.memory_space<vmem>>, vector<32x96xbf16>
    %cst_119 = arith.constant dense<0.000000e+00> : vector<16x96xf32>
    %314 = tpu.matmul %312, %313, %cst_119 {dimension_numbers = #tpu.dot_dimension_numbers<[1], [0], [0], [1], [0, 0, 1, 1], [], []>} : vector<16x32xbf16>, vector<32x96xbf16>, vector<16x96xf32> -> vector<16x96xf32>
    %c12 = arith.constant 12 : index
    %c0_120 = arith.constant 0 : index
    %315 = vector.load %arg5[%c12, %c0_120] : memref<26x128xf32, #tpu.memory_space<vmem>>, vector<1x96xf32>
    %316 = vector.broadcast %315 : vector<1x96xf32> to vector<16x96xf32>
    %317 = arith.addf %314, %316 : vector<16x96xf32>
    %318 = vector.extract_strided_slice %317 {offsets = [0, 0], sizes = [16, 32], strides = [1, 1]} : vector<16x96xf32> to vector<16x32xf32>
    %319 = vector.extract_strided_slice %317 {offsets = [0, 32], sizes = [16, 32], strides = [1, 1]} : vector<16x96xf32> to vector<16x32xf32>
    %320 = vector.extract_strided_slice %317 {offsets = [0, 64], sizes = [16, 32], strides = [1, 1]} : vector<16x96xf32> to vector<16x32xf32>
    %c288 = arith.constant 288 : index
    %c0_121 = arith.constant 0 : index
    %321 = vector.load %arg4[%c288, %c0_121] : memref<448x128xbf16, #tpu.memory_space<vmem>>, vector<32x32xbf16>
    %c14 = arith.constant 14 : index
    %c0_122 = arith.constant 0 : index
    %322 = vector.load %arg5[%c14, %c0_122] : memref<26x128xf32, #tpu.memory_space<vmem>>, vector<1x32xf32>
    %323 = arith.truncf %318 : vector<16x32xf32> to vector<16x32xbf16>
    %324 = arith.truncf %319 : vector<16x32xf32> to vector<16x32xbf16>
    %325 = arith.truncf %320 : vector<16x32xf32> to vector<16x32xbf16>
    %326 = vector.extract_strided_slice %323 {offsets = [0, 0], sizes = [16, 8], strides = [1, 1]} : vector<16x32xbf16> to vector<16x8xbf16>
    %327 = vector.extract_strided_slice %324 {offsets = [0, 0], sizes = [16, 8], strides = [1, 1]} : vector<16x32xbf16> to vector<16x8xbf16>
    %cst_123 = arith.constant dense<0.000000e+00> : vector<16x16xf32>
    %328 = tpu.matmul %326, %327, %cst_123 {dimension_numbers = #tpu.dot_dimension_numbers<[1], [1], [0], [0], [0, 0, 1, 0], [], []>} : vector<16x8xbf16>, vector<16x8xbf16>, vector<16x16xf32> -> vector<16x16xf32>
    %cst_124 = arith.constant 0.353553385 : f32
    %329 = vector.broadcast %cst_124 : f32 to vector<16x16xf32>
    %330 = arith.mulf %328, %329 : vector<16x16xf32>
    %331 = arith.addf %330, %3 : vector<16x16xf32>
    %cst_125 = arith.constant dense<0xFF800000> : vector<16xf32>
    %332 = vector.multi_reduction <maximumf>, %331, %cst_125 [1] : vector<16x16xf32> to vector<16xf32>
    %333 = vector.shape_cast %332 : vector<16xf32> to vector<16x1xf32>
    %334 = vector.broadcast %333 : vector<16x1xf32> to vector<16x16xf32>
    %335 = arith.subf %331, %334 : vector<16x16xf32>
    %336 = math.exp %335 : vector<16x16xf32>
    %cst_126 = arith.constant dense<0.000000e+00> : vector<16xf32>
    %337 = vector.multi_reduction <add>, %336, %cst_126 [1] : vector<16x16xf32> to vector<16xf32>
    %338 = vector.shape_cast %337 : vector<16xf32> to vector<16x1xf32>
    %339 = vector.broadcast %338 : vector<16x1xf32> to vector<16x16xf32>
    %340 = arith.divf %336, %339 : vector<16x16xf32>
    %341 = arith.truncf %340 : vector<16x16xf32> to vector<16x16xbf16>
    %342 = vector.extract_strided_slice %325 {offsets = [0, 0], sizes = [16, 8], strides = [1, 1]} : vector<16x32xbf16> to vector<16x8xbf16>
    %cst_127 = arith.constant dense<0.000000e+00> : vector<16x8xf32>
    %343 = tpu.matmul %341, %342, %cst_127 {dimension_numbers = #tpu.dot_dimension_numbers<[1], [0], [0], [1], [0, 0, 1, 1], [], []>} : vector<16x16xbf16>, vector<16x8xbf16>, vector<16x8xf32> -> vector<16x8xf32>
    %c0_128 = arith.constant 0 : index
    %c0_129 = arith.constant 0 : index
    %344 = vector.load %arg7[%c0_128, %c0_129] : memref<16x32xf32, #tpu.memory_space<vmem>>, vector<16x8xf32>
    tpu.vector_store %arg7[%c0_128, %c0_129], %343 {strides = array<i32>} : memref<16x32xf32, #tpu.memory_space<vmem>>, vector<16x8xf32>,
    %345 = vector.extract_strided_slice %323 {offsets = [0, 8], sizes = [16, 8], strides = [1, 1]} : vector<16x32xbf16> to vector<16x8xbf16>
    %346 = vector.extract_strided_slice %324 {offsets = [0, 8], sizes = [16, 8], strides = [1, 1]} : vector<16x32xbf16> to vector<16x8xbf16>
    %cst_130 = arith.constant dense<0.000000e+00> : vector<16x16xf32>
    %347 = tpu.matmul %345, %346, %cst_130 {dimension_numbers = #tpu.dot_dimension_numbers<[1], [1], [0], [0], [0, 0, 1, 0], [], []>} : vector<16x8xbf16>, vector<16x8xbf16>, vector<16x16xf32> -> vector<16x16xf32>
    %cst_131 = arith.constant 0.353553385 : f32
    %348 = vector.broadcast %cst_131 : f32 to vector<16x16xf32>
    %349 = arith.mulf %347, %348 : vector<16x16xf32>
    %350 = arith.addf %349, %3 : vector<16x16xf32>
    %cst_132 = arith.constant dense<0xFF800000> : vector<16xf32>
    %351 = vector.multi_reduction <maximumf>, %350, %cst_132 [1] : vector<16x16xf32> to vector<16xf32>
    %352 = vector.shape_cast %351 : vector<16xf32> to vector<16x1xf32>
    %353 = vector.broadcast %352 : vector<16x1xf32> to vector<16x16xf32>
    %354 = arith.subf %350, %353 : vector<16x16xf32>
    %355 = math.exp %354 : vector<16x16xf32>
    %cst_133 = arith.constant dense<0.000000e+00> : vector<16xf32>
    %356 = vector.multi_reduction <add>, %355, %cst_133 [1] : vector<16x16xf32> to vector<16xf32>
    %357 = vector.shape_cast %356 : vector<16xf32> to vector<16x1xf32>
    %358 = vector.broadcast %357 : vector<16x1xf32> to vector<16x16xf32>
    %359 = arith.divf %355, %358 : vector<16x16xf32>
    %360 = arith.truncf %359 : vector<16x16xf32> to vector<16x16xbf16>
    %361 = vector.extract_strided_slice %325 {offsets = [0, 8], sizes = [16, 8], strides = [1, 1]} : vector<16x32xbf16> to vector<16x8xbf16>
    %cst_134 = arith.constant dense<0.000000e+00> : vector<16x8xf32>
    %362 = tpu.matmul %360, %361, %cst_134 {dimension_numbers = #tpu.dot_dimension_numbers<[1], [0], [0], [1], [0, 0, 1, 1], [], []>} : vector<16x16xbf16>, vector<16x8xbf16>, vector<16x8xf32> -> vector<16x8xf32>
    %c0_135 = arith.constant 0 : index
    %c8_136 = arith.constant 8 : index
    %363 = vector.load %arg7[%c0_135, %c8_136] : memref<16x32xf32, #tpu.memory_space<vmem>>, vector<16x8xf32>
    tpu.vector_store %arg7[%c0_135, %c8_136], %362 {strides = array<i32>} : memref<16x32xf32, #tpu.memory_space<vmem>>, vector<16x8xf32>,
    %364 = vector.extract_strided_slice %323 {offsets = [0, 16], sizes = [16, 8], strides = [1, 1]} : vector<16x32xbf16> to vector<16x8xbf16>
    %365 = vector.extract_strided_slice %324 {offsets = [0, 16], sizes = [16, 8], strides = [1, 1]} : vector<16x32xbf16> to vector<16x8xbf16>
    %cst_137 = arith.constant dense<0.000000e+00> : vector<16x16xf32>
    %366 = tpu.matmul %364, %365, %cst_137 {dimension_numbers = #tpu.dot_dimension_numbers<[1], [1], [0], [0], [0, 0, 1, 0], [], []>} : vector<16x8xbf16>, vector<16x8xbf16>, vector<16x16xf32> -> vector<16x16xf32>
    %cst_138 = arith.constant 0.353553385 : f32
    %367 = vector.broadcast %cst_138 : f32 to vector<16x16xf32>
    %368 = arith.mulf %366, %367 : vector<16x16xf32>
    %369 = arith.addf %368, %3 : vector<16x16xf32>
    %cst_139 = arith.constant dense<0xFF800000> : vector<16xf32>
    %370 = vector.multi_reduction <maximumf>, %369, %cst_139 [1] : vector<16x16xf32> to vector<16xf32>
    %371 = vector.shape_cast %370 : vector<16xf32> to vector<16x1xf32>
    %372 = vector.broadcast %371 : vector<16x1xf32> to vector<16x16xf32>
    %373 = arith.subf %369, %372 : vector<16x16xf32>
    %374 = math.exp %373 : vector<16x16xf32>
    %cst_140 = arith.constant dense<0.000000e+00> : vector<16xf32>
    %375 = vector.multi_reduction <add>, %374, %cst_140 [1] : vector<16x16xf32> to vector<16xf32>
    %376 = vector.shape_cast %375 : vector<16xf32> to vector<16x1xf32>
    %377 = vector.broadcast %376 : vector<16x1xf32> to vector<16x16xf32>
    %378 = arith.divf %374, %377 : vector<16x16xf32>
    %379 = arith.truncf %378 : vector<16x16xf32> to vector<16x16xbf16>
    %380 = vector.extract_strided_slice %325 {offsets = [0, 16], sizes = [16, 8], strides = [1, 1]} : vector<16x32xbf16> to vector<16x8xbf16>
    %cst_141 = arith.constant dense<0.000000e+00> : vector<16x8xf32>
    %381 = tpu.matmul %379, %380, %cst_141 {dimension_numbers = #tpu.dot_dimension_numbers<[1], [0], [0], [1], [0, 0, 1, 1], [], []>} : vector<16x16xbf16>, vector<16x8xbf16>, vector<16x8xf32> -> vector<16x8xf32>
    %c0_142 = arith.constant 0 : index
    %c16_143 = arith.constant 16 : index
    %382 = vector.load %arg7[%c0_142, %c16_143] : memref<16x32xf32, #tpu.memory_space<vmem>>, vector<16x8xf32>
    tpu.vector_store %arg7[%c0_142, %c16_143], %381 {strides = array<i32>} : memref<16x32xf32, #tpu.memory_space<vmem>>, vector<16x8xf32>,
    %383 = vector.extract_strided_slice %323 {offsets = [0, 24], sizes = [16, 8], strides = [1, 1]} : vector<16x32xbf16> to vector<16x8xbf16>
    %384 = vector.extract_strided_slice %324 {offsets = [0, 24], sizes = [16, 8], strides = [1, 1]} : vector<16x32xbf16> to vector<16x8xbf16>
    %cst_144 = arith.constant dense<0.000000e+00> : vector<16x16xf32>
    %385 = tpu.matmul %383, %384, %cst_144 {dimension_numbers = #tpu.dot_dimension_numbers<[1], [1], [0], [0], [0, 0, 1, 0], [], []>} : vector<16x8xbf16>, vector<16x8xbf16>, vector<16x16xf32> -> vector<16x16xf32>
    %cst_145 = arith.constant 0.353553385 : f32
    %386 = vector.broadcast %cst_145 : f32 to vector<16x16xf32>
    %387 = arith.mulf %385, %386 : vector<16x16xf32>
    %388 = arith.addf %387, %3 : vector<16x16xf32>
    %cst_146 = arith.constant dense<0xFF800000> : vector<16xf32>
    %389 = vector.multi_reduction <maximumf>, %388, %cst_146 [1] : vector<16x16xf32> to vector<16xf32>
    %390 = vector.shape_cast %389 : vector<16xf32> to vector<16x1xf32>
    %391 = vector.broadcast %390 : vector<16x1xf32> to vector<16x16xf32>
    %392 = arith.subf %388, %391 : vector<16x16xf32>
    %393 = math.exp %392 : vector<16x16xf32>
    %cst_147 = arith.constant dense<0.000000e+00> : vector<16xf32>
    %394 = vector.multi_reduction <add>, %393, %cst_147 [1] : vector<16x16xf32> to vector<16xf32>
    %395 = vector.shape_cast %394 : vector<16xf32> to vector<16x1xf32>
    %396 = vector.broadcast %395 : vector<16x1xf32> to vector<16x16xf32>
    %397 = arith.divf %393, %396 : vector<16x16xf32>
    %398 = arith.truncf %397 : vector<16x16xf32> to vector<16x16xbf16>
    %399 = vector.extract_strided_slice %325 {offsets = [0, 24], sizes = [16, 8], strides = [1, 1]} : vector<16x32xbf16> to vector<16x8xbf16>
    %cst_148 = arith.constant dense<0.000000e+00> : vector<16x8xf32>
    %400 = tpu.matmul %398, %399, %cst_148 {dimension_numbers = #tpu.dot_dimension_numbers<[1], [0], [0], [1], [0, 0, 1, 1], [], []>} : vector<16x16xbf16>, vector<16x8xbf16>, vector<16x8xf32> -> vector<16x8xf32>
    %c0_149 = arith.constant 0 : index
    %c24_150 = arith.constant 24 : index
    %401 = vector.load %arg7[%c0_149, %c24_150] : memref<16x32xf32, #tpu.memory_space<vmem>>, vector<16x8xf32>
    tpu.vector_store %arg7[%c0_149, %c24_150], %400 {strides = array<i32>} : memref<16x32xf32, #tpu.memory_space<vmem>>, vector<16x8xf32>,
    %c0_151 = arith.constant 0 : index
    %c0_152 = arith.constant 0 : index
    %402 = vector.load %arg7[%c0_151, %c0_152] : memref<16x32xf32, #tpu.memory_space<vmem>>, vector<16x32xf32>
    %403 = arith.truncf %402 : vector<16x32xf32> to vector<16x32xbf16>
    %cst_153 = arith.constant dense<0.000000e+00> : vector<16x32xf32>
    %404 = tpu.matmul %403, %321, %cst_153 {dimension_numbers = #tpu.dot_dimension_numbers<[1], [0], [0], [1], [0, 0, 1, 1], [], []>} : vector<16x32xbf16>, vector<32x32xbf16>, vector<16x32xf32> -> vector<16x32xf32>
    %405 = vector.broadcast %322 : vector<1x32xf32> to vector<16x32xf32>
    %406 = arith.addf %404, %405 : vector<16x32xf32>
    %407 = arith.addf %287, %406 : vector<16x32xf32>
    %c20 = arith.constant 20 : index
    %c0_154 = arith.constant 0 : index
    %408 = vector.load %arg5[%c20, %c0_154] : memref<26x128xf32, #tpu.memory_space<vmem>>, vector<1x32xf32>
    %c21 = arith.constant 21 : index
    %c0_155 = arith.constant 0 : index
    %409 = vector.load %arg5[%c21, %c0_155] : memref<26x128xf32, #tpu.memory_space<vmem>>, vector<1x32xf32>
    %cst_156 = arith.constant dense<0.000000e+00> : vector<16xf32>
    %410 = vector.multi_reduction <add>, %407, %cst_156 [1] : vector<16x32xf32> to vector<16xf32>
    %411 = vector.shape_cast %410 : vector<16xf32> to vector<16x1xf32>
    %cst_157 = arith.constant 3.200000e+01 : f32
    %412 = vector.broadcast %cst_157 : f32 to vector<16x1xf32>
    %413 = arith.divf %411, %412 : vector<16x1xf32>
    %414 = vector.broadcast %413 : vector<16x1xf32> to vector<16x32xf32>
    %415 = arith.subf %407, %414 : vector<16x32xf32>
    %416 = arith.mulf %415, %415 : vector<16x32xf32>
    %cst_158 = arith.constant dense<0.000000e+00> : vector<16xf32>
    %417 = vector.multi_reduction <add>, %416, %cst_158 [1] : vector<16x32xf32> to vector<16xf32>
    %418 = vector.shape_cast %417 : vector<16xf32> to vector<16x1xf32>
    %cst_159 = arith.constant 0.0322580636 : f32
    %419 = vector.broadcast %cst_159 : f32 to vector<16x1xf32>
    %420 = arith.mulf %418, %419 : vector<16x1xf32>
    %421 = vector.broadcast %413 : vector<16x1xf32> to vector<16x32xf32>
    %422 = arith.subf %407, %421 : vector<16x32xf32>
    %423 = vector.broadcast %408 : vector<1x32xf32> to vector<16x32xf32>
    %424 = arith.mulf %423, %422 : vector<16x32xf32>
    %425 = math.sqrt %420 : vector<16x1xf32>
    %cst_160 = arith.constant 9.99999997E-7 : f32
    %426 = vector.broadcast %cst_160 : f32 to vector<16x1xf32>
    %427 = arith.addf %425, %426 : vector<16x1xf32>
    %428 = vector.broadcast %427 : vector<16x1xf32> to vector<16x32xf32>
    %429 = arith.divf %424, %428 : vector<16x32xf32>
    %430 = vector.broadcast %409 : vector<1x32xf32> to vector<16x32xf32>
    %431 = arith.addf %429, %430 : vector<16x32xf32>
    %432 = arith.truncf %431 : vector<16x32xf32> to vector<16x32xbf16>
    %c256 = arith.constant 256 : index
    %c0_161 = arith.constant 0 : index
    %433 = vector.load %arg4[%c256, %c0_161] : memref<448x128xbf16, #tpu.memory_space<vmem>>, vector<32x32xbf16>
    %cst_162 = arith.constant dense<0.000000e+00> : vector<16x32xf32>
    %434 = tpu.matmul %432, %433, %cst_162 {dimension_numbers = #tpu.dot_dimension_numbers<[1], [0], [0], [1], [0, 0, 1, 1], [], []>} : vector<16x32xbf16>, vector<32x32xbf16>, vector<16x32xf32> -> vector<16x32xf32>
    %c13 = arith.constant 13 : index
    %c0_163 = arith.constant 0 : index
    %435 = vector.load %arg5[%c13, %c0_163] : memref<26x128xf32, #tpu.memory_space<vmem>>, vector<1x32xf32>
    %436 = vector.broadcast %435 : vector<1x32xf32> to vector<16x32xf32>
    %437 = arith.addf %434, %436 : vector<16x32xf32>
    %c256_164 = arith.constant 256 : index
    %c32_165 = arith.constant 32 : index
    %438 = vector.load %arg4[%c256_164, %c32_165] : memref<448x128xbf16, #tpu.memory_space<vmem>>, vector<32x64xbf16>
    %cst_166 = arith.constant dense<0.000000e+00> : vector<16x64xf32>
    %439 = tpu.matmul %2, %438, %cst_166 {dimension_numbers = #tpu.dot_dimension_numbers<[1], [0], [0], [1], [0, 0, 1, 1], [], []>} : vector<16x32xbf16>, vector<32x64xbf16>, vector<16x64xf32> -> vector<16x64xf32>
    %c13_167 = arith.constant 13 : index
    %c32_168 = arith.constant 32 : index
    %440 = vector.load %arg5[%c13_167, %c32_168] : memref<26x128xf32, #tpu.memory_space<vmem>>, vector<1x64xf32>
    %441 = vector.broadcast %440 : vector<1x64xf32> to vector<16x64xf32>
    %442 = arith.addf %439, %441 : vector<16x64xf32>
    %443 = vector.extract_strided_slice %442 {offsets = [0, 0], sizes = [16, 32], strides = [1, 1]} : vector<16x64xf32> to vector<16x32xf32>
    %444 = vector.extract_strided_slice %442 {offsets = [0, 32], sizes = [16, 32], strides = [1, 1]} : vector<16x64xf32> to vector<16x32xf32>
    %c320 = arith.constant 320 : index
    %c0_169 = arith.constant 0 : index
    %445 = vector.load %arg4[%c320, %c0_169] : memref<448x128xbf16, #tpu.memory_space<vmem>>, vector<32x32xbf16>
    %c15 = arith.constant 15 : index
    %c0_170 = arith.constant 0 : index
    %446 = vector.load %arg5[%c15, %c0_170] : memref<26x128xf32, #tpu.memory_space<vmem>>, vector<1x32xf32>
    %447 = arith.truncf %437 : vector<16x32xf32> to vector<16x32xbf16>
    %448 = arith.truncf %443 : vector<16x32xf32> to vector<16x32xbf16>
    %449 = arith.truncf %444 : vector<16x32xf32> to vector<16x32xbf16>
    %450 = vector.extract_strided_slice %447 {offsets = [0, 0], sizes = [16, 8], strides = [1, 1]} : vector<16x32xbf16> to vector<16x8xbf16>
    %451 = vector.extract_strided_slice %448 {offsets = [0, 0], sizes = [16, 8], strides = [1, 1]} : vector<16x32xbf16> to vector<16x8xbf16>
    %cst_171 = arith.constant dense<0.000000e+00> : vector<16x16xf32>
    %452 = tpu.matmul %450, %451, %cst_171 {dimension_numbers = #tpu.dot_dimension_numbers<[1], [1], [0], [0], [0, 0, 1, 0], [], []>} : vector<16x8xbf16>, vector<16x8xbf16>, vector<16x16xf32> -> vector<16x16xf32>
    %cst_172 = arith.constant 0.353553385 : f32
    %453 = vector.broadcast %cst_172 : f32 to vector<16x16xf32>
    %454 = arith.mulf %452, %453 : vector<16x16xf32>
    %455 = arith.addf %454, %4 : vector<16x16xf32>
    %cst_173 = arith.constant dense<0xFF800000> : vector<16xf32>
    %456 = vector.multi_reduction <maximumf>, %455, %cst_173 [1] : vector<16x16xf32> to vector<16xf32>
    %457 = vector.shape_cast %456 : vector<16xf32> to vector<16x1xf32>
    %458 = vector.broadcast %457 : vector<16x1xf32> to vector<16x16xf32>
    %459 = arith.subf %455, %458 : vector<16x16xf32>
    %460 = math.exp %459 : vector<16x16xf32>
    %cst_174 = arith.constant dense<0.000000e+00> : vector<16xf32>
    %461 = vector.multi_reduction <add>, %460, %cst_174 [1] : vector<16x16xf32> to vector<16xf32>
    %462 = vector.shape_cast %461 : vector<16xf32> to vector<16x1xf32>
    %463 = vector.broadcast %462 : vector<16x1xf32> to vector<16x16xf32>
    %464 = arith.divf %460, %463 : vector<16x16xf32>
    %465 = arith.truncf %464 : vector<16x16xf32> to vector<16x16xbf16>
    %466 = vector.extract_strided_slice %449 {offsets = [0, 0], sizes = [16, 8], strides = [1, 1]} : vector<16x32xbf16> to vector<16x8xbf16>
    %cst_175 = arith.constant dense<0.000000e+00> : vector<16x8xf32>
    %467 = tpu.matmul %465, %466, %cst_175 {dimension_numbers = #tpu.dot_dimension_numbers<[1], [0], [0], [1], [0, 0, 1, 1], [], []>} : vector<16x16xbf16>, vector<16x8xbf16>, vector<16x8xf32> -> vector<16x8xf32>
    %c0_176 = arith.constant 0 : index
    %c0_177 = arith.constant 0 : index
    %468 = vector.load %arg7[%c0_176, %c0_177] : memref<16x32xf32, #tpu.memory_space<vmem>>, vector<16x8xf32>
    tpu.vector_store %arg7[%c0_176, %c0_177], %467 {strides = array<i32>} : memref<16x32xf32, #tpu.memory_space<vmem>>, vector<16x8xf32>,
    %469 = vector.extract_strided_slice %447 {offsets = [0, 8], sizes = [16, 8], strides = [1, 1]} : vector<16x32xbf16> to vector<16x8xbf16>
    %470 = vector.extract_strided_slice %448 {offsets = [0, 8], sizes = [16, 8], strides = [1, 1]} : vector<16x32xbf16> to vector<16x8xbf16>
    %cst_178 = arith.constant dense<0.000000e+00> : vector<16x16xf32>
    %471 = tpu.matmul %469, %470, %cst_178 {dimension_numbers = #tpu.dot_dimension_numbers<[1], [1], [0], [0], [0, 0, 1, 0], [], []>} : vector<16x8xbf16>, vector<16x8xbf16>, vector<16x16xf32> -> vector<16x16xf32>
    %cst_179 = arith.constant 0.353553385 : f32
    %472 = vector.broadcast %cst_179 : f32 to vector<16x16xf32>
    %473 = arith.mulf %471, %472 : vector<16x16xf32>
    %474 = arith.addf %473, %4 : vector<16x16xf32>
    %cst_180 = arith.constant dense<0xFF800000> : vector<16xf32>
    %475 = vector.multi_reduction <maximumf>, %474, %cst_180 [1] : vector<16x16xf32> to vector<16xf32>
    %476 = vector.shape_cast %475 : vector<16xf32> to vector<16x1xf32>
    %477 = vector.broadcast %476 : vector<16x1xf32> to vector<16x16xf32>
    %478 = arith.subf %474, %477 : vector<16x16xf32>
    %479 = math.exp %478 : vector<16x16xf32>
    %cst_181 = arith.constant dense<0.000000e+00> : vector<16xf32>
    %480 = vector.multi_reduction <add>, %479, %cst_181 [1] : vector<16x16xf32> to vector<16xf32>
    %481 = vector.shape_cast %480 : vector<16xf32> to vector<16x1xf32>
    %482 = vector.broadcast %481 : vector<16x1xf32> to vector<16x16xf32>
    %483 = arith.divf %479, %482 : vector<16x16xf32>
    %484 = arith.truncf %483 : vector<16x16xf32> to vector<16x16xbf16>
    %485 = vector.extract_strided_slice %449 {offsets = [0, 8], sizes = [16, 8], strides = [1, 1]} : vector<16x32xbf16> to vector<16x8xbf16>
    %cst_182 = arith.constant dense<0.000000e+00> : vector<16x8xf32>
    %486 = tpu.matmul %484, %485, %cst_182 {dimension_numbers = #tpu.dot_dimension_numbers<[1], [0], [0], [1], [0, 0, 1, 1], [], []>} : vector<16x16xbf16>, vector<16x8xbf16>, vector<16x8xf32> -> vector<16x8xf32>
    %c0_183 = arith.constant 0 : index
    %c8_184 = arith.constant 8 : index
    %487 = vector.load %arg7[%c0_183, %c8_184] : memref<16x32xf32, #tpu.memory_space<vmem>>, vector<16x8xf32>
    tpu.vector_store %arg7[%c0_183, %c8_184], %486 {strides = array<i32>} : memref<16x32xf32, #tpu.memory_space<vmem>>, vector<16x8xf32>,
    %488 = vector.extract_strided_slice %447 {offsets = [0, 16], sizes = [16, 8], strides = [1, 1]} : vector<16x32xbf16> to vector<16x8xbf16>
    %489 = vector.extract_strided_slice %448 {offsets = [0, 16], sizes = [16, 8], strides = [1, 1]} : vector<16x32xbf16> to vector<16x8xbf16>
    %cst_185 = arith.constant dense<0.000000e+00> : vector<16x16xf32>
    %490 = tpu.matmul %488, %489, %cst_185 {dimension_numbers = #tpu.dot_dimension_numbers<[1], [1], [0], [0], [0, 0, 1, 0], [], []>} : vector<16x8xbf16>, vector<16x8xbf16>, vector<16x16xf32> -> vector<16x16xf32>
    %cst_186 = arith.constant 0.353553385 : f32
    %491 = vector.broadcast %cst_186 : f32 to vector<16x16xf32>
    %492 = arith.mulf %490, %491 : vector<16x16xf32>
    %493 = arith.addf %492, %4 : vector<16x16xf32>
    %cst_187 = arith.constant dense<0xFF800000> : vector<16xf32>
    %494 = vector.multi_reduction <maximumf>, %493, %cst_187 [1] : vector<16x16xf32> to vector<16xf32>
    %495 = vector.shape_cast %494 : vector<16xf32> to vector<16x1xf32>
    %496 = vector.broadcast %495 : vector<16x1xf32> to vector<16x16xf32>
    %497 = arith.subf %493, %496 : vector<16x16xf32>
    %498 = math.exp %497 : vector<16x16xf32>
    %cst_188 = arith.constant dense<0.000000e+00> : vector<16xf32>
    %499 = vector.multi_reduction <add>, %498, %cst_188 [1] : vector<16x16xf32> to vector<16xf32>
    %500 = vector.shape_cast %499 : vector<16xf32> to vector<16x1xf32>
    %501 = vector.broadcast %500 : vector<16x1xf32> to vector<16x16xf32>
    %502 = arith.divf %498, %501 : vector<16x16xf32>
    %503 = arith.truncf %502 : vector<16x16xf32> to vector<16x16xbf16>
    %504 = vector.extract_strided_slice %449 {offsets = [0, 16], sizes = [16, 8], strides = [1, 1]} : vector<16x32xbf16> to vector<16x8xbf16>
    %cst_189 = arith.constant dense<0.000000e+00> : vector<16x8xf32>
    %505 = tpu.matmul %503, %504, %cst_189 {dimension_numbers = #tpu.dot_dimension_numbers<[1], [0], [0], [1], [0, 0, 1, 1], [], []>} : vector<16x16xbf16>, vector<16x8xbf16>, vector<16x8xf32> -> vector<16x8xf32>
    %c0_190 = arith.constant 0 : index
    %c16_191 = arith.constant 16 : index
    %506 = vector.load %arg7[%c0_190, %c16_191] : memref<16x32xf32, #tpu.memory_space<vmem>>, vector<16x8xf32>
    tpu.vector_store %arg7[%c0_190, %c16_191], %505 {strides = array<i32>} : memref<16x32xf32, #tpu.memory_space<vmem>>, vector<16x8xf32>,
    %507 = vector.extract_strided_slice %447 {offsets = [0, 24], sizes = [16, 8], strides = [1, 1]} : vector<16x32xbf16> to vector<16x8xbf16>
    %508 = vector.extract_strided_slice %448 {offsets = [0, 24], sizes = [16, 8], strides = [1, 1]} : vector<16x32xbf16> to vector<16x8xbf16>
    %cst_192 = arith.constant dense<0.000000e+00> : vector<16x16xf32>
    %509 = tpu.matmul %507, %508, %cst_192 {dimension_numbers = #tpu.dot_dimension_numbers<[1], [1], [0], [0], [0, 0, 1, 0], [], []>} : vector<16x8xbf16>, vector<16x8xbf16>, vector<16x16xf32> -> vector<16x16xf32>
    %cst_193 = arith.constant 0.353553385 : f32
    %510 = vector.broadcast %cst_193 : f32 to vector<16x16xf32>
    %511 = arith.mulf %509, %510 : vector<16x16xf32>
    %512 = arith.addf %511, %4 : vector<16x16xf32>
    %cst_194 = arith.constant dense<0xFF800000> : vector<16xf32>
    %513 = vector.multi_reduction <maximumf>, %512, %cst_194 [1] : vector<16x16xf32> to vector<16xf32>
    %514 = vector.shape_cast %513 : vector<16xf32> to vector<16x1xf32>
    %515 = vector.broadcast %514 : vector<16x1xf32> to vector<16x16xf32>
    %516 = arith.subf %512, %515 : vector<16x16xf32>
    %517 = math.exp %516 : vector<16x16xf32>
    %cst_195 = arith.constant dense<0.000000e+00> : vector<16xf32>
    %518 = vector.multi_reduction <add>, %517, %cst_195 [1] : vector<16x16xf32> to vector<16xf32>
    %519 = vector.shape_cast %518 : vector<16xf32> to vector<16x1xf32>
    %520 = vector.broadcast %519 : vector<16x1xf32> to vector<16x16xf32>
    %521 = arith.divf %517, %520 : vector<16x16xf32>
    %522 = arith.truncf %521 : vector<16x16xf32> to vector<16x16xbf16>
    %523 = vector.extract_strided_slice %449 {offsets = [0, 24], sizes = [16, 8], strides = [1, 1]} : vector<16x32xbf16> to vector<16x8xbf16>
    %cst_196 = arith.constant dense<0.000000e+00> : vector<16x8xf32>
    %524 = tpu.matmul %522, %523, %cst_196 {dimension_numbers = #tpu.dot_dimension_numbers<[1], [0], [0], [1], [0, 0, 1, 1], [], []>} : vector<16x16xbf16>, vector<16x8xbf16>, vector<16x8xf32> -> vector<16x8xf32>
    %c0_197 = arith.constant 0 : index
    %c24_198 = arith.constant 24 : index
    %525 = vector.load %arg7[%c0_197, %c24_198] : memref<16x32xf32, #tpu.memory_space<vmem>>, vector<16x8xf32>
    tpu.vector_store %arg7[%c0_197, %c24_198], %524 {strides = array<i32>} : memref<16x32xf32, #tpu.memory_space<vmem>>, vector<16x8xf32>,
    %c0_199 = arith.constant 0 : index
    %c0_200 = arith.constant 0 : index
    %526 = vector.load %arg7[%c0_199, %c0_200] : memref<16x32xf32, #tpu.memory_space<vmem>>, vector<16x32xf32>
    %527 = arith.truncf %526 : vector<16x32xf32> to vector<16x32xbf16>
    %cst_201 = arith.constant dense<0.000000e+00> : vector<16x32xf32>
    %528 = tpu.matmul %527, %445, %cst_201 {dimension_numbers = #tpu.dot_dimension_numbers<[1], [0], [0], [1], [0, 0, 1, 1], [], []>} : vector<16x32xbf16>, vector<32x32xbf16>, vector<16x32xf32> -> vector<16x32xf32>
    %529 = vector.broadcast %446 : vector<1x32xf32> to vector<16x32xf32>
    %530 = arith.addf %528, %529 : vector<16x32xf32>
    %531 = arith.addf %407, %530 : vector<16x32xf32>
    %c22 = arith.constant 22 : index
    %c0_202 = arith.constant 0 : index
    %532 = vector.load %arg5[%c22, %c0_202] : memref<26x128xf32, #tpu.memory_space<vmem>>, vector<1x32xf32>
    %c23 = arith.constant 23 : index
    %c0_203 = arith.constant 0 : index
    %533 = vector.load %arg5[%c23, %c0_203] : memref<26x128xf32, #tpu.memory_space<vmem>>, vector<1x32xf32>
    %cst_204 = arith.constant dense<0.000000e+00> : vector<16xf32>
    %534 = vector.multi_reduction <add>, %531, %cst_204 [1] : vector<16x32xf32> to vector<16xf32>
    %535 = vector.shape_cast %534 : vector<16xf32> to vector<16x1xf32>
    %cst_205 = arith.constant 3.200000e+01 : f32
    %536 = vector.broadcast %cst_205 : f32 to vector<16x1xf32>
    %537 = arith.divf %535, %536 : vector<16x1xf32>
    %538 = vector.broadcast %537 : vector<16x1xf32> to vector<16x32xf32>
    %539 = arith.subf %531, %538 : vector<16x32xf32>
    %540 = arith.mulf %539, %539 : vector<16x32xf32>
    %cst_206 = arith.constant dense<0.000000e+00> : vector<16xf32>
    %541 = vector.multi_reduction <add>, %540, %cst_206 [1] : vector<16x32xf32> to vector<16xf32>
    %542 = vector.shape_cast %541 : vector<16xf32> to vector<16x1xf32>
    %cst_207 = arith.constant 0.0322580636 : f32
    %543 = vector.broadcast %cst_207 : f32 to vector<16x1xf32>
    %544 = arith.mulf %542, %543 : vector<16x1xf32>
    %545 = vector.broadcast %537 : vector<16x1xf32> to vector<16x32xf32>
    %546 = arith.subf %531, %545 : vector<16x32xf32>
    %547 = vector.broadcast %532 : vector<1x32xf32> to vector<16x32xf32>
    %548 = arith.mulf %547, %546 : vector<16x32xf32>
    %549 = math.sqrt %544 : vector<16x1xf32>
    %cst_208 = arith.constant 9.99999997E-7 : f32
    %550 = vector.broadcast %cst_208 : f32 to vector<16x1xf32>
    %551 = arith.addf %549, %550 : vector<16x1xf32>
    %552 = vector.broadcast %551 : vector<16x1xf32> to vector<16x32xf32>
    %553 = arith.divf %548, %552 : vector<16x32xf32>
    %554 = vector.broadcast %533 : vector<1x32xf32> to vector<16x32xf32>
    %555 = arith.addf %553, %554 : vector<16x32xf32>
    %556 = arith.truncf %555 : vector<16x32xf32> to vector<16x32xbf16>
    %c352 = arith.constant 352 : index
    %c0_209 = arith.constant 0 : index
    %557 = vector.load %arg4[%c352, %c0_209] : memref<448x128xbf16, #tpu.memory_space<vmem>>, vector<32x64xbf16>
    %cst_210 = arith.constant dense<0.000000e+00> : vector<16x64xf32>
    %558 = tpu.matmul %556, %557, %cst_210 {dimension_numbers = #tpu.dot_dimension_numbers<[1], [0], [0], [1], [0, 0, 1, 1], [], []>} : vector<16x32xbf16>, vector<32x64xbf16>, vector<16x64xf32> -> vector<16x64xf32>
    %c16_211 = arith.constant 16 : index
    %c0_212 = arith.constant 0 : index
    %559 = vector.load %arg5[%c16_211, %c0_212] : memref<26x128xf32, #tpu.memory_space<vmem>>, vector<1x64xf32>
    %560 = vector.broadcast %559 : vector<1x64xf32> to vector<16x64xf32>
    %561 = arith.addf %558, %560 : vector<16x64xf32>
    %cst_213 = arith.constant 0.000000e+00 : f32
    %562 = vector.broadcast %cst_213 : f32 to vector<16x64xf32>
    %563 = arith.maximumf %561, %562 : vector<16x64xf32>
    %564 = arith.truncf %563 : vector<16x64xf32> to vector<16x64xbf16>
    %c384 = arith.constant 384 : index
    %c0_214 = arith.constant 0 : index
    %565 = vector.load %arg4[%c384, %c0_214] : memref<448x128xbf16, #tpu.memory_space<vmem>>, vector<64x32xbf16>
    %cst_215 = arith.constant dense<0.000000e+00> : vector<16x32xf32>
    %566 = tpu.matmul %564, %565, %cst_215 {dimension_numbers = #tpu.dot_dimension_numbers<[1], [0], [0], [1], [0, 0, 1, 1], [], []>} : vector<16x64xbf16>, vector<64x32xbf16>, vector<16x32xf32> -> vector<16x32xf32>
    %567 = arith.addf %531, %566 : vector<16x32xf32>
    %c17 = arith.constant 17 : index
    %c0_216 = arith.constant 0 : index
    %568 = vector.load %arg5[%c17, %c0_216] : memref<26x128xf32, #tpu.memory_space<vmem>>, vector<1x32xf32>
    %569 = vector.broadcast %568 : vector<1x32xf32> to vector<16x32xf32>
    %570 = arith.addf %567, %569 : vector<16x32xf32>
    %c24_217 = arith.constant 24 : index
    %c0_218 = arith.constant 0 : index
    %571 = vector.load %arg5[%c24_217, %c0_218] : memref<26x128xf32, #tpu.memory_space<vmem>>, vector<1x32xf32>
    %c25 = arith.constant 25 : index
    %c0_219 = arith.constant 0 : index
    %572 = vector.load %arg5[%c25, %c0_219] : memref<26x128xf32, #tpu.memory_space<vmem>>, vector<1x32xf32>
    %cst_220 = arith.constant dense<0.000000e+00> : vector<16xf32>
    %573 = vector.multi_reduction <add>, %570, %cst_220 [1] : vector<16x32xf32> to vector<16xf32>
    %574 = vector.shape_cast %573 : vector<16xf32> to vector<16x1xf32>
    %cst_221 = arith.constant 3.200000e+01 : f32
    %575 = vector.broadcast %cst_221 : f32 to vector<16x1xf32>
    %576 = arith.divf %574, %575 : vector<16x1xf32>
    %577 = vector.broadcast %576 : vector<16x1xf32> to vector<16x32xf32>
    %578 = arith.subf %570, %577 : vector<16x32xf32>
    %579 = arith.mulf %578, %578 : vector<16x32xf32>
    %cst_222 = arith.constant dense<0.000000e+00> : vector<16xf32>
    %580 = vector.multi_reduction <add>, %579, %cst_222 [1] : vector<16x32xf32> to vector<16xf32>
    %581 = vector.shape_cast %580 : vector<16xf32> to vector<16x1xf32>
    %cst_223 = arith.constant 0.0322580636 : f32
    %582 = vector.broadcast %cst_223 : f32 to vector<16x1xf32>
    %583 = arith.mulf %581, %582 : vector<16x1xf32>
    %584 = vector.broadcast %576 : vector<16x1xf32> to vector<16x32xf32>
    %585 = arith.subf %570, %584 : vector<16x32xf32>
    %586 = vector.broadcast %571 : vector<1x32xf32> to vector<16x32xf32>
    %587 = arith.mulf %586, %585 : vector<16x32xf32>
    %588 = math.sqrt %583 : vector<16x1xf32>
    %cst_224 = arith.constant 9.99999997E-7 : f32
    %589 = vector.broadcast %cst_224 : f32 to vector<16x1xf32>
    %590 = arith.addf %588, %589 : vector<16x1xf32>
    %591 = vector.broadcast %590 : vector<16x1xf32> to vector<16x32xf32>
    %592 = arith.divf %587, %591 : vector<16x32xf32>
    %593 = vector.broadcast %572 : vector<1x32xf32> to vector<16x32xf32>
    %594 = arith.addf %592, %593 : vector<16x32xf32>
    %c0_225 = arith.constant 0 : index
    %c0_226 = arith.constant 0 : index
    %595 = vector.load %arg6[%c0_225, %c0_226] : memref<16x32xf32, #tpu.memory_space<vmem>>, vector<16x32xf32>
    tpu.vector_store %arg6[%c0_225, %c0_226], %594 {strides = array<i32>} : memref<16x32xf32, #tpu.memory_space<vmem>>, vector<16x32xf32>,
    return
  }
  func.func @transform_0(%arg0: i32) -> (i32, i32) {
    %c0_i32 = arith.constant 0 : i32
    %c0_i32_0 = arith.constant 0 : i32
    %c0_i32_1 = arith.constant 0 : i32
    return %c0_i32, %c0_i32_0 : i32, i32
  }
  func.func @transform_1(%arg0: i32) -> (i32, i32) {
    %c0_i32 = arith.constant 0 : i32
    %c0_i32_0 = arith.constant 0 : i32
    %c0_i32_1 = arith.constant 0 : i32
    return %c0_i32, %c0_i32_0 : i32, i32
  }
  func.func @transform_2(%arg0: i32) -> (i32, i32) {
    %c0_i32 = arith.constant 0 : i32
    %c0_i32_0 = arith.constant 0 : i32
    %c0_i32_1 = arith.constant 0 : i32
    return %c0_i32, %c0_i32_0 : i32, i32
  }
  func.func @transform_3(%arg0: i32) -> (i32, i32) {
    %c0_i32 = arith.constant 0 : i32
    %c0_i32_0 = arith.constant 0 : i32
    %c0_i32_1 = arith.constant 0 : i32
    return %c0_i32, %c0_i32_0 : i32, i32
  }
  func.func @transform_4(%arg0: i32) -> (i32, i32) {
    %c0_i32 = arith.constant 0 : i32
    %c0_i32_0 = arith.constant 0 : i32
    %c0_i32_1 = arith.constant 0 : i32
    return %c0_i32, %c0_i32_0 : i32, i32
  }
  func.func @transform_5(%arg0: i32) -> (i32, i32) {
    %c0_i32 = arith.constant 0 : i32
    %c0_i32_0 = arith.constant 0 : i32
    %c0_i32_1 = arith.constant 0 : i32
    return %c0_i32, %c0_i32_0 : i32, i32
  }
}

</mosaic_0001>

<llo_original>
// kernel: tpu_custom_call.1
$region0: #{tpu_custom_call.1}
  #allocation0 [shape = 'u32[]', space=smem, size = 0x4, offset = 0x4, fixed_abs, tag = 'smem constant byte address 0x4 - core index']
  #allocation1 [shape = 'u32[144,128]{1,0:T(1,128)}', space=vmem, size = 0x12000, scoped, tag = 'internal scratch']
  #allocation2 [shape = 'f32[16,32]{1,0:T(8,128)}', space=vmem, size = 0x2000, scoped, tag = 'scratch operand']
  %s0 = inlined_call_operand.vmem [shape: f32[16,32], index: 0, kind: input, shape index: {}]
  %s1 = inlined_call_operand.hbm [shape: f32[16,32], index: 1, kind: input, shape index: {}]
  %s2 = inlined_call_operand.vmem [shape: f32[32,16], index: 2, kind: input, shape index: {}]
  %s3 = inlined_call_operand.hbm [shape: bf16[448,128], index: 3, kind: input, shape index: {}]
  %s4 = inlined_call_operand.vmem [shape: f32[26,128], index: 4, kind: input, shape index: {}]
  %s5 = inlined_call_operand.hbm [shape: f32[16,32], index: 5, kind: output, shape index: {}]
  %s6 = sld [smem:[#allocation0]]
  $region38: #{tpu_custom_call.1} parent=0
    _
  %s8 = ssub.s32 1, %s6
  %s9 = scalar_select 0, %s8, %s6
  $region1: #{tpu_custom_call.1} parent=0
    #allocation3 [shape = 'u8[8192]{0}', space=vmem, size = 0x2000, scoped, tag = 'input window, operand 1, single buffered']
    #allocation4 [shape = 's32[1]{0}', space=sflag, size = 0x4, scoped, tag = 'scoped memory for tpu_custom_call.1']
    #allocation5 [shape = 's32[1]{0}', space=sflag, size = 0x4, scoped, tag = 'scoped memory for tpu_custom_call.1']
    #allocation6 [shape = 'u8[114688]{0}', space=vmem, size = 0x1c000, scoped, tag = 'input window, operand 3, single buffered']
    #allocation7 [shape = 's32[1]{0}', space=sflag, size = 0x4, scoped, tag = 'scoped memory for tpu_custom_call.1']
    #allocation8 [shape = 'u8[8192]{0}', space=vmem, size = 0x2000, scoped, tag = 'output window, operand 0, single buffered']
    %10 = vsyncpa [#allocation4], 0
    %11 = vsyncpa [#allocation7], 0
    %12 = vsyncpa [#allocation5], 0
    // Predicated region
    $region2: #{tpu_custom_call.1} parent=1 // pred_check
      _
    $region3: #{tpu_custom_call.1} parent=1 // pred_check_branch
      %14 = sbr.rel (0) target = $region5
    $region4: #{tpu_custom_call.1} parent=1 // pred_region
      _
    $region5: #{tpu_custom_call.1} parent=1 // pred_fallthru
      _
    // Predicated region
    $region6: #{tpu_custom_call.1} parent=1 // pred_check
      _
    $region7: #{tpu_custom_call.1} parent=1 // pred_check_branch
      %16 = sbr.rel (0) target = $region9
    $region8: #{tpu_custom_call.1} parent=1 // pred_region
      %s18 = ssub.s32 256, 256
      %19 = vsyncadd [#allocation4], %s18
      %s20 = sshll.u32 [#allocation3], 4
      %s21 = int_to_ptr.vmem [resolvable:$true] %s20
      %26 = dma.hbm_to_vmem [thread:$0]  %s1, 256, %s21, [#allocation4], 128, 128, 8
    $region9: #{tpu_custom_call.1} parent=1 // pred_fallthru
      _
    // Predicated region
    $region10: #{tpu_custom_call.1} parent=1 // pred_check
      _
    $region11: #{tpu_custom_call.1} parent=1 // pred_check_branch
      %28 = sbr.rel (0) target = $region13
    $region12: #{tpu_custom_call.1} parent=1 // pred_region
      _
    $region13: #{tpu_custom_call.1} parent=1 // pred_fallthru
      _
    // Predicated region
    $region14: #{tpu_custom_call.1} parent=1 // pred_check
      _
    $region15: #{tpu_custom_call.1} parent=1 // pred_check_branch
      %30 = sbr.rel (0) target = $region17
    $region16: #{tpu_custom_call.1} parent=1 // pred_region
      %s32 = ssub.s32 3584, 3584
      %33 = vsyncadd [#allocation7], %s32
      %s34 = sshll.u32 [#allocation6], 4
      %s35 = int_to_ptr.vmem [resolvable:$true] %s34
      %40 = dma.hbm_to_vmem [thread:$0]  %s3, 3584, %s35, [#allocation7], 64, 64, 4
    $region17: #{tpu_custom_call.1} parent=1 // pred_fallthru
      _
    // Predicated region
    $region18: #{tpu_custom_call.1} parent=1 // pred_check
      _
    $region19: #{tpu_custom_call.1} parent=1 // pred_check_branch
      %42 = sbr.rel (0) target = $region21
    $region20: #{tpu_custom_call.1} parent=1 // pred_region
      _
    $region21: #{tpu_custom_call.1} parent=1 // pred_fallthru
      _
    // Predicated region
    $region22: #{tpu_custom_call.1} parent=1 // pred_check
      _
    $region23: #{tpu_custom_call.1} parent=1 // pred_check_branch
      %44 = sbr.rel (0) target = $region25
    $region24: #{tpu_custom_call.1} parent=1 // pred_region
      %45 = dma.done [#allocation4], 256
    $region25: #{tpu_custom_call.1} parent=1 // pred_fallthru
      _
    // Predicated region
    $region26: #{tpu_custom_call.1} parent=1 // pred_check
      _
    $region27: #{tpu_custom_call.1} parent=1 // pred_check_branch
      %47 = sbr.rel (0) target = $region29
    $region28: #{tpu_custom_call.1} parent=1 // pred_region
      %48 = dma.done [#allocation7], 3584
    $region29: #{tpu_custom_call.1} parent=1 // pred_fallthru
      _
    %v50 = vld [vmem:[%s0] sm:$0xff]
    %v51 = vld [vmem:[%s0 + $0x8] sm:$0xff]
    %v52 = vld [vmem:[#allocation3] sm:$0xff]
    %v53 = vld [vmem:[#allocation3 + $0x8] sm:$0xff]
    %v54 = vpack.c.bf16 %v53, %v52
    %v55 = vld [vmem:[%s2] sm:$0xff]
    %v56 = vld [vmem:[%s2 + $0x8] sm:$0xff]
    %v57 = vld [vmem:[%s2 + $0x10] sm:$0xff]
    %v58 = vld [vmem:[%s2 + $0x18] sm:$0xff]
    %v59 = vld [vmem:[%s4 + $0x6] sm:$0x1]
    %v60 = vld [vmem:[%s4 + $0x7] sm:$0x1]
    %vm61 = vcmask 261120
    %v62 = vsel %vm61, %v50, 0.0
    %63 = vadd.xlane.f32.xlu0 %v62
    %v64 = vpop.xlane.xlu0 %63
    %v65 = vsel %vm61, %v51, 0.0
    %66 = vadd.xlane.f32.xlu0 %v65
    %v67 = vpop.xlane.xlu0 %66
    %v68 = vrcp.pop 32.0
    %v69 = vmul.f32 %v64, %v68
    %v70 = vmul.f32 %v67, %v68
    %v71 = vsub.f32 %v50, %v69
    %v72 = vsub.f32 %v51, %v70
    %v73 = vmul.f32 %v71, %v71
    %v74 = vmul.f32 %v72, %v72
    %v75 = vsel %vm61, %v73, 0.0
    %76 = vadd.xlane.f32.xlu0 %v75
    %v77 = vpop.xlane.xlu0 %76
    %v78 = vsel %vm61, %v74, 0.0
    %79 = vadd.xlane.f32.xlu0 %v78
    %v80 = vpop.xlane.xlu0 %79
    %v81 = vmul.f32 %v77, 0.032258064
    %v82 = vmul.f32 %v80, 0.032258064
    %v83 = vlaneseq
    %v84 = vshrl.u32 %v83, 7
    %v85 = vsub.s32 0, %v84
    %v86 = vrot.slane %v59, %v85
    %v87 = vmul.f32 %v86, %v71
    %v88 = vmul.f32 %v86, %v72
    %v89 = vrsqrt.pop %v81
    %v90 = vmul.f32 %v81, %v89
    %vm91 = vcmp.eq.f32.partialorder %v81, inf
    %v92 = vsel %vm91, %v81, %v90
    %vm93 = vcmp.eq.f32.partialorder %v81, 0.0
    %v94 = vand.u32 %v81, 2147483648
    %v95 = vsel %vm93, %v94, %v92
    %v96 = vrsqrt.pop %v82
    %v97 = vmul.f32 %v82, %v96
    %vm98 = vcmp.eq.f32.partialorder %v82, inf
    %v99 = vsel %vm98, %v82, %v97
    %vm100 = vcmp.eq.f32.partialorder %v82, 0.0
    %v101 = vand.u32 %v82, 2147483648
    %v102 = vsel %vm100, %v101, %v99
    %v103 = vadd.f32 %v95, 1e-06
    %v104 = vadd.f32 %v102, 1e-06
    %v105 = vrcp.pop %v103
    %v106 = vmul.f32 %v87, %v105
    %v107 = vrcp.pop %v104
    %v108 = vmul.f32 %v88, %v107
    %v109 = vlaneseq
    %v110 = vshrl.u32 %v109, 7
    %v111 = vsub.s32 0, %v110
    %v112 = vrot.slane %v60, %v111
    %v113 = vadd.f32 %v106, %v112
    %v114 = vadd.f32 %v108, %v112
    %v115 = vpack.c.bf16 %v114, %v113
    %v116 = vld [vmem:[#allocation6] sm:$0xf]
    %v117 = vld [vmem:[#allocation6 + $0x4] sm:$0xf]
    %v118 = vld [vmem:[#allocation6 + $0x8] sm:$0xf]
    %v119 = vld [vmem:[#allocation6 + $0xc] sm:$0xf]
    %v120 = vld [vmem:[%s4] sm:$0x1]
    %v121 = vlaneseq
    %v122 = vshrl.u32 %v121, 7
    %v123 = vsub.s32 0, %v122
    %v124 = vrot.slane %v120, %v123
    %v129 = vunpack.c.l.b16 %v116
    %v130 = vunpack.c.l.b16 %v117
    %v131 = vunpack.c.l.b16 %v118
    %v132 = vunpack.c.l.b16 %v119
    %v133 = vpack.c.b16 %v130, %v129
    %v134 = vpack.c.b16 %v132, %v131
    %v138 = vsel %vm61, %v115, 0
    %140 = vmatprep.subr.bf16.mxu0 0
    %141 = vmatpush1.bf16.msra.mxu0 %v133
    %142 = vmatprep.subr.bf16.mxu0 0
    %143 = vmatpush1.bf16.msra.mxu0 %v134
    %144 = vmatprep.subr.bf16.mxu0 0
    %145 = vmatpush1.bf16.msra.mxu0 0
    %146 = vmatprep.subr.bf16.mxu0 0
    %147 = vmatpush1.bf16.msra.mxu0 0
    %148 = vmatprep.subr.bf16.mxu0 0
    %149 = vmatpush1.bf16.msra.mxu0 0
    %150 = vmatprep.subr.bf16.mxu0 0
    %151 = vmatpush1.bf16.msra.mxu0 0
    %152 = vmatprep.subr.bf16.mxu0 0
    %153 = vmatpush1.bf16.msra.mxu0 0
    %154 = vmatprep.subr.bf16.mxu0 0
    %155 = vmatpush1.bf16.msra.mxu0 0
    %156 = vmatprep.subr.bf16.mxu0 0
    %157 = vmatpush1.bf16.msra.mxu0 0
    %158 = vmatprep.subr.bf16.mxu0 0
    %159 = vmatpush1.bf16.msra.mxu0 0
    %160 = vmatprep.subr.bf16.mxu0 0
    %161 = vmatpush1.bf16.msra.mxu0 0
    %162 = vmatprep.subr.bf16.mxu0 0
    %163 = vmatpush1.bf16.msra.mxu0 0
    %164 = vmatprep.subr.bf16.mxu0 0
    %165 = vmatpush1.bf16.msra.mxu0 0
    %166 = vmatprep.subr.bf16.mxu0 0
    %167 = vmatpush1.bf16.msra.mxu0 0
    %168 = vmatprep.subr.bf16.mxu0 0
    %169 = vmatpush1.bf16.msra.mxu0 0
    %170 = vmatprep.subr.bf16.mxu0 0
    %171 = vmatpush1.bf16.msra.mxu0 0
    %172 = vmatprep.mubr.bf16.mxu0 0
    %173 = vmatmul.mubr.bf16.gmra.mrb[0].mxu0 %v138
    %v174 = vpop.f32.mrb[0].mxu0
    %v175 = vadd.f32 %v124, %v174
    %v176 = vpop.f32.mrb[0].mxu0
    %v177 = vpop.f32.mrb[0].mxu0
    %v178 = vadd.f32 %v124, %v177
    %v179 = vpop.f32.mrb[0].mxu0
    %180 = vdwg.mxu0
    %v181 = vld [vmem:[#allocation6 + $0x20] sm:$0xf]
    %v182 = vld [vmem:[#allocation6 + $0x24] sm:$0xf]
    %v183 = vld [vmem:[#allocation6 + $0x28] sm:$0xf]
    %v184 = vld [vmem:[#allocation6 + $0x2c] sm:$0xf]
    %v185 = vld [vmem:[%s4 + $0x2] sm:$0x1]
    %v186 = vpack.c.bf16 %v178, %v175
    %188 = vrot.lane.b32.xlu0 %v186, 96
    %v189 = vpop.permute.xlu0 %188
    %vm190 = vcmask 64512
    %v192 = vsel %vm190, %v186, 0
    %v195 = vsel %vm190, %v189, 0
    %197 = vmatprep.subr.bf16.mxu0 0
    %198 = vmatpush1.bf16.xpose.msra.mxu0 %v195
    %199 = vmatprep.subr.bf16.mxu0 0
    %200 = vmatpush1.bf16.xpose.msra.mxu0 0
    %201 = vmatprep.subr.bf16.mxu0 0
    %202 = vmatpush1.bf16.xpose.msra.mxu0 0
    %203 = vmatprep.subr.bf16.mxu0 0
    %204 = vmatpush1.bf16.xpose.msra.mxu0 0
    %205 = vmatprep.subr.bf16.mxu0 0
    %206 = vmatpush1.bf16.xpose.msra.mxu0 0
    %207 = vmatprep.subr.bf16.mxu0 0
    %208 = vmatpush1.bf16.xpose.msra.mxu0 0
    %209 = vmatprep.subr.bf16.mxu0 0
    %210 = vmatpush1.bf16.xpose.msra.mxu0 0
    %211 = vmatprep.subr.bf16.mxu0 0
    %212 = vmatpush1.bf16.xpose.msra.mxu0 0
    %213 = vmatprep.subr.bf16.mxu0 0
    %214 = vmatpush1.bf16.xpose.msra.mxu0 0
    %215 = vmatprep.subr.bf16.mxu0 0
    %216 = vmatpush1.bf16.xpose.msra.mxu0 0
    %217 = vmatprep.subr.bf16.mxu0 0
    %218 = vmatpush1.bf16.xpose.msra.mxu0 0
    %219 = vmatprep.subr.bf16.mxu0 0
    %220 = vmatpush1.bf16.xpose.msra.mxu0 0
    %221 = vmatprep.subr.bf16.mxu0 0
    %222 = vmatpush1.bf16.xpose.msra.mxu0 0
    %223 = vmatprep.subr.bf16.mxu0 0
    %224 = vmatpush1.bf16.xpose.msra.mxu0 0
    %225 = vmatprep.subr.bf16.mxu0 0
    %226 = vmatpush1.bf16.xpose.msra.mxu0 0
    %227 = vmatprep.subr.bf16.mxu0 0
    %228 = vmatpush1.bf16.xpose.msra.mxu0 0
    %229 = vmatprep.mubr.bf16.mxu0 0
    %230 = vmatmul.mubr.bf16.gmra.mrb[0].mxu0 %v192
    %v231 = vpop.f32.mrb[0].mxu0
    %v232 = vadd.f32 0.0, %v231
    %v233 = vpop.f32.mrb[0].mxu0
    %v234 = vpop.f32.mrb[0].mxu0
    %v235 = vadd.f32 0.0, %v234
    %v236 = vpop.f32.mrb[0].mxu0
    %237 = vdwg.mxu0
    %v238 = vmul.f32 %v232, 0.35355338
    %v239 = vmul.f32 %v235, 0.35355338
    %v240 = vadd.f32 %v238, %v55
    %v241 = vadd.f32 %v239, %v56
    %vm242 = vcmask 130048
    %v243 = vsel %vm242, %v240, -inf
    %244 = vmax.xlane.f32.xlu0 %v243
    %v245 = vpop.xlane.xlu0 %244
    %v246 = vsel %vm242, %v241, -inf
    %247 = vmax.xlane.f32.xlu0 %v246
    %v248 = vpop.xlane.xlu0 %247
    %v249 = vsub.f32 %v240, %v245
    %v250 = vsub.f32 %v241, %v248
    %v251 = vmul.f32 %v249, 1.442695
    %v252 = vpow.pop %v251
    %v253 = vmul.f32 %v250, 1.442695
    %v254 = vpow.pop %v253
    %v255 = vsel %vm242, %v252, 0.0
    %256 = vadd.xlane.f32.xlu0 %v255
    %v257 = vpop.xlane.xlu0 %256
    %v258 = vsel %vm242, %v254, 0.0
    %259 = vadd.xlane.f32.xlu0 %v258
    %v260 = vpop.xlane.xlu0 %259
    %v261 = vrcp.pop %v257
    %v262 = vmul.f32 %v252, %v261
    %v263 = vrcp.pop %v260
    %v264 = vmul.f32 %v254, %v263
    %v265 = vpack.c.bf16 %v264, %v262
    %266 = vrot.lane.b32.xlu0 %v186, 64
    %v267 = vpop.permute.xlu0 %266
    %v270 = vsel %vm242, %v265, 0
    %272 = vmatprep.subr.bf16.mxu0 0
    %273 = vmatpush1.bf16.msra.mxu0 %v267
    %274 = vmatprep.subr.bf16.mxu0 0
    %275 = vmatpush1.bf16.msra.mxu0 0
    %276 = vmatprep.subr.bf16.mxu0 0
    %277 = vmatpush1.bf16.msra.mxu0 0
    %278 = vmatprep.subr.bf16.mxu0 0
    %279 = vmatpush1.bf16.msra.mxu0 0
    %280 = vmatprep.subr.bf16.mxu0 0
    %281 = vmatpush1.bf16.msra.mxu0 0
    %282 = vmatprep.subr.bf16.mxu0 0
    %283 = vmatpush1.bf16.msra.mxu0 0
    %284 = vmatprep.subr.bf16.mxu0 0
    %285 = vmatpush1.bf16.msra.mxu0 0
    %286 = vmatprep.subr.bf16.mxu0 0
    %287 = vmatpush1.bf16.msra.mxu0 0
    %288 = vmatprep.subr.bf16.mxu0 0
    %289 = vmatpush1.bf16.msra.mxu0 0
    %290 = vmatprep.subr.bf16.mxu0 0
    %291 = vmatpush1.bf16.msra.mxu0 0
    %292 = vmatprep.subr.bf16.mxu0 0
    %293 = vmatpush1.bf16.msra.mxu0 0
    %294 = vmatprep.subr.bf16.mxu0 0
    %295 = vmatpush1.bf16.msra.mxu0 0
    %296 = vmatprep.subr.bf16.mxu0 0
    %297 = vmatpush1.bf16.msra.mxu0 0
    %298 = vmatprep.subr.bf16.mxu0 0
    %299 = vmatpush1.bf16.msra.mxu0 0
    %300 = vmatprep.subr.bf16.mxu0 0
    %301 = vmatpush1.bf16.msra.mxu0 0
    %302 = vmatprep.subr.bf16.mxu0 0
    %303 = vmatpush1.bf16.msra.mxu0 0
    %304 = vmatprep.mubr.bf16.mxu0 0
    %305 = vmatmul.mubr.bf16.gmra.mrb[0].mxu0 %v270
    %v306 = vpop.f32.mrb[0].mxu0
    %v307 = vadd.f32 0.0, %v306
    %v308 = vpop.f32.mrb[0].mxu0
    %v309 = vpop.f32.mrb[0].mxu0
    %v310 = vadd.f32 0.0, %v309
    %v311 = vpop.f32.mrb[0].mxu0
    %312 = vdwg.mxu0
    %313 = vst.msk [vmem:[#allocation2] sm:$0xff] %vm190, %v307
    %314 = vst.msk [vmem:[#allocation2 + $0x8] sm:$0xff] %vm190, %v310
    %315 = vrot.lane.b32.xlu0 %v186, 120
    %v316 = vpop.permute.xlu0 %315
    %317 = vrot.lane.b32.xlu0 %v186, 88
    %v318 = vpop.permute.xlu0 %317
    %v320 = vsel %vm190, %v316, 0
    %v323 = vsel %vm190, %v318, 0
    %325 = vmatprep.subr.bf16.mxu0 0
    %326 = vmatpush1.bf16.xpose.msra.mxu0 %v323
    %327 = vmatprep.subr.bf16.mxu0 0
    %328 = vmatpush1.bf16.xpose.msra.mxu0 0
    %329 = vmatprep.subr.bf16.mxu0 0
    %330 = vmatpush1.bf16.xpose.msra.mxu0 0
    %331 = vmatprep.subr.bf16.mxu0 0
    %332 = vmatpush1.bf16.xpose.msra.mxu0 0
    %333 = vmatprep.subr.bf16.mxu0 0
    %334 = vmatpush1.bf16.xpose.msra.mxu0 0
    %335 = vmatprep.subr.bf16.mxu0 0
    %336 = vmatpush1.bf16.xpose.msra.mxu0 0
    %337 = vmatprep.subr.bf16.mxu0 0
    %338 = vmatpush1.bf16.xpose.msra.mxu0 0
    %339 = vmatprep.subr.bf16.mxu0 0
    %340 = vmatpush1.bf16.xpose.msra.mxu0 0
    %341 = vmatprep.subr.bf16.mxu0 0
    %342 = vmatpush1.bf16.xpose.msra.mxu0 0
    %343 = vmatprep.subr.bf16.mxu0 0
    %344 = vmatpush1.bf16.xpose.msra.mxu0 0
    %345 = vmatprep.subr.bf16.mxu0 0
    %346 = vmatpush1.bf16.xpose.msra.mxu0 0
    %347 = vmatprep.subr.bf16.mxu0 0
    %348 = vmatpush1.bf16.xpose.msra.mxu0 0
    %349 = vmatprep.subr.bf16.mxu0 0
    %350 = vmatpush1.bf16.xpose.msra.mxu0 0
    %351 = vmatprep.subr.bf16.mxu0 0
    %352 = vmatpush1.bf16.xpose.msra.mxu0 0
    %353 = vmatprep.subr.bf16.mxu0 0
    %354 = vmatpush1.bf16.xpose.msra.mxu0 0
    %355 = vmatprep.subr.bf16.mxu0 0
    %356 = vmatpush1.bf16.xpose.msra.mxu0 0
    %357 = vmatprep.mubr.bf16.mxu0 0
    %358 = vmatmul.mubr.bf16.gmra.mrb[0].mxu0 %v320
    %v359 = vpop.f32.mrb[0].mxu0
    %v360 = vadd.f32 0.0, %v359
    %v361 = vpop.f32.mrb[0].mxu0
    %v362 = vpop.f32.mrb[0].mxu0
    %v363 = vadd.f32 0.0, %v362
    %v364 = vpop.f32.mrb[0].mxu0
    %365 = vdwg.mxu0
    %v366 = vmul.f32 %v360, 0.35355338
    %v367 = vmul.f32 %v363, 0.35355338
    %v368 = vadd.f32 %v366, %v55
    %v369 = vadd.f32 %v367, %v56
    %v370 = vsel %vm242, %v368, -inf
    %371 = vmax.xlane.f32.xlu0 %v370
    %v372 = vpop.xlane.xlu0 %371
    %v373 = vsel %vm242, %v369, -inf
    %374 = vmax.xlane.f32.xlu0 %v373
    %v375 = vpop.xlane.xlu0 %374
    %v376 = vsub.f32 %v368, %v372
    %v377 = vsub.f32 %v369, %v375
    %v378 = vmul.f32 %v376, 1.442695
    %v379 = vpow.pop %v378
    %v380 = vmul.f32 %v377, 1.442695
    %v381 = vpow.pop %v380
    %v382 = vsel %vm242, %v379, 0.0
    %383 = vadd.xlane.f32.xlu0 %v382
    %v384 = vpop.xlane.xlu0 %383
    %v385 = vsel %vm242, %v381, 0.0
    %386 = vadd.xlane.f32.xlu0 %v385
    %v387 = vpop.xlane.xlu0 %386
    %v388 = vrcp.pop %v384
    %v389 = vmul.f32 %v379, %v388
    %v390 = vrcp.pop %v387
    %v391 = vmul.f32 %v381, %v390
    %v392 = vpack.c.bf16 %v391, %v389
    %393 = vrot.lane.b32.xlu0 %v186, 56
    %v394 = vpop.permute.xlu0 %393
    %v397 = vsel %vm242, %v392, 0
    %399 = vmatprep.subr.bf16.mxu0 0
    %400 = vmatpush1.bf16.msra.mxu0 %v394
    %401 = vmatprep.subr.bf16.mxu0 0
    %402 = vmatpush1.bf16.msra.mxu0 0
    %403 = vmatprep.subr.bf16.mxu0 0
    %404 = vmatpush1.bf16.msra.mxu0 0
    %405 = vmatprep.subr.bf16.mxu0 0
    %406 = vmatpush1.bf16.msra.mxu0 0
    %407 = vmatprep.subr.bf16.mxu0 0
    %408 = vmatpush1.bf16.msra.mxu0 0
    %409 = vmatprep.subr.bf16.mxu0 0
    %410 = vmatpush1.bf16.msra.mxu0 0
    %411 = vmatprep.subr.bf16.mxu0 0
    %412 = vmatpush1.bf16.msra.mxu0 0
    %413 = vmatprep.subr.bf16.mxu0 0
    %414 = vmatpush1.bf16.msra.mxu0 0
    %415 = vmatprep.subr.bf16.mxu0 0
    %416 = vmatpush1.bf16.msra.mxu0 0
    %417 = vmatprep.subr.bf16.mxu0 0
    %418 = vmatpush1.bf16.msra.mxu0 0
    %419 = vmatprep.subr.bf16.mxu0 0
    %420 = vmatpush1.bf16.msra.mxu0 0
    %421 = vmatprep.subr.bf16.mxu0 0
    %422 = vmatpush1.bf16.msra.mxu0 0
    %423 = vmatprep.subr.bf16.mxu0 0
    %424 = vmatpush1.bf16.msra.mxu0 0
    %425 = vmatprep.subr.bf16.mxu0 0
    %426 = vmatpush1.bf16.msra.mxu0 0
    %427 = vmatprep.subr.bf16.mxu0 0
    %428 = vmatpush1.bf16.msra.mxu0 0
    %429 = vmatprep.subr.bf16.mxu0 0
    %430 = vmatpush1.bf16.msra.mxu0 0
    %431 = vmatprep.mubr.bf16.mxu0 0
    %432 = vmatmul.mubr.bf16.gmra.mrb[0].mxu0 %v397
    %v433 = vpop.f32.mrb[0].mxu0
    %v434 = vadd.f32 0.0, %v433
    %v435 = vpop.f32.mrb[0].mxu0
    %v436 = vpop.f32.mrb[0].mxu0
    %v437 = vadd.f32 0.0, %v436
    %v438 = vpop.f32.mrb[0].mxu0
    %439 = vdwg.mxu0
    %442 = vrot.lane.b32.xlu0 %v434, 8
    %v443 = vpop.permute.xlu0 %442
    %444 = vrot.lane.b32.xlu0 %v437, 8
    %v445 = vpop.permute.xlu0 %444
    %vm448 = vcmask 130112
    %449 = vst.msk [vmem:[#allocation2] sm:$0xff] %vm448, %v443
    %450 = vst.msk [vmem:[#allocation2 + $0x8] sm:$0xff] %vm448, %v445
    %451 = vrot.lane.b32.xlu0 %v186, 112
    %v452 = vpop.permute.xlu0 %451
    %453 = vrot.lane.b32.xlu0 %v186, 80
    %v454 = vpop.permute.xlu0 %453
    %v456 = vsel %vm190, %v452, 0
    %v459 = vsel %vm190, %v454, 0
    %461 = vmatprep.subr.bf16.mxu0 0
    %462 = vmatpush1.bf16.xpose.msra.mxu0 %v459
    %463 = vmatprep.subr.bf16.mxu0 0
    %464 = vmatpush1.bf16.xpose.msra.mxu0 0
    %465 = vmatprep.subr.bf16.mxu0 0
    %466 = vmatpush1.bf16.xpose.msra.mxu0 0
    %467 = vmatprep.subr.bf16.mxu0 0
    %468 = vmatpush1.bf16.xpose.msra.mxu0 0
    %469 = vmatprep.subr.bf16.mxu0 0
    %470 = vmatpush1.bf16.xpose.msra.mxu0 0
    %471 = vmatprep.subr.bf16.mxu0 0
    %472 = vmatpush1.bf16.xpose.msra.mxu0 0
    %473 = vmatprep.subr.bf16.mxu0 0
    %474 = vmatpush1.bf16.xpose.msra.mxu0 0
    %475 = vmatprep.subr.bf16.mxu0 0
    %476 = vmatpush1.bf16.xpose.msra.mxu0 0
    %477 = vmatprep.subr.bf16.mxu0 0
    %478 = vmatpush1.bf16.xpose.msra.mxu0 0
    %479 = vmatprep.subr.bf16.mxu0 0
    %480 = vmatpush1.bf16.xpose.msra.mxu0 0
    %481 = vmatprep.subr.bf16.mxu0 0
    %482 = vmatpush1.bf16.xpose.msra.mxu0 0
    %483 = vmatprep.subr.bf16.mxu0 0
    %484 = vmatpush1.bf16.xpose.msra.mxu0 0
    %485 = vmatprep.subr.bf16.mxu0 0
    %486 = vmatpush1.bf16.xpose.msra.mxu0 0
    %487 = vmatprep.subr.bf16.mxu0 0
    %488 = vmatpush1.bf16.xpose.msra.mxu0 0
    %489 = vmatprep.subr.bf16.mxu0 0
    %490 = vmatpush1.bf16.xpose.msra.mxu0 0
    %491 = vmatprep.subr.bf16.mxu0 0
    %492 = vmatpush1.bf16.xpose.msra.mxu0 0
    %493 = vmatprep.mubr.bf16.mxu0 0
    %494 = vmatmul.mubr.bf16.gmra.mrb[0].mxu0 %v456
    %v495 = vpop.f32.mrb[0].mxu0
    %v496 = vadd.f32 0.0, %v495
    %v497 = vpop.f32.mrb[0].mxu0
    %v498 = vpop.f32.mrb[0].mxu0
    %v499 = vadd.f32 0.0, %v498
    %v500 = vpop.f32.mrb[0].mxu0
    %501 = vdwg.mxu0
    %v502 = vmul.f32 %v496, 0.35355338
    %v503 = vmul.f32 %v499, 0.35355338
    %v504 = vadd.f32 %v502, %v55
    %v505 = vadd.f32 %v503, %v56
    %v506 = vsel %vm242, %v504, -inf
    %507 = vmax.xlane.f32.xlu0 %v506
    %v508 = vpop.xlane.xlu0 %507
    %v509 = vsel %vm242, %v505, -inf
    %510 = vmax.xlane.f32.xlu0 %v509
    %v511 = vpop.xlane.xlu0 %510
    %v512 = vsub.f32 %v504, %v508
    %v513 = vsub.f32 %v505, %v511
    %v514 = vmul.f32 %v512, 1.442695
    %v515 = vpow.pop %v514
    %v516 = vmul.f32 %v513, 1.442695
    %v517 = vpow.pop %v516
    %v518 = vsel %vm242, %v515, 0.0
    %519 = vadd.xlane.f32.xlu0 %v518
    %v520 = vpop.xlane.xlu0 %519
    %v521 = vsel %vm242, %v517, 0.0
    %522 = vadd.xlane.f32.xlu0 %v521
    %v523 = vpop.xlane.xlu0 %522
    %v524 = vrcp.pop %v520
    %v525 = vmul.f32 %v515, %v524
    %v526 = vrcp.pop %v523
    %v527 = vmul.f32 %v517, %v526
    %v528 = vpack.c.bf16 %v527, %v525
    %529 = vrot.lane.b32.xlu0 %v186, 48
    %v530 = vpop.permute.xlu0 %529
    %v533 = vsel %vm242, %v528, 0
    %535 = vmatprep.subr.bf16.mxu0 0
    %536 = vmatpush1.bf16.msra.mxu0 %v530
    %537 = vmatprep.subr.bf16.mxu0 0
    %538 = vmatpush1.bf16.msra.mxu0 0
    %539 = vmatprep.subr.bf16.mxu0 0
    %540 = vmatpush1.bf16.msra.mxu0 0
    %541 = vmatprep.subr.bf16.mxu0 0
    %542 = vmatpush1.bf16.msra.mxu0 0
    %543 = vmatprep.subr.bf16.mxu0 0
    %544 = vmatpush1.bf16.msra.mxu0 0
    %545 = vmatprep.subr.bf16.mxu0 0
    %546 = vmatpush1.bf16.msra.mxu0 0
    %547 = vmatprep.subr.bf16.mxu0 0
    %548 = vmatpush1.bf16.msra.mxu0 0
    %549 = vmatprep.subr.bf16.mxu0 0
    %550 = vmatpush1.bf16.msra.mxu0 0
    %551 = vmatprep.subr.bf16.mxu0 0
    %552 = vmatpush1.bf16.msra.mxu0 0
    %553 = vmatprep.subr.bf16.mxu0 0
    %554 = vmatpush1.bf16.msra.mxu0 0
    %555 = vmatprep.subr.bf16.mxu0 0
    %556 = vmatpush1.bf16.msra.mxu0 0
    %557 = vmatprep.subr.bf16.mxu0 0
    %558 = vmatpush1.bf16.msra.mxu0 0
    %559 = vmatprep.subr.bf16.mxu0 0
    %560 = vmatpush1.bf16.msra.mxu0 0
    %561 = vmatprep.subr.bf16.mxu0 0
    %562 = vmatpush1.bf16.msra.mxu0 0
    %563 = vmatprep.subr.bf16.mxu0 0
    %564 = vmatpush1.bf16.msra.mxu0 0
    %565 = vmatprep.subr.bf16.mxu0 0
    %566 = vmatpush1.bf16.msra.mxu0 0
    %567 = vmatprep.mubr.bf16.mxu0 0
    %568 = vmatmul.mubr.bf16.gmra.mrb[0].mxu0 %v533
    %v569 = vpop.f32.mrb[0].mxu0
    %v570 = vadd.f32 0.0, %v569
    %v571 = vpop.f32.mrb[0].mxu0
    %v572 = vpop.f32.mrb[0].mxu0
    %v573 = vadd.f32 0.0, %v572
    %v574 = vpop.f32.mrb[0].mxu0
    %575 = vdwg.mxu0
    %578 = vrot.lane.b32.xlu0 %v570, 16
    %v579 = vpop.permute.xlu0 %578
    %580 = vrot.lane.b32.xlu0 %v573, 16
    %v581 = vpop.permute.xlu0 %580
    %vm584 = vcmask 195712
    %585 = vst.msk [vmem:[#allocation2] sm:$0xff] %vm584, %v579
    %586 = vst.msk [vmem:[#allocation2 + $0x8] sm:$0xff] %vm584, %v581
    %587 = vrot.lane.b32.xlu0 %v186, 104
    %v588 = vpop.permute.xlu0 %587
    %589 = vrot.lane.b32.xlu0 %v186, 72
    %v590 = vpop.permute.xlu0 %589
    %v592 = vsel %vm190, %v588, 0
    %v595 = vsel %vm190, %v590, 0
    %597 = vmatprep.subr.bf16.mxu0 0
    %598 = vmatpush1.bf16.xpose.msra.mxu0 %v595
    %599 = vmatprep.subr.bf16.mxu0 0
    %600 = vmatpush1.bf16.xpose.msra.mxu0 0
    %601 = vmatprep.subr.bf16.mxu0 0
    %602 = vmatpush1.bf16.xpose.msra.mxu0 0
    %603 = vmatprep.subr.bf16.mxu0 0
    %604 = vmatpush1.bf16.xpose.msra.mxu0 0
    %605 = vmatprep.subr.bf16.mxu0 0
    %606 = vmatpush1.bf16.xpose.msra.mxu0 0
    %607 = vmatprep.subr.bf16.mxu0 0
    %608 = vmatpush1.bf16.xpose.msra.mxu0 0
    %609 = vmatprep.subr.bf16.mxu0 0
    %610 = vmatpush1.bf16.xpose.msra.mxu0 0
    %611 = vmatprep.subr.bf16.mxu0 0
    %612 = vmatpush1.bf16.xpose.msra.mxu0 0
    %613 = vmatprep.subr.bf16.mxu0 0
    %614 = vmatpush1.bf16.xpose.msra.mxu0 0
    %615 = vmatprep.subr.bf16.mxu0 0
    %616 = vmatpush1.bf16.xpose.msra.mxu0 0
    %617 = vmatprep.subr.bf16.mxu0 0
    %618 = vmatpush1.bf16.xpose.msra.mxu0 0
    %619 = vmatprep.subr.bf16.mxu0 0
    %620 = vmatpush1.bf16.xpose.msra.mxu0 0
    %621 = vmatprep.subr.bf16.mxu0 0
    %622 = vmatpush1.bf16.xpose.msra.mxu0 0
    %623 = vmatprep.subr.bf16.mxu0 0
    %624 = vmatpush1.bf16.xpose.msra.mxu0 0
    %625 = vmatprep.subr.bf16.mxu0 0
    %626 = vmatpush1.bf16.xpose.msra.mxu0 0
    %627 = vmatprep.subr.bf16.mxu0 0
    %628 = vmatpush1.bf16.xpose.msra.mxu0 0
    %629 = vmatprep.mubr.bf16.mxu0 0
    %630 = vmatmul.mubr.bf16.gmra.mrb[0].mxu0 %v592
    %v631 = vpop.f32.mrb[0].mxu0
    %v632 = vadd.f32 0.0, %v631
    %v633 = vpop.f32.mrb[0].mxu0
    %v634 = vpop.f32.mrb[0].mxu0
    %v635 = vadd.f32 0.0, %v634
    %v636 = vpop.f32.mrb[0].mxu0
    %637 = vdwg.mxu0
    %v638 = vmul.f32 %v632, 0.35355338
    %v639 = vmul.f32 %v635, 0.35355338
    %v640 = vadd.f32 %v638, %v55
    %v641 = vadd.f32 %v639, %v56
    %v642 = vsel %vm242, %v640, -inf
    %643 = vmax.xlane.f32.xlu0 %v642
    %v644 = vpop.xlane.xlu0 %643
    %v645 = vsel %vm242, %v641, -inf
    %646 = vmax.xlane.f32.xlu0 %v645
    %v647 = vpop.xlane.xlu0 %646
    %v648 = vsub.f32 %v640, %v644
    %v649 = vsub.f32 %v641, %v647
    %v650 = vmul.f32 %v648, 1.442695
    %v651 = vpow.pop %v650
    %v652 = vmul.f32 %v649, 1.442695
    %v653 = vpow.pop %v652
    %v654 = vsel %vm242, %v651, 0.0
    %655 = vadd.xlane.f32.xlu0 %v654
    %v656 = vpop.xlane.xlu0 %655
    %v657 = vsel %vm242, %v653, 0.0
    %658 = vadd.xlane.f32.xlu0 %v657
    %v659 = vpop.xlane.xlu0 %658
    %v660 = vrcp.pop %v656
    %v661 = vmul.f32 %v651, %v660
    %v662 = vrcp.pop %v659
    %v663 = vmul.f32 %v653, %v662
    %v664 = vpack.c.bf16 %v663, %v661
    %665 = vrot.lane.b32.xlu0 %v186, 40
    %v666 = vpop.permute.xlu0 %665
    %v669 = vsel %vm242, %v664, 0
    %671 = vmatprep.subr.bf16.mxu0 0
    %672 = vmatpush1.bf16.msra.mxu0 %v666
    %673 = vmatprep.subr.bf16.mxu0 0
    %674 = vmatpush1.bf16.msra.mxu0 0
    %675 = vmatprep.subr.bf16.mxu0 0
    %676 = vmatpush1.bf16.msra.mxu0 0
    %677 = vmatprep.subr.bf16.mxu0 0
    %678 = vmatpush1.bf16.msra.mxu0 0
    %679 = vmatprep.subr.bf16.mxu0 0
    %680 = vmatpush1.bf16.msra.mxu0 0
    %681 = vmatprep.subr.bf16.mxu0 0
    %682 = vmatpush1.bf16.msra.mxu0 0
    %683 = vmatprep.subr.bf16.mxu0 0
    %684 = vmatpush1.bf16.msra.mxu0 0
    %685 = vmatprep.subr.bf16.mxu0 0
    %686 = vmatpush1.bf16.msra.mxu0 0
    %687 = vmatprep.subr.bf16.mxu0 0
    %688 = vmatpush1.bf16.msra.mxu0 0
    %689 = vmatprep.subr.bf16.mxu0 0
    %690 = vmatpush1.bf16.msra.mxu0 0
    %691 = vmatprep.subr.bf16.mxu0 0
    %692 = vmatpush1.bf16.msra.mxu0 0
    %693 = vmatprep.subr.bf16.mxu0 0
    %694 = vmatpush1.bf16.msra.mxu0 0
    %695 = vmatprep.subr.bf16.mxu0 0
    %696 = vmatpush1.bf16.msra.mxu0 0
    %697 = vmatprep.subr.bf16.mxu0 0
    %698 = vmatpush1.bf16.msra.mxu0 0
    %699 = vmatprep.subr.bf16.mxu0 0
    %700 = vmatpush1.bf16.msra.mxu0 0
    %701 = vmatprep.subr.bf16.mxu0 0
    %702 = vmatpush1.bf16.msra.mxu0 0
    %703 = vmatprep.mubr.bf16.mxu0 0
    %704 = vmatmul.mubr.bf16.gmra.mrb[0].mxu0 %v669
    %v705 = vpop.f32.mrb[0].mxu0
    %v706 = vadd.f32 0.0, %v705
    %v707 = vpop.f32.mrb[0].mxu0
    %v708 = vpop.f32.mrb[0].mxu0
    %v709 = vadd.f32 0.0, %v708
    %v710 = vpop.f32.mrb[0].mxu0
    %711 = vdwg.mxu0
    %714 = vrot.lane.b32.xlu0 %v706, 24
    %v715 = vpop.permute.xlu0 %714
    %716 = vrot.lane.b32.xlu0 %v709, 24
    %v717 = vpop.permute.xlu0 %716
    %vm720 = vcmask 261312
    %721 = vst.msk [vmem:[#allocation2] sm:$0xff] %vm720, %v715
    %722 = vst.msk [vmem:[#allocation2 + $0x8] sm:$0xff] %vm720, %v717
    %v723 = vld [vmem:[#allocation2] sm:$0xff]
    %v724 = vld [vmem:[#allocation2 + $0x8] sm:$0xff]
    %v725 = vpack.c.bf16 %v724, %v723
    %v726 = vlaneseq
    %v727 = vshrl.u32 %v726, 7
    %v728 = vsub.s32 0, %v727
    %v729 = vrot.slane %v185, %v728
    %v734 = vunpack.c.l.b16 %v181
    %v735 = vunpack.c.l.b16 %v182
    %v736 = vunpack.c.l.b16 %v183
    %v737 = vunpack.c.l.b16 %v184
    %v738 = vpack.c.b16 %v735, %v734
    %v739 = vpack.c.b16 %v737, %v736
    %v743 = vsel %vm61, %v725, 0
    %745 = vmatprep.subr.bf16.mxu0 0
    %746 = vmatpush1.bf16.msra.mxu0 %v738
    %747 = vmatprep.subr.bf16.mxu0 0
    %748 = vmatpush1.bf16.msra.mxu0 %v739
    %749 = vmatprep.subr.bf16.mxu0 0
    %750 = vmatpush1.bf16.msra.mxu0 0
    %751 = vmatprep.subr.bf16.mxu0 0
    %752 = vmatpush1.bf16.msra.mxu0 0
    %753 = vmatprep.subr.bf16.mxu0 0
    %754 = vmatpush1.bf16.msra.mxu0 0
    %755 = vmatprep.subr.bf16.mxu0 0
    %756 = vmatpush1.bf16.msra.mxu0 0
    %757 = vmatprep.subr.bf16.mxu0 0
    %758 = vmatpush1.bf16.msra.mxu0 0
    %759 = vmatprep.subr.bf16.mxu0 0
    %760 = vmatpush1.bf16.msra.mxu0 0
    %761 = vmatprep.subr.bf16.mxu0 0
    %762 = vmatpush1.bf16.msra.mxu0 0
    %763 = vmatprep.subr.bf16.mxu0 0
    %764 = vmatpush1.bf16.msra.mxu0 0
    %765 = vmatprep.subr.bf16.mxu0 0
    %766 = vmatpush1.bf16.msra.mxu0 0
    %767 = vmatprep.subr.bf16.mxu0 0
    %768 = vmatpush1.bf16.msra.mxu0 0
    %769 = vmatprep.subr.bf16.mxu0 0
    %770 = vmatpush1.bf16.msra.mxu0 0
    %771 = vmatprep.subr.bf16.mxu0 0
    %772 = vmatpush1.bf16.msra.mxu0 0
    %773 = vmatprep.subr.bf16.mxu0 0
    %774 = vmatpush1.bf16.msra.mxu0 0
    %775 = vmatprep.subr.bf16.mxu0 0
    %776 = vmatpush1.bf16.msra.mxu0 0
    %777 = vmatprep.mubr.bf16.mxu0 0
    %778 = vmatmul.mubr.bf16.gmra.mrb[0].mxu0 %v743
    %v779 = vpop.f32.mrb[0].mxu0
    %v780 = vadd.f32 %v729, %v779
    %v781 = vpop.f32.mrb[0].mxu0
    %v782 = vpop.f32.mrb[0].mxu0
    %v783 = vadd.f32 %v729, %v782
    %v784 = vpop.f32.mrb[0].mxu0
    %785 = vdwg.mxu0
    %v786 = vadd.f32 %v50, %v780
    %v787 = vadd.f32 %v51, %v783
    %v788 = vld [vmem:[%s4 + $0x8] sm:$0x1]
    %v789 = vld [vmem:[%s4 + $0x9] sm:$0x1]
    %v790 = vsel %vm61, %v786, 0.0
    %791 = vadd.xlane.f32.xlu0 %v790
    %v792 = vpop.xlane.xlu0 %791
    %v793 = vsel %vm61, %v787, 0.0
    %794 = vadd.xlane.f32.xlu0 %v793
    %v795 = vpop.xlane.xlu0 %794
    %v796 = vmul.f32 %v792, %v68
    %v797 = vmul.f32 %v795, %v68
    %v798 = vsub.f32 %v786, %v796
    %v799 = vsub.f32 %v787, %v797
    %v800 = vmul.f32 %v798, %v798
    %v801 = vmul.f32 %v799, %v799
    %v802 = vsel %vm61, %v800, 0.0
    %803 = vadd.xlane.f32.xlu0 %v802
    %v804 = vpop.xlane.xlu0 %803
    %v805 = vsel %vm61, %v801, 0.0
    %806 = vadd.xlane.f32.xlu0 %v805
    %v807 = vpop.xlane.xlu0 %806
    %v808 = vmul.f32 %v804, 0.032258064
    %v809 = vmul.f32 %v807, 0.032258064
    %v810 = vlaneseq
    %v811 = vshrl.u32 %v810, 7
    %v812 = vsub.s32 0, %v811
    %v813 = vrot.slane %v788, %v812
    %v814 = vmul.f32 %v813, %v798
    %v815 = vmul.f32 %v813, %v799
    %v816 = vrsqrt.pop %v808
    %v817 = vmul.f32 %v808, %v816
    %vm818 = vcmp.eq.f32.partialorder %v808, inf
    %v819 = vsel %vm818, %v808, %v817
    %vm820 = vcmp.eq.f32.partialorder %v808, 0.0
    %v821 = vand.u32 %v808, 2147483648
    %v822 = vsel %vm820, %v821, %v819
    %v823 = vrsqrt.pop %v809
    %v824 = vmul.f32 %v809, %v823
    %vm825 = vcmp.eq.f32.partialorder %v809, inf
    %v826 = vsel %vm825, %v809, %v824
    %vm827 = vcmp.eq.f32.partialorder %v809, 0.0
    %v828 = vand.u32 %v809, 2147483648
    %v829 = vsel %vm827, %v828, %v826
    %v830 = vadd.f32 %v822, 1e-06
    %v831 = vadd.f32 %v829, 1e-06
    %v832 = vrcp.pop %v830
    %v833 = vmul.f32 %v814, %v832
    %v834 = vrcp.pop %v831
    %v835 = vmul.f32 %v815, %v834
    %v836 = vlaneseq
    %v837 = vshrl.u32 %v836, 7
    %v838 = vsub.s32 0, %v837
    %v839 = vrot.slane %v789, %v838
    %v840 = vadd.f32 %v833, %v839
    %v841 = vadd.f32 %v835, %v839
    %v842 = vpack.c.bf16 %v841, %v840
    %v843 = vld [vmem:[#allocation6 + $0x10] sm:$0xf]
    %v844 = vld [vmem:[#allocation6 + $0x14] sm:$0xf]
    %v845 = vld [vmem:[#allocation6 + $0x18] sm:$0xf]
    %v846 = vld [vmem:[#allocation6 + $0x1c] sm:$0xf]
    %v847 = vld [vmem:[%s4 + $0x1] sm:$0x1]
    %v848 = vlaneseq
    %v849 = vshrl.u32 %v848, 7
    %v850 = vsub.s32 0, %v849
    %v851 = vrot.slane %v847, %v850
    %v856 = vunpack.c.l.b16 %v843
    %v857 = vunpack.c.l.b16 %v844
    %v858 = vunpack.c.l.b16 %v845
    %v859 = vunpack.c.l.b16 %v846
    %v860 = vpack.c.b16 %v857, %v856
    %v861 = vpack.c.b16 %v859, %v858
    %v865 = vsel %vm61, %v842, 0
    %867 = vmatprep.subr.bf16.mxu0 0
    %868 = vmatpush1.bf16.msra.mxu0 %v860
    %869 = vmatprep.subr.bf16.mxu0 0
    %870 = vmatpush1.bf16.msra.mxu0 %v861
    %871 = vmatprep.subr.bf16.mxu0 0
    %872 = vmatpush1.bf16.msra.mxu0 0
    %873 = vmatprep.subr.bf16.mxu0 0
    %874 = vmatpush1.bf16.msra.mxu0 0
    %875 = vmatprep.subr.bf16.mxu0 0
    %876 = vmatpush1.bf16.msra.mxu0 0
    %877 = vmatprep.subr.bf16.mxu0 0
    %878 = vmatpush1.bf16.msra.mxu0 0
    %879 = vmatprep.subr.bf16.mxu0 0
    %880 = vmatpush1.bf16.msra.mxu0 0
    %881 = vmatprep.subr.bf16.mxu0 0
    %882 = vmatpush1.bf16.msra.mxu0 0
    %883 = vmatprep.subr.bf16.mxu0 0
    %884 = vmatpush1.bf16.msra.mxu0 0
    %885 = vmatprep.subr.bf16.mxu0 0
    %886 = vmatpush1.bf16.msra.mxu0 0
    %887 = vmatprep.subr.bf16.mxu0 0
    %888 = vmatpush1.bf16.msra.mxu0 0
    %889 = vmatprep.subr.bf16.mxu0 0
    %890 = vmatpush1.bf16.msra.mxu0 0
    %891 = vmatprep.subr.bf16.mxu0 0
    %892 = vmatpush1.bf16.msra.mxu0 0
    %893 = vmatprep.subr.bf16.mxu0 0
    %894 = vmatpush1.bf16.msra.mxu0 0
    %895 = vmatprep.subr.bf16.mxu0 0
    %896 = vmatpush1.bf16.msra.mxu0 0
    %897 = vmatprep.subr.bf16.mxu0 0
    %898 = vmatpush1.bf16.msra.mxu0 0
    %899 = vmatprep.mubr.bf16.mxu0 0
    %900 = vmatmul.mubr.bf16.gmra.mrb[0].mxu0 %v865
    %v901 = vpop.f32.mrb[0].mxu0
    %v902 = vadd.f32 %v851, %v901
    %v903 = vpop.f32.mrb[0].mxu0
    %v904 = vpop.f32.mrb[0].mxu0
    %v905 = vadd.f32 %v851, %v904
    %v906 = vpop.f32.mrb[0].mxu0
    %907 = vdwg.mxu0
    %908 = vrot.lane.b32.xlu0 %v860, 96
    %v909 = vpop.permute.xlu0 %908
    %910 = vrot.lane.b32.xlu0 %v861, 96
    %v911 = vpop.permute.xlu0 %910
    %915 = vrot.lane.b32.xlu0 %v851, 96
    %v916 = vpop.permute.xlu0 %915
    %v919 = vsel %vm61, %v54, 0
    %921 = vmatprep.subr.bf16.mxu0 0
    %922 = vmatpush1.bf16.msra.mxu0 %v909
    %923 = vmatprep.subr.bf16.mxu0 0
    %924 = vmatpush1.bf16.msra.mxu0 %v911
    %925 = vmatprep.subr.bf16.mxu0 0
    %926 = vmatpush1.bf16.msra.mxu0 0
    %927 = vmatprep.subr.bf16.mxu0 0
    %928 = vmatpush1.bf16.msra.mxu0 0
    %929 = vmatprep.subr.bf16.mxu0 0
    %930 = vmatpush1.bf16.msra.mxu0 0
    %931 = vmatprep.subr.bf16.mxu0 0
    %932 = vmatpush1.bf16.msra.mxu0 0
    %933 = vmatprep.subr.bf16.mxu0 0
    %934 = vmatpush1.bf16.msra.mxu0 0
    %935 = vmatprep.subr.bf16.mxu0 0
    %936 = vmatpush1.bf16.msra.mxu0 0
    %937 = vmatprep.subr.bf16.mxu0 0
    %938 = vmatpush1.bf16.msra.mxu0 0
    %939 = vmatprep.subr.bf16.mxu0 0
    %940 = vmatpush1.bf16.msra.mxu0 0
    %941 = vmatprep.subr.bf16.mxu0 0
    %942 = vmatpush1.bf16.msra.mxu0 0
    %943 = vmatprep.subr.bf16.mxu0 0
    %944 = vmatpush1.bf16.msra.mxu0 0
    %945 = vmatprep.subr.bf16.mxu0 0
    %946 = vmatpush1.bf16.msra.mxu0 0
    %947 = vmatprep.subr.bf16.mxu0 0
    %948 = vmatpush1.bf16.msra.mxu0 0
    %949 = vmatprep.subr.bf16.mxu0 0
    %950 = vmatpush1.bf16.msra.mxu0 0
    %951 = vmatprep.subr.bf16.mxu0 0
    %952 = vmatpush1.bf16.msra.mxu0 0
    %953 = vmatprep.mubr.bf16.mxu0 0
    %954 = vmatmul.mubr.bf16.gmra.mrb[0].mxu0 %v919
    %v955 = vpop.f32.mrb[0].mxu0
    %v956 = vadd.f32 %v916, %v955
    %v957 = vpop.f32.mrb[0].mxu0
    %v958 = vpop.f32.mrb[0].mxu0
    %v959 = vadd.f32 %v916, %v958
    %v960 = vpop.f32.mrb[0].mxu0
    %961 = vdwg.mxu0
    %v962 = vld [vmem:[#allocation6 + $0x30] sm:$0xf]
    %v963 = vld [vmem:[#allocation6 + $0x34] sm:$0xf]
    %v964 = vld [vmem:[#allocation6 + $0x38] sm:$0xf]
    %v965 = vld [vmem:[#allocation6 + $0x3c] sm:$0xf]
    %v966 = vld [vmem:[%s4 + $0x3] sm:$0x1]
    %v967 = vpack.c.bf16 %v905, %v902
    %v968 = vpack.c.bf16 %v959, %v956
    %v970 = vsel %vm190, %v967, 0
    %v973 = vsel %vm190, %v968, 0
    %975 = vmatprep.subr.bf16.mxu0 0
    %976 = vmatpush1.bf16.xpose.msra.mxu0 %v973
    %977 = vmatprep.subr.bf16.mxu0 0
    %978 = vmatpush1.bf16.xpose.msra.mxu0 0
    %979 = vmatprep.subr.bf16.mxu0 0
    %980 = vmatpush1.bf16.xpose.msra.mxu0 0
    %981 = vmatprep.subr.bf16.mxu0 0
    %982 = vmatpush1.bf16.xpose.msra.mxu0 0
    %983 = vmatprep.subr.bf16.mxu0 0
    %984 = vmatpush1.bf16.xpose.msra.mxu0 0
    %985 = vmatprep.subr.bf16.mxu0 0
    %986 = vmatpush1.bf16.xpose.msra.mxu0 0
    %987 = vmatprep.subr.bf16.mxu0 0
    %988 = vmatpush1.bf16.xpose.msra.mxu0 0
    %989 = vmatprep.subr.bf16.mxu0 0
    %990 = vmatpush1.bf16.xpose.msra.mxu0 0
    %991 = vmatprep.subr.bf16.mxu0 0
    %992 = vmatpush1.bf16.xpose.msra.mxu0 0
    %993 = vmatprep.subr.bf16.mxu0 0
    %994 = vmatpush1.bf16.xpose.msra.mxu0 0
    %995 = vmatprep.subr.bf16.mxu0 0
    %996 = vmatpush1.bf16.xpose.msra.mxu0 0
    %997 = vmatprep.subr.bf16.mxu0 0
    %998 = vmatpush1.bf16.xpose.msra.mxu0 0
    %999 = vmatprep.subr.bf16.mxu0 0
    %1000 = vmatpush1.bf16.xpose.msra.mxu0 0
    %1001 = vmatprep.subr.bf16.mxu0 0
    %1002 = vmatpush1.bf16.xpose.msra.mxu0 0
    %1003 = vmatprep.subr.bf16.mxu0 0
    %1004 = vmatpush1.bf16.xpose.msra.mxu0 0
    %1005 = vmatprep.subr.bf16.mxu0 0
    %1006 = vmatpush1.bf16.xpose.msra.mxu0 0
    %1007 = vmatprep.mubr.bf16.mxu0 0
    %1008 = vmatmul.mubr.bf16.gmra.mrb[0].mxu0 %v970
    %v1009 = vpop.f32.mrb[0].mxu0
    %v1010 = vadd.f32 0.0, %v1009
    %v1011 = vpop.f32.mrb[0].mxu0
    %v1012 = vpop.f32.mrb[0].mxu0
    %v1013 = vadd.f32 0.0, %v1012
    %v1014 = vpop.f32.mrb[0].mxu0
    %1015 = vdwg.mxu0
    %v1016 = vmul.f32 %v1010, 0.35355338
    %v1017 = vmul.f32 %v1013, 0.35355338
    %v1018 = vadd.f32 %v1016, %v57
    %v1019 = vadd.f32 %v1017, %v58
    %v1020 = vsel %vm242, %v1018, -inf
    %1021 = vmax.xlane.f32.xlu0 %v1020
    %v1022 = vpop.xlane.xlu0 %1021
    %v1023 = vsel %vm242, %v1019, -inf
    %1024 = vmax.xlane.f32.xlu0 %v1023
    %v1025 = vpop.xlane.xlu0 %1024
    %v1026 = vsub.f32 %v1018, %v1022
    %v1027 = vsub.f32 %v1019, %v1025
    %v1028 = vmul.f32 %v1026, 1.442695
    %v1029 = vpow.pop %v1028
    %v1030 = vmul.f32 %v1027, 1.442695
    %v1031 = vpow.pop %v1030
    %v1032 = vsel %vm242, %v1029, 0.0
    %1033 = vadd.xlane.f32.xlu0 %v1032
    %v1034 = vpop.xlane.xlu0 %1033
    %v1035 = vsel %vm242, %v1031, 0.0
    %1036 = vadd.xlane.f32.xlu0 %v1035
    %v1037 = vpop.xlane.xlu0 %1036
    %v1038 = vrcp.pop %v1034
    %v1039 = vmul.f32 %v1029, %v1038
    %v1040 = vrcp.pop %v1037
    %v1041 = vmul.f32 %v1031, %v1040
    %v1042 = vpack.c.bf16 %v1041, %v1039
    %1044 = vrot.lane.b32.xlu0 %v968, 96
    %v1045 = vpop.permute.xlu0 %1044
    %v1048 = vsel %vm242, %v1042, 0
    %1050 = vmatprep.subr.bf16.mxu0 0
    %1051 = vmatpush1.bf16.msra.mxu0 %v1045
    %1052 = vmatprep.subr.bf16.mxu0 0
    %1053 = vmatpush1.bf16.msra.mxu0 0
    %1054 = vmatprep.subr.bf16.mxu0 0
    %1055 = vmatpush1.bf16.msra.mxu0 0
    %1056 = vmatprep.subr.bf16.mxu0 0
    %1057 = vmatpush1.bf16.msra.mxu0 0
    %1058 = vmatprep.subr.bf16.mxu0 0
    %1059 = vmatpush1.bf16.msra.mxu0 0
    %1060 = vmatprep.subr.bf16.mxu0 0
    %1061 = vmatpush1.bf16.msra.mxu0 0
    %1062 = vmatprep.subr.bf16.mxu0 0
    %1063 = vmatpush1.bf16.msra.mxu0 0
    %1064 = vmatprep.subr.bf16.mxu0 0
    %1065 = vmatpush1.bf16.msra.mxu0 0
    %1066 = vmatprep.subr.bf16.mxu0 0
    %1067 = vmatpush1.bf16.msra.mxu0 0
    %1068 = vmatprep.subr.bf16.mxu0 0
    %1069 = vmatpush1.bf16.msra.mxu0 0
    %1070 = vmatprep.subr.bf16.mxu0 0
    %1071 = vmatpush1.bf16.msra.mxu0 0
    %1072 = vmatprep.subr.bf16.mxu0 0
    %1073 = vmatpush1.bf16.msra.mxu0 0
    %1074 = vmatprep.subr.bf16.mxu0 0
    %1075 = vmatpush1.bf16.msra.mxu0 0
    %1076 = vmatprep.subr.bf16.mxu0 0
    %1077 = vmatpush1.bf16.msra.mxu0 0
    %1078 = vmatprep.subr.bf16.mxu0 0
    %1079 = vmatpush1.bf16.msra.mxu0 0
    %1080 = vmatprep.subr.bf16.mxu0 0
    %1081 = vmatpush1.bf16.msra.mxu0 0
    %1082 = vmatprep.mubr.bf16.mxu0 0
    %1083 = vmatmul.mubr.bf16.gmra.mrb[0].mxu0 %v1048
    %v1084 = vpop.f32.mrb[0].mxu0
    %v1085 = vadd.f32 0.0, %v1084
    %v1086 = vpop.f32.mrb[0].mxu0
    %v1087 = vpop.f32.mrb[0].mxu0
    %v1088 = vadd.f32 0.0, %v1087
    %v1089 = vpop.f32.mrb[0].mxu0
    %1090 = vdwg.mxu0
    %1091 = vst.msk [vmem:[#allocation2] sm:$0xff] %vm190, %v1085
    %1092 = vst.msk [vmem:[#allocation2 + $0x8] sm:$0xff] %vm190, %v1088
    %1094 = vrot.lane.b32.xlu0 %v967, 120
    %v1095 = vpop.permute.xlu0 %1094
    %1096 = vrot.lane.b32.xlu0 %v968, 120
    %v1097 = vpop.permute.xlu0 %1096
    %v1099 = vsel %vm190, %v1095, 0
    %v1102 = vsel %vm190, %v1097, 0
    %1104 = vmatprep.subr.bf16.mxu0 0
    %1105 = vmatpush1.bf16.xpose.msra.mxu0 %v1102
    %1106 = vmatprep.subr.bf16.mxu0 0
    %1107 = vmatpush1.bf16.xpose.msra.mxu0 0
    %1108 = vmatprep.subr.bf16.mxu0 0
    %1109 = vmatpush1.bf16.xpose.msra.mxu0 0
    %1110 = vmatprep.subr.bf16.mxu0 0
    %1111 = vmatpush1.bf16.xpose.msra.mxu0 0
    %1112 = vmatprep.subr.bf16.mxu0 0
    %1113 = vmatpush1.bf16.xpose.msra.mxu0 0
    %1114 = vmatprep.subr.bf16.mxu0 0
    %1115 = vmatpush1.bf16.xpose.msra.mxu0 0
    %1116 = vmatprep.subr.bf16.mxu0 0
    %1117 = vmatpush1.bf16.xpose.msra.mxu0 0
    %1118 = vmatprep.subr.bf16.mxu0 0
    %1119 = vmatpush1.bf16.xpose.msra.mxu0 0
    %1120 = vmatprep.subr.bf16.mxu0 0
    %1121 = vmatpush1.bf16.xpose.msra.mxu0 0
    %1122 = vmatprep.subr.bf16.mxu0 0
    %1123 = vmatpush1.bf16.xpose.msra.mxu0 0
    %1124 = vmatprep.subr.bf16.mxu0 0
    %1125 = vmatpush1.bf16.xpose.msra.mxu0 0
    %1126 = vmatprep.subr.bf16.mxu0 0
    %1127 = vmatpush1.bf16.xpose.msra.mxu0 0
    %1128 = vmatprep.subr.bf16.mxu0 0
    %1129 = vmatpush1.bf16.xpose.msra.mxu0 0
    %1130 = vmatprep.subr.bf16.mxu0 0
    %1131 = vmatpush1.bf16.xpose.msra.mxu0 0
    %1132 = vmatprep.subr.bf16.mxu0 0
    %1133 = vmatpush1.bf16.xpose.msra.mxu0 0
    %1134 = vmatprep.subr.bf16.mxu0 0
    %1135 = vmatpush1.bf16.xpose.msra.mxu0 0
    %1136 = vmatprep.mubr.bf16.mxu0 0
    %1137 = vmatmul.mubr.bf16.gmra.mrb[0].mxu0 %v1099
    %v1138 = vpop.f32.mrb[0].mxu0
    %v1139 = vadd.f32 0.0, %v1138
    %v1140 = vpop.f32.mrb[0].mxu0
    %v1141 = vpop.f32.mrb[0].mxu0
    %v1142 = vadd.f32 0.0, %v1141
    %v1143 = vpop.f32.mrb[0].mxu0
    %1144 = vdwg.mxu0
    %v1145 = vmul.f32 %v1139, 0.35355338
    %v1146 = vmul.f32 %v1142, 0.35355338
    %v1147 = vadd.f32 %v1145, %v57
    %v1148 = vadd.f32 %v1146, %v58
    %v1149 = vsel %vm242, %v1147, -inf
    %1150 = vmax.xlane.f32.xlu0 %v1149
    %v1151 = vpop.xlane.xlu0 %1150
    %v1152 = vsel %vm242, %v1148, -inf
    %1153 = vmax.xlane.f32.xlu0 %v1152
    %v1154 = vpop.xlane.xlu0 %1153
    %v1155 = vsub.f32 %v1147, %v1151
    %v1156 = vsub.f32 %v1148, %v1154
    %v1157 = vmul.f32 %v1155, 1.442695
    %v1158 = vpow.pop %v1157
    %v1159 = vmul.f32 %v1156, 1.442695
    %v1160 = vpow.pop %v1159
    %v1161 = vsel %vm242, %v1158, 0.0
    %1162 = vadd.xlane.f32.xlu0 %v1161
    %v1163 = vpop.xlane.xlu0 %1162
    %v1164 = vsel %vm242, %v1160, 0.0
    %1165 = vadd.xlane.f32.xlu0 %v1164
    %v1166 = vpop.xlane.xlu0 %1165
    %v1167 = vrcp.pop %v1163
    %v1168 = vmul.f32 %v1158, %v1167
    %v1169 = vrcp.pop %v1166
    %v1170 = vmul.f32 %v1160, %v1169
    %v1171 = vpack.c.bf16 %v1170, %v1168
    %1172 = vrot.lane.b32.xlu0 %v968, 88
    %v1173 = vpop.permute.xlu0 %1172
    %v1176 = vsel %vm242, %v1171, 0
    %1178 = vmatprep.subr.bf16.mxu0 0
    %1179 = vmatpush1.bf16.msra.mxu0 %v1173
    %1180 = vmatprep.subr.bf16.mxu0 0
    %1181 = vmatpush1.bf16.msra.mxu0 0
    %1182 = vmatprep.subr.bf16.mxu0 0
    %1183 = vmatpush1.bf16.msra.mxu0 0
    %1184 = vmatprep.subr.bf16.mxu0 0
    %1185 = vmatpush1.bf16.msra.mxu0 0
    %1186 = vmatprep.subr.bf16.mxu0 0
    %1187 = vmatpush1.bf16.msra.mxu0 0
    %1188 = vmatprep.subr.bf16.mxu0 0
    %1189 = vmatpush1.bf16.msra.mxu0 0
    %1190 = vmatprep.subr.bf16.mxu0 0
    %1191 = vmatpush1.bf16.msra.mxu0 0
    %1192 = vmatprep.subr.bf16.mxu0 0
    %1193 = vmatpush1.bf16.msra.mxu0 0
    %1194 = vmatprep.subr.bf16.mxu0 0
    %1195 = vmatpush1.bf16.msra.mxu0 0
    %1196 = vmatprep.subr.bf16.mxu0 0
    %1197 = vmatpush1.bf16.msra.mxu0 0
    %1198 = vmatprep.subr.bf16.mxu0 0
    %1199 = vmatpush1.bf16.msra.mxu0 0
    %1200 = vmatprep.subr.bf16.mxu0 0
    %1201 = vmatpush1.bf16.msra.mxu0 0
    %1202 = vmatprep.subr.bf16.mxu0 0
    %1203 = vmatpush1.bf16.msra.mxu0 0
    %1204 = vmatprep.subr.bf16.mxu0 0
    %1205 = vmatpush1.bf16.msra.mxu0 0
    %1206 = vmatprep.subr.bf16.mxu0 0
    %1207 = vmatpush1.bf16.msra.mxu0 0
    %1208 = vmatprep.subr.bf16.mxu0 0
    %1209 = vmatpush1.bf16.msra.mxu0 0
    %1210 = vmatprep.mubr.bf16.mxu0 0
    %1211 = vmatmul.mubr.bf16.gmra.mrb[0].mxu0 %v1176
    %v1212 = vpop.f32.mrb[0].mxu0
    %v1213 = vadd.f32 0.0, %v1212
    %v1214 = vpop.f32.mrb[0].mxu0
    %v1215 = vpop.f32.mrb[0].mxu0
    %v1216 = vadd.f32 0.0, %v1215
    %v1217 = vpop.f32.mrb[0].mxu0
    %1218 = vdwg.mxu0
    %1221 = vrot.lane.b32.xlu0 %v1213, 8
    %v1222 = vpop.permute.xlu0 %1221
    %1223 = vrot.lane.b32.xlu0 %v1216, 8
    %v1224 = vpop.permute.xlu0 %1223
    %1227 = vst.msk [vmem:[#allocation2] sm:$0xff] %vm448, %v1222
    %1228 = vst.msk [vmem:[#allocation2 + $0x8] sm:$0xff] %vm448, %v1224
    %1229 = vrot.lane.b32.xlu0 %v967, 112
    %v1230 = vpop.permute.xlu0 %1229
    %1231 = vrot.lane.b32.xlu0 %v968, 112
    %v1232 = vpop.permute.xlu0 %1231
    %v1234 = vsel %vm190, %v1230, 0
    %v1237 = vsel %vm190, %v1232, 0
    %1239 = vmatprep.subr.bf16.mxu0 0
    %1240 = vmatpush1.bf16.xpose.msra.mxu0 %v1237
    %1241 = vmatprep.subr.bf16.mxu0 0
    %1242 = vmatpush1.bf16.xpose.msra.mxu0 0
    %1243 = vmatprep.subr.bf16.mxu0 0
    %1244 = vmatpush1.bf16.xpose.msra.mxu0 0
    %1245 = vmatprep.subr.bf16.mxu0 0
    %1246 = vmatpush1.bf16.xpose.msra.mxu0 0
    %1247 = vmatprep.subr.bf16.mxu0 0
    %1248 = vmatpush1.bf16.xpose.msra.mxu0 0
    %1249 = vmatprep.subr.bf16.mxu0 0
    %1250 = vmatpush1.bf16.xpose.msra.mxu0 0
    %1251 = vmatprep.subr.bf16.mxu0 0
    %1252 = vmatpush1.bf16.xpose.msra.mxu0 0
    %1253 = vmatprep.subr.bf16.mxu0 0
    %1254 = vmatpush1.bf16.xpose.msra.mxu0 0
    %1255 = vmatprep.subr.bf16.mxu0 0
    %1256 = vmatpush1.bf16.xpose.msra.mxu0 0
    %1257 = vmatprep.subr.bf16.mxu0 0
    %1258 = vmatpush1.bf16.xpose.msra.mxu0 0
    %1259 = vmatprep.subr.bf16.mxu0 0
    %1260 = vmatpush1.bf16.xpose.msra.mxu0 0
    %1261 = vmatprep.subr.bf16.mxu0 0
    %1262 = vmatpush1.bf16.xpose.msra.mxu0 0
    %1263 = vmatprep.subr.bf16.mxu0 0
    %1264 = vmatpush1.bf16.xpose.msra.mxu0 0
    %1265 = vmatprep.subr.bf16.mxu0 0
    %1266 = vmatpush1.bf16.xpose.msra.mxu0 0
    %1267 = vmatprep.subr.bf16.mxu0 0
    %1268 = vmatpush1.bf16.xpose.msra.mxu0 0
    %1269 = vmatprep.subr.bf16.mxu0 0
    %1270 = vmatpush1.bf16.xpose.msra.mxu0 0
    %1271 = vmatprep.mubr.bf16.mxu0 0
    %1272 = vmatmul.mubr.bf16.gmra.mrb[0].mxu0 %v1234
    %v1273 = vpop.f32.mrb[0].mxu0
    %v1274 = vadd.f32 0.0, %v1273
    %v1275 = vpop.f32.mrb[0].mxu0
    %v1276 = vpop.f32.mrb[0].mxu0
    %v1277 = vadd.f32 0.0, %v1276
    %v1278 = vpop.f32.mrb[0].mxu0
    %1279 = vdwg.mxu0
    %v1280 = vmul.f32 %v1274, 0.35355338
    %v1281 = vmul.f32 %v1277, 0.35355338
    %v1282 = vadd.f32 %v1280, %v57
    %v1283 = vadd.f32 %v1281, %v58
    %v1284 = vsel %vm242, %v1282, -inf
    %1285 = vmax.xlane.f32.xlu0 %v1284
    %v1286 = vpop.xlane.xlu0 %1285
    %v1287 = vsel %vm242, %v1283, -inf
    %1288 = vmax.xlane.f32.xlu0 %v1287
    %v1289 = vpop.xlane.xlu0 %1288
    %v1290 = vsub.f32 %v1282, %v1286
    %v1291 = vsub.f32 %v1283, %v1289
    %v1292 = vmul.f32 %v1290, 1.442695
    %v1293 = vpow.pop %v1292
    %v1294 = vmul.f32 %v1291, 1.442695
    %v1295 = vpow.pop %v1294
    %v1296 = vsel %vm242, %v1293, 0.0
    %1297 = vadd.xlane.f32.xlu0 %v1296
    %v1298 = vpop.xlane.xlu0 %1297
    %v1299 = vsel %vm242, %v1295, 0.0
    %1300 = vadd.xlane.f32.xlu0 %v1299
    %v1301 = vpop.xlane.xlu0 %1300
    %v1302 = vrcp.pop %v1298
    %v1303 = vmul.f32 %v1293, %v1302
    %v1304 = vrcp.pop %v1301
    %v1305 = vmul.f32 %v1295, %v1304
    %v1306 = vpack.c.bf16 %v1305, %v1303
    %1307 = vrot.lane.b32.xlu0 %v968, 80
    %v1308 = vpop.permute.xlu0 %1307
    %v1311 = vsel %vm242, %v1306, 0
    %1313 = vmatprep.subr.bf16.mxu0 0
    %1314 = vmatpush1.bf16.msra.mxu0 %v1308
    %1315 = vmatprep.subr.bf16.mxu0 0
    %1316 = vmatpush1.bf16.msra.mxu0 0
    %1317 = vmatprep.subr.bf16.mxu0 0
    %1318 = vmatpush1.bf16.msra.mxu0 0
    %1319 = vmatprep.subr.bf16.mxu0 0
    %1320 = vmatpush1.bf16.msra.mxu0 0
    %1321 = vmatprep.subr.bf16.mxu0 0
    %1322 = vmatpush1.bf16.msra.mxu0 0
    %1323 = vmatprep.subr.bf16.mxu0 0
    %1324 = vmatpush1.bf16.msra.mxu0 0
    %1325 = vmatprep.subr.bf16.mxu0 0
    %1326 = vmatpush1.bf16.msra.mxu0 0
    %1327 = vmatprep.subr.bf16.mxu0 0
    %1328 = vmatpush1.bf16.msra.mxu0 0
    %1329 = vmatprep.subr.bf16.mxu0 0
    %1330 = vmatpush1.bf16.msra.mxu0 0
    %1331 = vmatprep.subr.bf16.mxu0 0
    %1332 = vmatpush1.bf16.msra.mxu0 0
    %1333 = vmatprep.subr.bf16.mxu0 0
    %1334 = vmatpush1.bf16.msra.mxu0 0
    %1335 = vmatprep.subr.bf16.mxu0 0
    %1336 = vmatpush1.bf16.msra.mxu0 0
    %1337 = vmatprep.subr.bf16.mxu0 0
    %1338 = vmatpush1.bf16.msra.mxu0 0
    %1339 = vmatprep.subr.bf16.mxu0 0
    %1340 = vmatpush1.bf16.msra.mxu0 0
    %1341 = vmatprep.subr.bf16.mxu0 0
    %1342 = vmatpush1.bf16.msra.mxu0 0
    %1343 = vmatprep.subr.bf16.mxu0 0
    %1344 = vmatpush1.bf16.msra.mxu0 0
    %1345 = vmatprep.mubr.bf16.mxu0 0
    %1346 = vmatmul.mubr.bf16.gmra.mrb[0].mxu0 %v1311
    %v1347 = vpop.f32.mrb[0].mxu0
    %v1348 = vadd.f32 0.0, %v1347
    %v1349 = vpop.f32.mrb[0].mxu0
    %v1350 = vpop.f32.mrb[0].mxu0
    %v1351 = vadd.f32 0.0, %v1350
    %v1352 = vpop.f32.mrb[0].mxu0
    %1353 = vdwg.mxu0
    %1356 = vrot.lane.b32.xlu0 %v1348, 16
    %v1357 = vpop.permute.xlu0 %1356
    %1358 = vrot.lane.b32.xlu0 %v1351, 16
    %v1359 = vpop.permute.xlu0 %1358
    %1362 = vst.msk [vmem:[#allocation2] sm:$0xff] %vm584, %v1357
    %1363 = vst.msk [vmem:[#allocation2 + $0x8] sm:$0xff] %vm584, %v1359
    %1364 = vrot.lane.b32.xlu0 %v967, 104
    %v1365 = vpop.permute.xlu0 %1364
    %1366 = vrot.lane.b32.xlu0 %v968, 104
    %v1367 = vpop.permute.xlu0 %1366
    %v1369 = vsel %vm190, %v1365, 0
    %v1372 = vsel %vm190, %v1367, 0
    %1374 = vmatprep.subr.bf16.mxu0 0
    %1375 = vmatpush1.bf16.xpose.msra.mxu0 %v1372
    %1376 = vmatprep.subr.bf16.mxu0 0
    %1377 = vmatpush1.bf16.xpose.msra.mxu0 0
    %1378 = vmatprep.subr.bf16.mxu0 0
    %1379 = vmatpush1.bf16.xpose.msra.mxu0 0
    %1380 = vmatprep.subr.bf16.mxu0 0
    %1381 = vmatpush1.bf16.xpose.msra.mxu0 0
    %1382 = vmatprep.subr.bf16.mxu0 0
    %1383 = vmatpush1.bf16.xpose.msra.mxu0 0
    %1384 = vmatprep.subr.bf16.mxu0 0
    %1385 = vmatpush1.bf16.xpose.msra.mxu0 0
    %1386 = vmatprep.subr.bf16.mxu0 0
    %1387 = vmatpush1.bf16.xpose.msra.mxu0 0
    %1388 = vmatprep.subr.bf16.mxu0 0
    %1389 = vmatpush1.bf16.xpose.msra.mxu0 0
    %1390 = vmatprep.subr.bf16.mxu0 0
    %1391 = vmatpush1.bf16.xpose.msra.mxu0 0
    %1392 = vmatprep.subr.bf16.mxu0 0
    %1393 = vmatpush1.bf16.xpose.msra.mxu0 0
    %1394 = vmatprep.subr.bf16.mxu0 0
    %1395 = vmatpush1.bf16.xpose.msra.mxu0 0
    %1396 = vmatprep.subr.bf16.mxu0 0
    %1397 = vmatpush1.bf16.xpose.msra.mxu0 0
    %1398 = vmatprep.subr.bf16.mxu0 0
    %1399 = vmatpush1.bf16.xpose.msra.mxu0 0
    %1400 = vmatprep.subr.bf16.mxu0 0
    %1401 = vmatpush1.bf16.xpose.msra.mxu0 0
    %1402 = vmatprep.subr.bf16.mxu0 0
    %1403 = vmatpush1.bf16.xpose.msra.mxu0 0
    %1404 = vmatprep.subr.bf16.mxu0 0
    %1405 = vmatpush1.bf16.xpose.msra.mxu0 0
    %1406 = vmatprep.mubr.bf16.mxu0 0
    %1407 = vmatmul.mubr.bf16.gmra.mrb[0].mxu0 %v1369
    %v1408 = vpop.f32.mrb[0].mxu0
    %v1409 = vadd.f32 0.0, %v1408
    %v1410 = vpop.f32.mrb[0].mxu0
    %v1411 = vpop.f32.mrb[0].mxu0
    %v1412 = vadd.f32 0.0, %v1411
    %v1413 = vpop.f32.mrb[0].mxu0
    %1414 = vdwg.mxu0
    %v1415 = vmul.f32 %v1409, 0.35355338
    %v1416 = vmul.f32 %v1412, 0.35355338
    %v1417 = vadd.f32 %v1415, %v57
    %v1418 = vadd.f32 %v1416, %v58
    %v1419 = vsel %vm242, %v1417, -inf
    %1420 = vmax.xlane.f32.xlu0 %v1419
    %v1421 = vpop.xlane.xlu0 %1420
    %v1422 = vsel %vm242, %v1418, -inf
    %1423 = vmax.xlane.f32.xlu0 %v1422
    %v1424 = vpop.xlane.xlu0 %1423
    %v1425 = vsub.f32 %v1417, %v1421
    %v1426 = vsub.f32 %v1418, %v1424
    %v1427 = vmul.f32 %v1425, 1.442695
    %v1428 = vpow.pop %v1427
    %v1429 = vmul.f32 %v1426, 1.442695
    %v1430 = vpow.pop %v1429
    %v1431 = vsel %vm242, %v1428, 0.0
    %1432 = vadd.xlane.f32.xlu0 %v1431
    %v1433 = vpop.xlane.xlu0 %1432
    %v1434 = vsel %vm242, %v1430, 0.0
    %1435 = vadd.xlane.f32.xlu0 %v1434
    %v1436 = vpop.xlane.xlu0 %1435
    %v1437 = vrcp.pop %v1433
    %v1438 = vmul.f32 %v1428, %v1437
    %v1439 = vrcp.pop %v1436
    %v1440 = vmul.f32 %v1430, %v1439
    %v1441 = vpack.c.bf16 %v1440, %v1438
    %1442 = vrot.lane.b32.xlu0 %v968, 72
    %v1443 = vpop.permute.xlu0 %1442
    %v1446 = vsel %vm242, %v1441, 0
    %1448 = vmatprep.subr.bf16.mxu0 0
    %1449 = vmatpush1.bf16.msra.mxu0 %v1443
    %1450 = vmatprep.subr.bf16.mxu0 0
    %1451 = vmatpush1.bf16.msra.mxu0 0
    %1452 = vmatprep.subr.bf16.mxu0 0
    %1453 = vmatpush1.bf16.msra.mxu0 0
    %1454 = vmatprep.subr.bf16.mxu0 0
    %1455 = vmatpush1.bf16.msra.mxu0 0
    %1456 = vmatprep.subr.bf16.mxu0 0
    %1457 = vmatpush1.bf16.msra.mxu0 0
    %1458 = vmatprep.subr.bf16.mxu0 0
    %1459 = vmatpush1.bf16.msra.mxu0 0
    %1460 = vmatprep.subr.bf16.mxu0 0
    %1461 = vmatpush1.bf16.msra.mxu0 0
    %1462 = vmatprep.subr.bf16.mxu0 0
    %1463 = vmatpush1.bf16.msra.mxu0 0
    %1464 = vmatprep.subr.bf16.mxu0 0
    %1465 = vmatpush1.bf16.msra.mxu0 0
    %1466 = vmatprep.subr.bf16.mxu0 0
    %1467 = vmatpush1.bf16.msra.mxu0 0
    %1468 = vmatprep.subr.bf16.mxu0 0
    %1469 = vmatpush1.bf16.msra.mxu0 0
    %1470 = vmatprep.subr.bf16.mxu0 0
    %1471 = vmatpush1.bf16.msra.mxu0 0
    %1472 = vmatprep.subr.bf16.mxu0 0
    %1473 = vmatpush1.bf16.msra.mxu0 0
    %1474 = vmatprep.subr.bf16.mxu0 0
    %1475 = vmatpush1.bf16.msra.mxu0 0
    %1476 = vmatprep.subr.bf16.mxu0 0
    %1477 = vmatpush1.bf16.msra.mxu0 0
    %1478 = vmatprep.subr.bf16.mxu0 0
    %1479 = vmatpush1.bf16.msra.mxu0 0
    %1480 = vmatprep.mubr.bf16.mxu0 0
    %1481 = vmatmul.mubr.bf16.gmra.mrb[0].mxu0 %v1446
    %v1482 = vpop.f32.mrb[0].mxu0
    %v1483 = vadd.f32 0.0, %v1482
    %v1484 = vpop.f32.mrb[0].mxu0
    %v1485 = vpop.f32.mrb[0].mxu0
    %v1486 = vadd.f32 0.0, %v1485
    %v1487 = vpop.f32.mrb[0].mxu0
    %1488 = vdwg.mxu0
    %1491 = vrot.lane.b32.xlu0 %v1483, 24
    %v1492 = vpop.permute.xlu0 %1491
    %1493 = vrot.lane.b32.xlu0 %v1486, 24
    %v1494 = vpop.permute.xlu0 %1493
    %1497 = vst.msk [vmem:[#allocation2] sm:$0xff] %vm720, %v1492
    %1498 = vst.msk [vmem:[#allocation2 + $0x8] sm:$0xff] %vm720, %v1494
    %v1499 = vld [vmem:[#allocation2] sm:$0xff]
    %v1500 = vld [vmem:[#allocation2 + $0x8] sm:$0xff]
    %v1501 = vpack.c.bf16 %v1500, %v1499
    %v1502 = vlaneseq
    %v1503 = vshrl.u32 %v1502, 7
    %v1504 = vsub.s32 0, %v1503
    %v1505 = vrot.slane %v966, %v1504
    %v1510 = vunpack.c.l.b16 %v962
    %v1511 = vunpack.c.l.b16 %v963
    %v1512 = vunpack.c.l.b16 %v964
    %v1513 = vunpack.c.l.b16 %v965
    %v1514 = vpack.c.b16 %v1511, %v1510
    %v1515 = vpack.c.b16 %v1513, %v1512
    %v1519 = vsel %vm61, %v1501, 0
    %1521 = vmatprep.subr.bf16.mxu0 0
    %1522 = vmatpush1.bf16.msra.mxu0 %v1514
    %1523 = vmatprep.subr.bf16.mxu0 0
    %1524 = vmatpush1.bf16.msra.mxu0 %v1515
    %1525 = vmatprep.subr.bf16.mxu0 0
    %1526 = vmatpush1.bf16.msra.mxu0 0
    %1527 = vmatprep.subr.bf16.mxu0 0
    %1528 = vmatpush1.bf16.msra.mxu0 0
    %1529 = vmatprep.subr.bf16.mxu0 0
    %1530 = vmatpush1.bf16.msra.mxu0 0
    %1531 = vmatprep.subr.bf16.mxu0 0
    %1532 = vmatpush1.bf16.msra.mxu0 0
    %1533 = vmatprep.subr.bf16.mxu0 0
    %1534 = vmatpush1.bf16.msra.mxu0 0
    %1535 = vmatprep.subr.bf16.mxu0 0
    %1536 = vmatpush1.bf16.msra.mxu0 0
    %1537 = vmatprep.subr.bf16.mxu0 0
    %1538 = vmatpush1.bf16.msra.mxu0 0
    %1539 = vmatprep.subr.bf16.mxu0 0
    %1540 = vmatpush1.bf16.msra.mxu0 0
    %1541 = vmatprep.subr.bf16.mxu0 0
    %1542 = vmatpush1.bf16.msra.mxu0 0
    %1543 = vmatprep.subr.bf16.mxu0 0
    %1544 = vmatpush1.bf16.msra.mxu0 0
    %1545 = vmatprep.subr.bf16.mxu0 0
    %1546 = vmatpush1.bf16.msra.mxu0 0
    %1547 = vmatprep.subr.bf16.mxu0 0
    %1548 = vmatpush1.bf16.msra.mxu0 0
    %1549 = vmatprep.subr.bf16.mxu0 0
    %1550 = vmatpush1.bf16.msra.mxu0 0
    %1551 = vmatprep.subr.bf16.mxu0 0
    %1552 = vmatpush1.bf16.msra.mxu0 0
    %1553 = vmatprep.mubr.bf16.mxu0 0
    %1554 = vmatmul.mubr.bf16.gmra.mrb[0].mxu0 %v1519
    %v1555 = vpop.f32.mrb[0].mxu0
    %v1556 = vadd.f32 %v1505, %v1555
    %v1557 = vpop.f32.mrb[0].mxu0
    %v1558 = vpop.f32.mrb[0].mxu0
    %v1559 = vadd.f32 %v1505, %v1558
    %v1560 = vpop.f32.mrb[0].mxu0
    %1561 = vdwg.mxu0
    %v1562 = vadd.f32 %v786, %v1556
    %v1563 = vadd.f32 %v787, %v1559
    %v1564 = vld [vmem:[%s4 + $0xa] sm:$0x1]
    %v1565 = vld [vmem:[%s4 + $0xb] sm:$0x1]
    %v1566 = vsel %vm61, %v1562, 0.0
    %1567 = vadd.xlane.f32.xlu0 %v1566
    %v1568 = vpop.xlane.xlu0 %1567
    %v1569 = vsel %vm61, %v1563, 0.0
    %1570 = vadd.xlane.f32.xlu0 %v1569
    %v1571 = vpop.xlane.xlu0 %1570
    %v1572 = vmul.f32 %v1568, %v68
    %v1573 = vmul.f32 %v1571, %v68
    %v1574 = vsub.f32 %v1562, %v1572
    %v1575 = vsub.f32 %v1563, %v1573
    %v1576 = vmul.f32 %v1574, %v1574
    %v1577 = vmul.f32 %v1575, %v1575
    %v1578 = vsel %vm61, %v1576, 0.0
    %1579 = vadd.xlane.f32.xlu0 %v1578
    %v1580 = vpop.xlane.xlu0 %1579
    %v1581 = vsel %vm61, %v1577, 0.0
    %1582 = vadd.xlane.f32.xlu0 %v1581
    %v1583 = vpop.xlane.xlu0 %1582
    %v1584 = vmul.f32 %v1580, 0.032258064
    %v1585 = vmul.f32 %v1583, 0.032258064
    %v1586 = vlaneseq
    %v1587 = vshrl.u32 %v1586, 7
    %v1588 = vsub.s32 0, %v1587
    %v1589 = vrot.slane %v1564, %v1588
    %v1590 = vmul.f32 %v1589, %v1574
    %v1591 = vmul.f32 %v1589, %v1575
    %v1592 = vrsqrt.pop %v1584
    %v1593 = vmul.f32 %v1584, %v1592
    %vm1594 = vcmp.eq.f32.partialorder %v1584, inf
    %v1595 = vsel %vm1594, %v1584, %v1593
    %vm1596 = vcmp.eq.f32.partialorder %v1584, 0.0
    %v1597 = vand.u32 %v1584, 2147483648
    %v1598 = vsel %vm1596, %v1597, %v1595
    %v1599 = vrsqrt.pop %v1585
    %v1600 = vmul.f32 %v1585, %v1599
    %vm1601 = vcmp.eq.f32.partialorder %v1585, inf
    %v1602 = vsel %vm1601, %v1585, %v1600
    %vm1603 = vcmp.eq.f32.partialorder %v1585, 0.0
    %v1604 = vand.u32 %v1585, 2147483648
    %v1605 = vsel %vm1603, %v1604, %v1602
    %v1606 = vadd.f32 %v1598, 1e-06
    %v1607 = vadd.f32 %v1605, 1e-06
    %v1608 = vrcp.pop %v1606
    %v1609 = vmul.f32 %v1590, %v1608
    %v1610 = vrcp.pop %v1607
    %v1611 = vmul.f32 %v1591, %v1610
    %v1612 = vlaneseq
    %v1613 = vshrl.u32 %v1612, 7
    %v1614 = vsub.s32 0, %v1613
    %v1615 = vrot.slane %v1565, %v1614
    %v1616 = vadd.f32 %v1609, %v1615
    %v1617 = vadd.f32 %v1611, %v1615
    %v1618 = vpack.c.bf16 %v1617, %v1616
    %v1619 = vld [vmem:[#allocation6 + $0x40] sm:$0xf]
    %v1620 = vld [vmem:[#allocation6 + $0x44] sm:$0xf]
    %v1621 = vld [vmem:[#allocation6 + $0x48] sm:$0xf]
    %v1622 = vld [vmem:[#allocation6 + $0x4c] sm:$0xf]
    %v1623 = vld [vmem:[%s4 + $0x4] sm:$0x1]
    %v1624 = vlaneseq
    %v1625 = vshrl.u32 %v1624, 7
    %v1626 = vsub.s32 0, %v1625
    %v1627 = vrot.slane %v1623, %v1626
    %v1632 = vunpack.c.l.b16 %v1619
    %v1633 = vunpack.c.l.b16 %v1620
    %v1634 = vunpack.c.l.b16 %v1621
    %v1635 = vunpack.c.l.b16 %v1622
    %v1636 = vpack.c.b16 %v1633, %v1632
    %v1637 = vpack.c.b16 %v1635, %v1634
    %v1641 = vsel %vm61, %v1618, 0
    %1643 = vmatprep.subr.bf16.mxu0 0
    %1644 = vmatpush1.bf16.msra.mxu0 %v1636
    %1645 = vmatprep.subr.bf16.mxu0 0
    %1646 = vmatpush1.bf16.msra.mxu0 %v1637
    %1647 = vmatprep.subr.bf16.mxu0 0
    %1648 = vmatpush1.bf16.msra.mxu0 0
    %1649 = vmatprep.subr.bf16.mxu0 0
    %1650 = vmatpush1.bf16.msra.mxu0 0
    %1651 = vmatprep.subr.bf16.mxu0 0
    %1652 = vmatpush1.bf16.msra.mxu0 0
    %1653 = vmatprep.subr.bf16.mxu0 0
    %1654 = vmatpush1.bf16.msra.mxu0 0
    %1655 = vmatprep.subr.bf16.mxu0 0
    %1656 = vmatpush1.bf16.msra.mxu0 0
    %1657 = vmatprep.subr.bf16.mxu0 0
    %1658 = vmatpush1.bf16.msra.mxu0 0
    %1659 = vmatprep.subr.bf16.mxu0 0
    %1660 = vmatpush1.bf16.msra.mxu0 0
    %1661 = vmatprep.subr.bf16.mxu0 0
    %1662 = vmatpush1.bf16.msra.mxu0 0
    %1663 = vmatprep.subr.bf16.mxu0 0
    %1664 = vmatpush1.bf16.msra.mxu0 0
    %1665 = vmatprep.subr.bf16.mxu0 0
    %1666 = vmatpush1.bf16.msra.mxu0 0
    %1667 = vmatprep.subr.bf16.mxu0 0
    %1668 = vmatpush1.bf16.msra.mxu0 0
    %1669 = vmatprep.subr.bf16.mxu0 0
    %1670 = vmatpush1.bf16.msra.mxu0 0
    %1671 = vmatprep.subr.bf16.mxu0 0
    %1672 = vmatpush1.bf16.msra.mxu0 0
    %1673 = vmatprep.subr.bf16.mxu0 0
    %1674 = vmatpush1.bf16.msra.mxu0 0
    %1675 = vmatprep.mubr.bf16.mxu0 0
    %1676 = vmatmul.mubr.bf16.gmra.mrb[0].mxu0 %v1641
    %v1677 = vpop.f32.mrb[0].mxu0
    %v1678 = vadd.f32 %v1627, %v1677
    %v1679 = vpop.f32.mrb[0].mxu0
    %v1680 = vpop.f32.mrb[0].mxu0
    %v1681 = vadd.f32 %v1627, %v1680
    %v1682 = vpop.f32.mrb[0].mxu0
    %1683 = vdwg.mxu0
    %v1684 = vmax.f32 %v1678, 0.0
    %v1685 = vmax.f32 %v1681, 0.0
    %v1686 = vpack.c.bf16 %v1685, %v1684
    %v1687 = vld [vmem:[#allocation6 + $0x50] sm:$0xf]
    %v1688 = vld [vmem:[#allocation6 + $0x54] sm:$0xf]
    %v1689 = vld [vmem:[#allocation6 + $0x58] sm:$0xf]
    %v1690 = vld [vmem:[#allocation6 + $0x5c] sm:$0xf]
    %v1691 = vld [vmem:[#allocation6 + $0x60] sm:$0xf]
    %v1692 = vld [vmem:[#allocation6 + $0x64] sm:$0xf]
    %v1693 = vld [vmem:[#allocation6 + $0x68] sm:$0xf]
    %v1694 = vld [vmem:[#allocation6 + $0x6c] sm:$0xf]
    %v1703 = vunpack.c.l.b16 %v1687
    %v1704 = vunpack.c.l.b16 %v1688
    %v1705 = vunpack.c.l.b16 %v1689
    %v1706 = vunpack.c.l.b16 %v1690
    %v1707 = vunpack.c.l.b16 %v1691
    %v1708 = vunpack.c.l.b16 %v1692
    %v1709 = vunpack.c.l.b16 %v1693
    %v1710 = vunpack.c.l.b16 %v1694
    %v1711 = vpack.c.b16 %v1704, %v1703
    %v1712 = vpack.c.b16 %v1706, %v1705
    %v1713 = vpack.c.b16 %v1708, %v1707
    %v1714 = vpack.c.b16 %v1710, %v1709
    %vm1719 = vcmask 523264
    %v1721 = vsel %vm1719, %v1686, 0
    %1723 = vmatprep.subr.bf16.mxu0 0
    %1724 = vmatpush1.bf16.msra.mxu0 %v1711
    %1725 = vmatprep.subr.bf16.mxu0 0
    %1726 = vmatpush1.bf16.msra.mxu0 %v1712
    %1727 = vmatprep.subr.bf16.mxu0 0
    %1728 = vmatpush1.bf16.msra.mxu0 %v1713
    %1729 = vmatprep.subr.bf16.mxu0 0
    %1730 = vmatpush1.bf16.msra.mxu0 %v1714
    %1731 = vmatprep.subr.bf16.mxu0 0
    %1732 = vmatpush1.bf16.msra.mxu0 0
    %1733 = vmatprep.subr.bf16.mxu0 0
    %1734 = vmatpush1.bf16.msra.mxu0 0
    %1735 = vmatprep.subr.bf16.mxu0 0
    %1736 = vmatpush1.bf16.msra.mxu0 0
    %1737 = vmatprep.subr.bf16.mxu0 0
    %1738 = vmatpush1.bf16.msra.mxu0 0
    %1739 = vmatprep.subr.bf16.mxu0 0
    %1740 = vmatpush1.bf16.msra.mxu0 0
    %1741 = vmatprep.subr.bf16.mxu0 0
    %1742 = vmatpush1.bf16.msra.mxu0 0
    %1743 = vmatprep.subr.bf16.mxu0 0
    %1744 = vmatpush1.bf16.msra.mxu0 0
    %1745 = vmatprep.subr.bf16.mxu0 0
    %1746 = vmatpush1.bf16.msra.mxu0 0
    %1747 = vmatprep.subr.bf16.mxu0 0
    %1748 = vmatpush1.bf16.msra.mxu0 0
    %1749 = vmatprep.subr.bf16.mxu0 0
    %1750 = vmatpush1.bf16.msra.mxu0 0
    %1751 = vmatprep.subr.bf16.mxu0 0
    %1752 = vmatpush1.bf16.msra.mxu0 0
    %1753 = vmatprep.subr.bf16.mxu0 0
    %1754 = vmatpush1.bf16.msra.mxu0 0
    %1755 = vmatprep.mubr.bf16.mxu0 0
    %1756 = vmatmul.mubr.bf16.gmra.mrb[0].mxu0 %v1721
    %v1757 = vpop.f32.mrb[0].mxu0
    %v1758 = vadd.f32 0.0, %v1757
    %v1759 = vpop.f32.mrb[0].mxu0
    %v1760 = vpop.f32.mrb[0].mxu0
    %v1761 = vadd.f32 0.0, %v1760
    %v1762 = vpop.f32.mrb[0].mxu0
    %1763 = vdwg.mxu0
    %v1764 = vadd.f32 %v1562, %v1758
    %v1765 = vadd.f32 %v1563, %v1761
    %v1766 = vld [vmem:[%s4 + $0x5] sm:$0x1]
    %v1767 = vlaneseq
    %v1768 = vshrl.u32 %v1767, 7
    %v1769 = vsub.s32 0, %v1768
    %v1770 = vrot.slane %v1766, %v1769
    %v1771 = vadd.f32 %v1764, %v1770
    %v1772 = vadd.f32 %v1765, %v1770
    %v1773 = vld [vmem:[%s4 + $0x12] sm:$0x1]
    %v1774 = vld [vmem:[%s4 + $0x13] sm:$0x1]
    %v1775 = vsel %vm61, %v1771, 0.0
    %1776 = vadd.xlane.f32.xlu0 %v1775
    %v1777 = vpop.xlane.xlu0 %1776
    %v1778 = vsel %vm61, %v1772, 0.0
    %1779 = vadd.xlane.f32.xlu0 %v1778
    %v1780 = vpop.xlane.xlu0 %1779
    %v1781 = vmul.f32 %v1777, %v68
    %v1782 = vmul.f32 %v1780, %v68
    %v1783 = vsub.f32 %v1771, %v1781
    %v1784 = vsub.f32 %v1772, %v1782
    %v1785 = vmul.f32 %v1783, %v1783
    %v1786 = vmul.f32 %v1784, %v1784
    %v1787 = vsel %vm61, %v1785, 0.0
    %1788 = vadd.xlane.f32.xlu0 %v1787
    %v1789 = vpop.xlane.xlu0 %1788
    %v1790 = vsel %vm61, %v1786, 0.0
    %1791 = vadd.xlane.f32.xlu0 %v1790
    %v1792 = vpop.xlane.xlu0 %1791
    %v1793 = vmul.f32 %v1789, 0.032258064
    %v1794 = vmul.f32 %v1792, 0.032258064
    %v1795 = vlaneseq
    %v1796 = vshrl.u32 %v1795, 7
    %v1797 = vsub.s32 0, %v1796
    %v1798 = vrot.slane %v1773, %v1797
    %v1799 = vmul.f32 %v1798, %v1783
    %v1800 = vmul.f32 %v1798, %v1784
    %v1801 = vrsqrt.pop %v1793
    %v1802 = vmul.f32 %v1793, %v1801
    %vm1803 = vcmp.eq.f32.partialorder %v1793, inf
    %v1804 = vsel %vm1803, %v1793, %v1802
    %vm1805 = vcmp.eq.f32.partialorder %v1793, 0.0
    %v1806 = vand.u32 %v1793, 2147483648
    %v1807 = vsel %vm1805, %v1806, %v1804
    %v1808 = vrsqrt.pop %v1794
    %v1809 = vmul.f32 %v1794, %v1808
    %vm1810 = vcmp.eq.f32.partialorder %v1794, inf
    %v1811 = vsel %vm1810, %v1794, %v1809
    %vm1812 = vcmp.eq.f32.partialorder %v1794, 0.0
    %v1813 = vand.u32 %v1794, 2147483648
    %v1814 = vsel %vm1812, %v1813, %v1811
    %v1815 = vadd.f32 %v1807, 1e-06
    %v1816 = vadd.f32 %v1814, 1e-06
    %v1817 = vrcp.pop %v1815
    %v1818 = vmul.f32 %v1799, %v1817
    %v1819 = vrcp.pop %v1816
    %v1820 = vmul.f32 %v1800, %v1819
    %v1821 = vlaneseq
    %v1822 = vshrl.u32 %v1821, 7
    %v1823 = vsub.s32 0, %v1822
    %v1824 = vrot.slane %v1774, %v1823
    %v1825 = vadd.f32 %v1818, %v1824
    %v1826 = vadd.f32 %v1820, %v1824
    %v1827 = vpack.c.bf16 %v1826, %v1825
    %v1828 = vld [vmem:[#allocation6 + $0x70] sm:$0xf]
    %v1829 = vld [vmem:[#allocation6 + $0x74] sm:$0xf]
    %v1830 = vld [vmem:[#allocation6 + $0x78] sm:$0xf]
    %v1831 = vld [vmem:[#allocation6 + $0x7c] sm:$0xf]
    %v1832 = vld [vmem:[%s4 + $0xc] sm:$0x1]
    %v1833 = vlaneseq
    %v1834 = vshrl.u32 %v1833, 7
    %v1835 = vsub.s32 0, %v1834
    %v1836 = vrot.slane %v1832, %v1835
    %v1841 = vunpack.c.l.b16 %v1828
    %v1842 = vunpack.c.l.b16 %v1829
    %v1843 = vunpack.c.l.b16 %v1830
    %v1844 = vunpack.c.l.b16 %v1831
    %v1845 = vpack.c.b16 %v1842, %v1841
    %v1846 = vpack.c.b16 %v1844, %v1843
    %v1850 = vsel %vm61, %v1827, 0
    %1852 = vmatprep.subr.bf16.mxu0 0
    %1853 = vmatpush1.bf16.msra.mxu0 %v1845
    %1854 = vmatprep.subr.bf16.mxu0 0
    %1855 = vmatpush1.bf16.msra.mxu0 %v1846
    %1856 = vmatprep.subr.bf16.mxu0 0
    %1857 = vmatpush1.bf16.msra.mxu0 0
    %1858 = vmatprep.subr.bf16.mxu0 0
    %1859 = vmatpush1.bf16.msra.mxu0 0
    %1860 = vmatprep.subr.bf16.mxu0 0
    %1861 = vmatpush1.bf16.msra.mxu0 0
    %1862 = vmatprep.subr.bf16.mxu0 0
    %1863 = vmatpush1.bf16.msra.mxu0 0
    %1864 = vmatprep.subr.bf16.mxu0 0
    %1865 = vmatpush1.bf16.msra.mxu0 0
    %1866 = vmatprep.subr.bf16.mxu0 0
    %1867 = vmatpush1.bf16.msra.mxu0 0
    %1868 = vmatprep.subr.bf16.mxu0 0
    %1869 = vmatpush1.bf16.msra.mxu0 0
    %1870 = vmatprep.subr.bf16.mxu0 0
    %1871 = vmatpush1.bf16.msra.mxu0 0
    %1872 = vmatprep.subr.bf16.mxu0 0
    %1873 = vmatpush1.bf16.msra.mxu0 0
    %1874 = vmatprep.subr.bf16.mxu0 0
    %1875 = vmatpush1.bf16.msra.mxu0 0
    %1876 = vmatprep.subr.bf16.mxu0 0
    %1877 = vmatpush1.bf16.msra.mxu0 0
    %1878 = vmatprep.subr.bf16.mxu0 0
    %1879 = vmatpush1.bf16.msra.mxu0 0
    %1880 = vmatprep.subr.bf16.mxu0 0
    %1881 = vmatpush1.bf16.msra.mxu0 0
    %1882 = vmatprep.subr.bf16.mxu0 0
    %1883 = vmatpush1.bf16.msra.mxu0 0
    %1884 = vmatprep.mubr.bf16.mxu0 0
    %1885 = vmatmul.mubr.bf16.gmra.mrb[0].mxu0 %v1850
    %v1886 = vpop.f32.mrb[0].mxu0
    %v1887 = vadd.f32 %v1836, %v1886
    %v1888 = vpop.f32.mrb[0].mxu0
    %v1889 = vpop.f32.mrb[0].mxu0
    %v1890 = vadd.f32 %v1836, %v1889
    %v1891 = vpop.f32.mrb[0].mxu0
    %1892 = vdwg.mxu0
    %v1893 = vld [vmem:[#allocation6 + $0x90] sm:$0xf]
    %v1894 = vld [vmem:[#allocation6 + $0x94] sm:$0xf]
    %v1895 = vld [vmem:[#allocation6 + $0x98] sm:$0xf]
    %v1896 = vld [vmem:[#allocation6 + $0x9c] sm:$0xf]
    %v1897 = vld [vmem:[%s4 + $0xe] sm:$0x1]
    %v1898 = vpack.c.bf16 %v1890, %v1887
    %1900 = vrot.lane.b32.xlu0 %v1898, 96
    %v1901 = vpop.permute.xlu0 %1900
    %v1903 = vsel %vm190, %v1898, 0
    %v1906 = vsel %vm190, %v1901, 0
    %1908 = vmatprep.subr.bf16.mxu0 0
    %1909 = vmatpush1.bf16.xpose.msra.mxu0 %v1906
    %1910 = vmatprep.subr.bf16.mxu0 0
    %1911 = vmatpush1.bf16.xpose.msra.mxu0 0
    %1912 = vmatprep.subr.bf16.mxu0 0
    %1913 = vmatpush1.bf16.xpose.msra.mxu0 0
    %1914 = vmatprep.subr.bf16.mxu0 0
    %1915 = vmatpush1.bf16.xpose.msra.mxu0 0
    %1916 = vmatprep.subr.bf16.mxu0 0
    %1917 = vmatpush1.bf16.xpose.msra.mxu0 0
    %1918 = vmatprep.subr.bf16.mxu0 0
    %1919 = vmatpush1.bf16.xpose.msra.mxu0 0
    %1920 = vmatprep.subr.bf16.mxu0 0
    %1921 = vmatpush1.bf16.xpose.msra.mxu0 0
    %1922 = vmatprep.subr.bf16.mxu0 0
    %1923 = vmatpush1.bf16.xpose.msra.mxu0 0
    %1924 = vmatprep.subr.bf16.mxu0 0
    %1925 = vmatpush1.bf16.xpose.msra.mxu0 0
    %1926 = vmatprep.subr.bf16.mxu0 0
    %1927 = vmatpush1.bf16.xpose.msra.mxu0 0
    %1928 = vmatprep.subr.bf16.mxu0 0
    %1929 = vmatpush1.bf16.xpose.msra.mxu0 0
    %1930 = vmatprep.subr.bf16.mxu0 0
    %1931 = vmatpush1.bf16.xpose.msra.mxu0 0
    %1932 = vmatprep.subr.bf16.mxu0 0
    %1933 = vmatpush1.bf16.xpose.msra.mxu0 0
    %1934 = vmatprep.subr.bf16.mxu0 0
    %1935 = vmatpush1.bf16.xpose.msra.mxu0 0
    %1936 = vmatprep.subr.bf16.mxu0 0
    %1937 = vmatpush1.bf16.xpose.msra.mxu0 0
    %1938 = vmatprep.subr.bf16.mxu0 0
    %1939 = vmatpush1.bf16.xpose.msra.mxu0 0
    %1940 = vmatprep.mubr.bf16.mxu0 0
    %1941 = vmatmul.mubr.bf16.gmra.mrb[0].mxu0 %v1903
    %v1942 = vpop.f32.mrb[0].mxu0
    %v1943 = vadd.f32 0.0, %v1942
    %v1944 = vpop.f32.mrb[0].mxu0
    %v1945 = vpop.f32.mrb[0].mxu0
    %v1946 = vadd.f32 0.0, %v1945
    %v1947 = vpop.f32.mrb[0].mxu0
    %1948 = vdwg.mxu0
    %v1949 = vmul.f32 %v1943, 0.35355338
    %v1950 = vmul.f32 %v1946, 0.35355338
    %v1951 = vadd.f32 %v1949, %v55
    %v1952 = vadd.f32 %v1950, %v56
    %v1953 = vsel %vm242, %v1951, -inf
    %1954 = vmax.xlane.f32.xlu0 %v1953
    %v1955 = vpop.xlane.xlu0 %1954
    %v1956 = vsel %vm242, %v1952, -inf
    %1957 = vmax.xlane.f32.xlu0 %v1956
    %v1958 = vpop.xlane.xlu0 %1957
    %v1959 = vsub.f32 %v1951, %v1955
    %v1960 = vsub.f32 %v1952, %v1958
    %v1961 = vmul.f32 %v1959, 1.442695
    %v1962 = vpow.pop %v1961
    %v1963 = vmul.f32 %v1960, 1.442695
    %v1964 = vpow.pop %v1963
    %v1965 = vsel %vm242, %v1962, 0.0
    %1966 = vadd.xlane.f32.xlu0 %v1965
    %v1967 = vpop.xlane.xlu0 %1966
    %v1968 = vsel %vm242, %v1964, 0.0
    %1969 = vadd.xlane.f32.xlu0 %v1968
    %v1970 = vpop.xlane.xlu0 %1969
    %v1971 = vrcp.pop %v1967
    %v1972 = vmul.f32 %v1962, %v1971
    %v1973 = vrcp.pop %v1970
    %v1974 = vmul.f32 %v1964, %v1973
    %v1975 = vpack.c.bf16 %v1974, %v1972
    %1976 = vrot.lane.b32.xlu0 %v1898, 64
    %v1977 = vpop.permute.xlu0 %1976
    %v1980 = vsel %vm242, %v1975, 0
    %1982 = vmatprep.subr.bf16.mxu0 0
    %1983 = vmatpush1.bf16.msra.mxu0 %v1977
    %1984 = vmatprep.subr.bf16.mxu0 0
    %1985 = vmatpush1.bf16.msra.mxu0 0
    %1986 = vmatprep.subr.bf16.mxu0 0
    %1987 = vmatpush1.bf16.msra.mxu0 0
    %1988 = vmatprep.subr.bf16.mxu0 0
    %1989 = vmatpush1.bf16.msra.mxu0 0
    %1990 = vmatprep.subr.bf16.mxu0 0
    %1991 = vmatpush1.bf16.msra.mxu0 0
    %1992 = vmatprep.subr.bf16.mxu0 0
    %1993 = vmatpush1.bf16.msra.mxu0 0
    %1994 = vmatprep.subr.bf16.mxu0 0
    %1995 = vmatpush1.bf16.msra.mxu0 0
    %1996 = vmatprep.subr.bf16.mxu0 0
    %1997 = vmatpush1.bf16.msra.mxu0 0
    %1998 = vmatprep.subr.bf16.mxu0 0
    %1999 = vmatpush1.bf16.msra.mxu0 0
    %2000 = vmatprep.subr.bf16.mxu0 0
    %2001 = vmatpush1.bf16.msra.mxu0 0
    %2002 = vmatprep.subr.bf16.mxu0 0
    %2003 = vmatpush1.bf16.msra.mxu0 0
    %2004 = vmatprep.subr.bf16.mxu0 0
    %2005 = vmatpush1.bf16.msra.mxu0 0
    %2006 = vmatprep.subr.bf16.mxu0 0
    %2007 = vmatpush1.bf16.msra.mxu0 0
    %2008 = vmatprep.subr.bf16.mxu0 0
    %2009 = vmatpush1.bf16.msra.mxu0 0
    %2010 = vmatprep.subr.bf16.mxu0 0
    %2011 = vmatpush1.bf16.msra.mxu0 0
    %2012 = vmatprep.subr.bf16.mxu0 0
    %2013 = vmatpush1.bf16.msra.mxu0 0
    %2014 = vmatprep.mubr.bf16.mxu0 0
    %2015 = vmatmul.mubr.bf16.gmra.mrb[0].mxu0 %v1980
    %v2016 = vpop.f32.mrb[0].mxu0
    %v2017 = vadd.f32 0.0, %v2016
    %v2018 = vpop.f32.mrb[0].mxu0
    %v2019 = vpop.f32.mrb[0].mxu0
    %v2020 = vadd.f32 0.0, %v2019
    %v2021 = vpop.f32.mrb[0].mxu0
    %2022 = vdwg.mxu0
    %2023 = vst.msk [vmem:[#allocation2] sm:$0xff] %vm190, %v2017
    %2024 = vst.msk [vmem:[#allocation2 + $0x8] sm:$0xff] %vm190, %v2020
    %2025 = vrot.lane.b32.xlu0 %v1898, 120
    %v2026 = vpop.permute.xlu0 %2025
    %2027 = vrot.lane.b32.xlu0 %v1898, 88
    %v2028 = vpop.permute.xlu0 %2027
    %v2030 = vsel %vm190, %v2026, 0
    %v2033 = vsel %vm190, %v2028, 0
    %2035 = vmatprep.subr.bf16.mxu0 0
    %2036 = vmatpush1.bf16.xpose.msra.mxu0 %v2033
    %2037 = vmatprep.subr.bf16.mxu0 0
    %2038 = vmatpush1.bf16.xpose.msra.mxu0 0
    %2039 = vmatprep.subr.bf16.mxu0 0
    %2040 = vmatpush1.bf16.xpose.msra.mxu0 0
    %2041 = vmatprep.subr.bf16.mxu0 0
    %2042 = vmatpush1.bf16.xpose.msra.mxu0 0
    %2043 = vmatprep.subr.bf16.mxu0 0
    %2044 = vmatpush1.bf16.xpose.msra.mxu0 0
    %2045 = vmatprep.subr.bf16.mxu0 0
    %2046 = vmatpush1.bf16.xpose.msra.mxu0 0
    %2047 = vmatprep.subr.bf16.mxu0 0
    %2048 = vmatpush1.bf16.xpose.msra.mxu0 0
    %2049 = vmatprep.subr.bf16.mxu0 0
    %2050 = vmatpush1.bf16.xpose.msra.mxu0 0
    %2051 = vmatprep.subr.bf16.mxu0 0
    %2052 = vmatpush1.bf16.xpose.msra.mxu0 0
    %2053 = vmatprep.subr.bf16.mxu0 0
    %2054 = vmatpush1.bf16.xpose.msra.mxu0 0
    %2055 = vmatprep.subr.bf16.mxu0 0
    %2056 = vmatpush1.bf16.xpose.msra.mxu0 0
    %2057 = vmatprep.subr.bf16.mxu0 0
    %2058 = vmatpush1.bf16.xpose.msra.mxu0 0
    %2059 = vmatprep.subr.bf16.mxu0 0
    %2060 = vmatpush1.bf16.xpose.msra.mxu0 0
    %2061 = vmatprep.subr.bf16.mxu0 0
    %2062 = vmatpush1.bf16.xpose.msra.mxu0 0
    %2063 = vmatprep.subr.bf16.mxu0 0
    %2064 = vmatpush1.bf16.xpose.msra.mxu0 0
    %2065 = vmatprep.subr.bf16.mxu0 0
    %2066 = vmatpush1.bf16.xpose.msra.mxu0 0
    %2067 = vmatprep.mubr.bf16.mxu0 0
    %2068 = vmatmul.mubr.bf16.gmra.mrb[0].mxu0 %v2030
    %v2069 = vpop.f32.mrb[0].mxu0
    %v2070 = vadd.f32 0.0, %v2069
    %v2071 = vpop.f32.mrb[0].mxu0
    %v2072 = vpop.f32.mrb[0].mxu0
    %v2073 = vadd.f32 0.0, %v2072
    %v2074 = vpop.f32.mrb[0].mxu0
    %2075 = vdwg.mxu0
    %v2076 = vmul.f32 %v2070, 0.35355338
    %v2077 = vmul.f32 %v2073, 0.35355338
    %v2078 = vadd.f32 %v2076, %v55
    %v2079 = vadd.f32 %v2077, %v56
    %v2080 = vsel %vm242, %v2078, -inf
    %2081 = vmax.xlane.f32.xlu0 %v2080
    %v2082 = vpop.xlane.xlu0 %2081
    %v2083 = vsel %vm242, %v2079, -inf
    %2084 = vmax.xlane.f32.xlu0 %v2083
    %v2085 = vpop.xlane.xlu0 %2084
    %v2086 = vsub.f32 %v2078, %v2082
    %v2087 = vsub.f32 %v2079, %v2085
    %v2088 = vmul.f32 %v2086, 1.442695
    %v2089 = vpow.pop %v2088
    %v2090 = vmul.f32 %v2087, 1.442695
    %v2091 = vpow.pop %v2090
    %v2092 = vsel %vm242, %v2089, 0.0
    %2093 = vadd.xlane.f32.xlu0 %v2092
    %v2094 = vpop.xlane.xlu0 %2093
    %v2095 = vsel %vm242, %v2091, 0.0
    %2096 = vadd.xlane.f32.xlu0 %v2095
    %v2097 = vpop.xlane.xlu0 %2096
    %v2098 = vrcp.pop %v2094
    %v2099 = vmul.f32 %v2089, %v2098
    %v2100 = vrcp.pop %v2097
    %v2101 = vmul.f32 %v2091, %v2100
    %v2102 = vpack.c.bf16 %v2101, %v2099
    %2103 = vrot.lane.b32.xlu0 %v1898, 56
    %v2104 = vpop.permute.xlu0 %2103
    %v2107 = vsel %vm242, %v2102, 0
    %2109 = vmatprep.subr.bf16.mxu0 0
    %2110 = vmatpush1.bf16.msra.mxu0 %v2104
    %2111 = vmatprep.subr.bf16.mxu0 0
    %2112 = vmatpush1.bf16.msra.mxu0 0
    %2113 = vmatprep.subr.bf16.mxu0 0
    %2114 = vmatpush1.bf16.msra.mxu0 0
    %2115 = vmatprep.subr.bf16.mxu0 0
    %2116 = vmatpush1.bf16.msra.mxu0 0
    %2117 = vmatprep.subr.bf16.mxu0 0
    %2118 = vmatpush1.bf16.msra.mxu0 0
    %2119 = vmatprep.subr.bf16.mxu0 0
    %2120 = vmatpush1.bf16.msra.mxu0 0
    %2121 = vmatprep.subr.bf16.mxu0 0
    %2122 = vmatpush1.bf16.msra.mxu0 0
    %2123 = vmatprep.subr.bf16.mxu0 0
    %2124 = vmatpush1.bf16.msra.mxu0 0
    %2125 = vmatprep.subr.bf16.mxu0 0
    %2126 = vmatpush1.bf16.msra.mxu0 0
    %2127 = vmatprep.subr.bf16.mxu0 0
    %2128 = vmatpush1.bf16.msra.mxu0 0
    %2129 = vmatprep.subr.bf16.mxu0 0
    %2130 = vmatpush1.bf16.msra.mxu0 0
    %2131 = vmatprep.subr.bf16.mxu0 0
    %2132 = vmatpush1.bf16.msra.mxu0 0
    %2133 = vmatprep.subr.bf16.mxu0 0
    %2134 = vmatpush1.bf16.msra.mxu0 0
    %2135 = vmatprep.subr.bf16.mxu0 0
    %2136 = vmatpush1.bf16.msra.mxu0 0
    %2137 = vmatprep.subr.bf16.mxu0 0
    %2138 = vmatpush1.bf16.msra.mxu0 0
    %2139 = vmatprep.subr.bf16.mxu0 0
    %2140 = vmatpush1.bf16.msra.mxu0 0
    %2141 = vmatprep.mubr.bf16.mxu0 0
    %2142 = vmatmul.mubr.bf16.gmra.mrb[0].mxu0 %v2107
    %v2143 = vpop.f32.mrb[0].mxu0
    %v2144 = vadd.f32 0.0, %v2143
    %v2145 = vpop.f32.mrb[0].mxu0
    %v2146 = vpop.f32.mrb[0].mxu0
    %v2147 = vadd.f32 0.0, %v2146
    %v2148 = vpop.f32.mrb[0].mxu0
    %2149 = vdwg.mxu0
    %2152 = vrot.lane.b32.xlu0 %v2144, 8
    %v2153 = vpop.permute.xlu0 %2152
    %2154 = vrot.lane.b32.xlu0 %v2147, 8
    %v2155 = vpop.permute.xlu0 %2154
    %2158 = vst.msk [vmem:[#allocation2] sm:$0xff] %vm448, %v2153
    %2159 = vst.msk [vmem:[#allocation2 + $0x8] sm:$0xff] %vm448, %v2155
    %2160 = vrot.lane.b32.xlu0 %v1898, 112
    %v2161 = vpop.permute.xlu0 %2160
    %2162 = vrot.lane.b32.xlu0 %v1898, 80
    %v2163 = vpop.permute.xlu0 %2162
    %v2165 = vsel %vm190, %v2161, 0
    %v2168 = vsel %vm190, %v2163, 0
    %2170 = vmatprep.subr.bf16.mxu0 0
    %2171 = vmatpush1.bf16.xpose.msra.mxu0 %v2168
    %2172 = vmatprep.subr.bf16.mxu0 0
    %2173 = vmatpush1.bf16.xpose.msra.mxu0 0
    %2174 = vmatprep.subr.bf16.mxu0 0
    %2175 = vmatpush1.bf16.xpose.msra.mxu0 0
    %2176 = vmatprep.subr.bf16.mxu0 0
    %2177 = vmatpush1.bf16.xpose.msra.mxu0 0
    %2178 = vmatprep.subr.bf16.mxu0 0
    %2179 = vmatpush1.bf16.xpose.msra.mxu0 0
    %2180 = vmatprep.subr.bf16.mxu0 0
    %2181 = vmatpush1.bf16.xpose.msra.mxu0 0
    %2182 = vmatprep.subr.bf16.mxu0 0
    %2183 = vmatpush1.bf16.xpose.msra.mxu0 0
    %2184 = vmatprep.subr.bf16.mxu0 0
    %2185 = vmatpush1.bf16.xpose.msra.mxu0 0
    %2186 = vmatprep.subr.bf16.mxu0 0
    %2187 = vmatpush1.bf16.xpose.msra.mxu0 0
    %2188 = vmatprep.subr.bf16.mxu0 0
    %2189 = vmatpush1.bf16.xpose.msra.mxu0 0
    %2190 = vmatprep.subr.bf16.mxu0 0
    %2191 = vmatpush1.bf16.xpose.msra.mxu0 0
    %2192 = vmatprep.subr.bf16.mxu0 0
    %2193 = vmatpush1.bf16.xpose.msra.mxu0 0
    %2194 = vmatprep.subr.bf16.mxu0 0
    %2195 = vmatpush1.bf16.xpose.msra.mxu0 0
    %2196 = vmatprep.subr.bf16.mxu0 0
    %2197 = vmatpush1.bf16.xpose.msra.mxu0 0
    %2198 = vmatprep.subr.bf16.mxu0 0
    %2199 = vmatpush1.bf16.xpose.msra.mxu0 0
    %2200 = vmatprep.subr.bf16.mxu0 0
    %2201 = vmatpush1.bf16.xpose.msra.mxu0 0
    %2202 = vmatprep.mubr.bf16.mxu0 0
    %2203 = vmatmul.mubr.bf16.gmra.mrb[0].mxu0 %v2165
    %v2204 = vpop.f32.mrb[0].mxu0
    %v2205 = vadd.f32 0.0, %v2204
    %v2206 = vpop.f32.mrb[0].mxu0
    %v2207 = vpop.f32.mrb[0].mxu0
    %v2208 = vadd.f32 0.0, %v2207
    %v2209 = vpop.f32.mrb[0].mxu0
    %2210 = vdwg.mxu0
    %v2211 = vmul.f32 %v2205, 0.35355338
    %v2212 = vmul.f32 %v2208, 0.35355338
    %v2213 = vadd.f32 %v2211, %v55
    %v2214 = vadd.f32 %v2212, %v56
    %v2215 = vsel %vm242, %v2213, -inf
    %2216 = vmax.xlane.f32.xlu0 %v2215
    %v2217 = vpop.xlane.xlu0 %2216
    %v2218 = vsel %vm242, %v2214, -inf
    %2219 = vmax.xlane.f32.xlu0 %v2218
    %v2220 = vpop.xlane.xlu0 %2219
    %v2221 = vsub.f32 %v2213, %v2217
    %v2222 = vsub.f32 %v2214, %v2220
    %v2223 = vmul.f32 %v2221, 1.442695
    %v2224 = vpow.pop %v2223
    %v2225 = vmul.f32 %v2222, 1.442695
    %v2226 = vpow.pop %v2225
    %v2227 = vsel %vm242, %v2224, 0.0
    %2228 = vadd.xlane.f32.xlu0 %v2227
    %v2229 = vpop.xlane.xlu0 %2228
    %v2230 = vsel %vm242, %v2226, 0.0
    %2231 = vadd.xlane.f32.xlu0 %v2230
    %v2232 = vpop.xlane.xlu0 %2231
    %v2233 = vrcp.pop %v2229
    %v2234 = vmul.f32 %v2224, %v2233
    %v2235 = vrcp.pop %v2232
    %v2236 = vmul.f32 %v2226, %v2235
    %v2237 = vpack.c.bf16 %v2236, %v2234
    %2238 = vrot.lane.b32.xlu0 %v1898, 48
    %v2239 = vpop.permute.xlu0 %2238
    %v2242 = vsel %vm242, %v2237, 0
    %2244 = vmatprep.subr.bf16.mxu0 0
    %2245 = vmatpush1.bf16.msra.mxu0 %v2239
    %2246 = vmatprep.subr.bf16.mxu0 0
    %2247 = vmatpush1.bf16.msra.mxu0 0
    %2248 = vmatprep.subr.bf16.mxu0 0
    %2249 = vmatpush1.bf16.msra.mxu0 0
    %2250 = vmatprep.subr.bf16.mxu0 0
    %2251 = vmatpush1.bf16.msra.mxu0 0
    %2252 = vmatprep.subr.bf16.mxu0 0
    %2253 = vmatpush1.bf16.msra.mxu0 0
    %2254 = vmatprep.subr.bf16.mxu0 0
    %2255 = vmatpush1.bf16.msra.mxu0 0
    %2256 = vmatprep.subr.bf16.mxu0 0
    %2257 = vmatpush1.bf16.msra.mxu0 0
    %2258 = vmatprep.subr.bf16.mxu0 0
    %2259 = vmatpush1.bf16.msra.mxu0 0
    %2260 = vmatprep.subr.bf16.mxu0 0
    %2261 = vmatpush1.bf16.msra.mxu0 0
    %2262 = vmatprep.subr.bf16.mxu0 0
    %2263 = vmatpush1.bf16.msra.mxu0 0
    %2264 = vmatprep.subr.bf16.mxu0 0
    %2265 = vmatpush1.bf16.msra.mxu0 0
    %2266 = vmatprep.subr.bf16.mxu0 0
    %2267 = vmatpush1.bf16.msra.mxu0 0
    %2268 = vmatprep.subr.bf16.mxu0 0
    %2269 = vmatpush1.bf16.msra.mxu0 0
    %2270 = vmatprep.subr.bf16.mxu0 0
    %2271 = vmatpush1.bf16.msra.mxu0 0
    %2272 = vmatprep.subr.bf16.mxu0 0
    %2273 = vmatpush1.bf16.msra.mxu0 0
    %2274 = vmatprep.subr.bf16.mxu0 0
    %2275 = vmatpush1.bf16.msra.mxu0 0
    %2276 = vmatprep.mubr.bf16.mxu0 0
    %2277 = vmatmul.mubr.bf16.gmra.mrb[0].mxu0 %v2242
    %v2278 = vpop.f32.mrb[0].mxu0
    %v2279 = vadd.f32 0.0, %v2278
    %v2280 = vpop.f32.mrb[0].mxu0
    %v2281 = vpop.f32.mrb[0].mxu0
    %v2282 = vadd.f32 0.0, %v2281
    %v2283 = vpop.f32.mrb[0].mxu0
    %2284 = vdwg.mxu0
    %2287 = vrot.lane.b32.xlu0 %v2279, 16
    %v2288 = vpop.permute.xlu0 %2287
    %2289 = vrot.lane.b32.xlu0 %v2282, 16
    %v2290 = vpop.permute.xlu0 %2289
    %2293 = vst.msk [vmem:[#allocation2] sm:$0xff] %vm584, %v2288
    %2294 = vst.msk [vmem:[#allocation2 + $0x8] sm:$0xff] %vm584, %v2290
    %2295 = vrot.lane.b32.xlu0 %v1898, 104
    %v2296 = vpop.permute.xlu0 %2295
    %2297 = vrot.lane.b32.xlu0 %v1898, 72
    %v2298 = vpop.permute.xlu0 %2297
    %v2300 = vsel %vm190, %v2296, 0
    %v2303 = vsel %vm190, %v2298, 0
    %2305 = vmatprep.subr.bf16.mxu0 0
    %2306 = vmatpush1.bf16.xpose.msra.mxu0 %v2303
    %2307 = vmatprep.subr.bf16.mxu0 0
    %2308 = vmatpush1.bf16.xpose.msra.mxu0 0
    %2309 = vmatprep.subr.bf16.mxu0 0
    %2310 = vmatpush1.bf16.xpose.msra.mxu0 0
    %2311 = vmatprep.subr.bf16.mxu0 0
    %2312 = vmatpush1.bf16.xpose.msra.mxu0 0
    %2313 = vmatprep.subr.bf16.mxu0 0
    %2314 = vmatpush1.bf16.xpose.msra.mxu0 0
    %2315 = vmatprep.subr.bf16.mxu0 0
    %2316 = vmatpush1.bf16.xpose.msra.mxu0 0
    %2317 = vmatprep.subr.bf16.mxu0 0
    %2318 = vmatpush1.bf16.xpose.msra.mxu0 0
    %2319 = vmatprep.subr.bf16.mxu0 0
    %2320 = vmatpush1.bf16.xpose.msra.mxu0 0
    %2321 = vmatprep.subr.bf16.mxu0 0
    %2322 = vmatpush1.bf16.xpose.msra.mxu0 0
    %2323 = vmatprep.subr.bf16.mxu0 0
    %2324 = vmatpush1.bf16.xpose.msra.mxu0 0
    %2325 = vmatprep.subr.bf16.mxu0 0
    %2326 = vmatpush1.bf16.xpose.msra.mxu0 0
    %2327 = vmatprep.subr.bf16.mxu0 0
    %2328 = vmatpush1.bf16.xpose.msra.mxu0 0
    %2329 = vmatprep.subr.bf16.mxu0 0
    %2330 = vmatpush1.bf16.xpose.msra.mxu0 0
    %2331 = vmatprep.subr.bf16.mxu0 0
    %2332 = vmatpush1.bf16.xpose.msra.mxu0 0
    %2333 = vmatprep.subr.bf16.mxu0 0
    %2334 = vmatpush1.bf16.xpose.msra.mxu0 0
    %2335 = vmatprep.subr.bf16.mxu0 0
    %2336 = vmatpush1.bf16.xpose.msra.mxu0 0
    %2337 = vmatprep.mubr.bf16.mxu0 0
    %2338 = vmatmul.mubr.bf16.gmra.mrb[0].mxu0 %v2300
    %v2339 = vpop.f32.mrb[0].mxu0
    %v2340 = vadd.f32 0.0, %v2339
    %v2341 = vpop.f32.mrb[0].mxu0
    %v2342 = vpop.f32.mrb[0].mxu0
    %v2343 = vadd.f32 0.0, %v2342
    %v2344 = vpop.f32.mrb[0].mxu0
    %2345 = vdwg.mxu0
    %v2346 = vmul.f32 %v2340, 0.35355338
    %v2347 = vmul.f32 %v2343, 0.35355338
    %v2348 = vadd.f32 %v2346, %v55
    %v2349 = vadd.f32 %v2347, %v56
    %v2350 = vsel %vm242, %v2348, -inf
    %2351 = vmax.xlane.f32.xlu0 %v2350
    %v2352 = vpop.xlane.xlu0 %2351
    %v2353 = vsel %vm242, %v2349, -inf
    %2354 = vmax.xlane.f32.xlu0 %v2353
    %v2355 = vpop.xlane.xlu0 %2354
    %v2356 = vsub.f32 %v2348, %v2352
    %v2357 = vsub.f32 %v2349, %v2355
    %v2358 = vmul.f32 %v2356, 1.442695
    %v2359 = vpow.pop %v2358
    %v2360 = vmul.f32 %v2357, 1.442695
    %v2361 = vpow.pop %v2360
    %v2362 = vsel %vm242, %v2359, 0.0
    %2363 = vadd.xlane.f32.xlu0 %v2362
    %v2364 = vpop.xlane.xlu0 %2363
    %v2365 = vsel %vm242, %v2361, 0.0
    %2366 = vadd.xlane.f32.xlu0 %v2365
    %v2367 = vpop.xlane.xlu0 %2366
    %v2368 = vrcp.pop %v2364
    %v2369 = vmul.f32 %v2359, %v2368
    %v2370 = vrcp.pop %v2367
    %v2371 = vmul.f32 %v2361, %v2370
    %v2372 = vpack.c.bf16 %v2371, %v2369
    %2373 = vrot.lane.b32.xlu0 %v1898, 40
    %v2374 = vpop.permute.xlu0 %2373
    %v2377 = vsel %vm242, %v2372, 0
    %2379 = vmatprep.subr.bf16.mxu0 0
    %2380 = vmatpush1.bf16.msra.mxu0 %v2374
    %2381 = vmatprep.subr.bf16.mxu0 0
    %2382 = vmatpush1.bf16.msra.mxu0 0
    %2383 = vmatprep.subr.bf16.mxu0 0
    %2384 = vmatpush1.bf16.msra.mxu0 0
    %2385 = vmatprep.subr.bf16.mxu0 0
    %2386 = vmatpush1.bf16.msra.mxu0 0
    %2387 = vmatprep.subr.bf16.mxu0 0
    %2388 = vmatpush1.bf16.msra.mxu0 0
    %2389 = vmatprep.subr.bf16.mxu0 0
    %2390 = vmatpush1.bf16.msra.mxu0 0
    %2391 = vmatprep.subr.bf16.mxu0 0
    %2392 = vmatpush1.bf16.msra.mxu0 0
    %2393 = vmatprep.subr.bf16.mxu0 0
    %2394 = vmatpush1.bf16.msra.mxu0 0
    %2395 = vmatprep.subr.bf16.mxu0 0
    %2396 = vmatpush1.bf16.msra.mxu0 0
    %2397 = vmatprep.subr.bf16.mxu0 0
    %2398 = vmatpush1.bf16.msra.mxu0 0
    %2399 = vmatprep.subr.bf16.mxu0 0
    %2400 = vmatpush1.bf16.msra.mxu0 0
    %2401 = vmatprep.subr.bf16.mxu0 0
    %2402 = vmatpush1.bf16.msra.mxu0 0
    %2403 = vmatprep.subr.bf16.mxu0 0
    %2404 = vmatpush1.bf16.msra.mxu0 0
    %2405 = vmatprep.subr.bf16.mxu0 0
    %2406 = vmatpush1.bf16.msra.mxu0 0
    %2407 = vmatprep.subr.bf16.mxu0 0
    %2408 = vmatpush1.bf16.msra.mxu0 0
    %2409 = vmatprep.subr.bf16.mxu0 0
    %2410 = vmatpush1.bf16.msra.mxu0 0
    %2411 = vmatprep.mubr.bf16.mxu0 0
    %2412 = vmatmul.mubr.bf16.gmra.mrb[0].mxu0 %v2377
    %v2413 = vpop.f32.mrb[0].mxu0
    %v2414 = vadd.f32 0.0, %v2413
    %v2415 = vpop.f32.mrb[0].mxu0
    %v2416 = vpop.f32.mrb[0].mxu0
    %v2417 = vadd.f32 0.0, %v2416
    %v2418 = vpop.f32.mrb[0].mxu0
    %2419 = vdwg.mxu0
    %2422 = vrot.lane.b32.xlu0 %v2414, 24
    %v2423 = vpop.permute.xlu0 %2422
    %2424 = vrot.lane.b32.xlu0 %v2417, 24
    %v2425 = vpop.permute.xlu0 %2424
    %2428 = vst.msk [vmem:[#allocation2] sm:$0xff] %vm720, %v2423
    %2429 = vst.msk [vmem:[#allocation2 + $0x8] sm:$0xff] %vm720, %v2425
    %v2430 = vld [vmem:[#allocation2] sm:$0xff]
    %v2431 = vld [vmem:[#allocation2 + $0x8] sm:$0xff]
    %v2432 = vpack.c.bf16 %v2431, %v2430
    %v2433 = vlaneseq
    %v2434 = vshrl.u32 %v2433, 7
    %v2435 = vsub.s32 0, %v2434
    %v2436 = vrot.slane %v1897, %v2435
    %v2441 = vunpack.c.l.b16 %v1893
    %v2442 = vunpack.c.l.b16 %v1894
    %v2443 = vunpack.c.l.b16 %v1895
    %v2444 = vunpack.c.l.b16 %v1896
    %v2445 = vpack.c.b16 %v2442, %v2441
    %v2446 = vpack.c.b16 %v2444, %v2443
    %v2450 = vsel %vm61, %v2432, 0
    %2452 = vmatprep.subr.bf16.mxu0 0
    %2453 = vmatpush1.bf16.msra.mxu0 %v2445
    %2454 = vmatprep.subr.bf16.mxu0 0
    %2455 = vmatpush1.bf16.msra.mxu0 %v2446
    %2456 = vmatprep.subr.bf16.mxu0 0
    %2457 = vmatpush1.bf16.msra.mxu0 0
    %2458 = vmatprep.subr.bf16.mxu0 0
    %2459 = vmatpush1.bf16.msra.mxu0 0
    %2460 = vmatprep.subr.bf16.mxu0 0
    %2461 = vmatpush1.bf16.msra.mxu0 0
    %2462 = vmatprep.subr.bf16.mxu0 0
    %2463 = vmatpush1.bf16.msra.mxu0 0
    %2464 = vmatprep.subr.bf16.mxu0 0
    %2465 = vmatpush1.bf16.msra.mxu0 0
    %2466 = vmatprep.subr.bf16.mxu0 0
    %2467 = vmatpush1.bf16.msra.mxu0 0
    %2468 = vmatprep.subr.bf16.mxu0 0
    %2469 = vmatpush1.bf16.msra.mxu0 0
    %2470 = vmatprep.subr.bf16.mxu0 0
    %2471 = vmatpush1.bf16.msra.mxu0 0
    %2472 = vmatprep.subr.bf16.mxu0 0
    %2473 = vmatpush1.bf16.msra.mxu0 0
    %2474 = vmatprep.subr.bf16.mxu0 0
    %2475 = vmatpush1.bf16.msra.mxu0 0
    %2476 = vmatprep.subr.bf16.mxu0 0
    %2477 = vmatpush1.bf16.msra.mxu0 0
    %2478 = vmatprep.subr.bf16.mxu0 0
    %2479 = vmatpush1.bf16.msra.mxu0 0
    %2480 = vmatprep.subr.bf16.mxu0 0
    %2481 = vmatpush1.bf16.msra.mxu0 0
    %2482 = vmatprep.subr.bf16.mxu0 0
    %2483 = vmatpush1.bf16.msra.mxu0 0
    %2484 = vmatprep.mubr.bf16.mxu0 0
    %2485 = vmatmul.mubr.bf16.gmra.mrb[0].mxu0 %v2450
    %v2486 = vpop.f32.mrb[0].mxu0
    %v2487 = vadd.f32 %v2436, %v2486
    %v2488 = vpop.f32.mrb[0].mxu0
    %v2489 = vpop.f32.mrb[0].mxu0
    %v2490 = vadd.f32 %v2436, %v2489
    %v2491 = vpop.f32.mrb[0].mxu0
    %2492 = vdwg.mxu0
    %v2493 = vadd.f32 %v1771, %v2487
    %v2494 = vadd.f32 %v1772, %v2490
    %v2495 = vld [vmem:[%s4 + $0x14] sm:$0x1]
    %v2496 = vld [vmem:[%s4 + $0x15] sm:$0x1]
    %v2497 = vsel %vm61, %v2493, 0.0
    %2498 = vadd.xlane.f32.xlu0 %v2497
    %v2499 = vpop.xlane.xlu0 %2498
    %v2500 = vsel %vm61, %v2494, 0.0
    %2501 = vadd.xlane.f32.xlu0 %v2500
    %v2502 = vpop.xlane.xlu0 %2501
    %v2503 = vmul.f32 %v2499, %v68
    %v2504 = vmul.f32 %v2502, %v68
    %v2505 = vsub.f32 %v2493, %v2503
    %v2506 = vsub.f32 %v2494, %v2504
    %v2507 = vmul.f32 %v2505, %v2505
    %v2508 = vmul.f32 %v2506, %v2506
    %v2509 = vsel %vm61, %v2507, 0.0
    %2510 = vadd.xlane.f32.xlu0 %v2509
    %v2511 = vpop.xlane.xlu0 %2510
    %v2512 = vsel %vm61, %v2508, 0.0
    %2513 = vadd.xlane.f32.xlu0 %v2512
    %v2514 = vpop.xlane.xlu0 %2513
    %v2515 = vmul.f32 %v2511, 0.032258064
    %v2516 = vmul.f32 %v2514, 0.032258064
    %v2517 = vlaneseq
    %v2518 = vshrl.u32 %v2517, 7
    %v2519 = vsub.s32 0, %v2518
    %v2520 = vrot.slane %v2495, %v2519
    %v2521 = vmul.f32 %v2520, %v2505
    %v2522 = vmul.f32 %v2520, %v2506
    %v2523 = vrsqrt.pop %v2515
    %v2524 = vmul.f32 %v2515, %v2523
    %vm2525 = vcmp.eq.f32.partialorder %v2515, inf
    %v2526 = vsel %vm2525, %v2515, %v2524
    %vm2527 = vcmp.eq.f32.partialorder %v2515, 0.0
    %v2528 = vand.u32 %v2515, 2147483648
    %v2529 = vsel %vm2527, %v2528, %v2526
    %v2530 = vrsqrt.pop %v2516
    %v2531 = vmul.f32 %v2516, %v2530
    %vm2532 = vcmp.eq.f32.partialorder %v2516, inf
    %v2533 = vsel %vm2532, %v2516, %v2531
    %vm2534 = vcmp.eq.f32.partialorder %v2516, 0.0
    %v2535 = vand.u32 %v2516, 2147483648
    %v2536 = vsel %vm2534, %v2535, %v2533
    %v2537 = vadd.f32 %v2529, 1e-06
    %v2538 = vadd.f32 %v2536, 1e-06
    %v2539 = vrcp.pop %v2537
    %v2540 = vmul.f32 %v2521, %v2539
    %v2541 = vrcp.pop %v2538
    %v2542 = vmul.f32 %v2522, %v2541
    %v2543 = vlaneseq
    %v2544 = vshrl.u32 %v2543, 7
    %v2545 = vsub.s32 0, %v2544
    %v2546 = vrot.slane %v2496, %v2545
    %v2547 = vadd.f32 %v2540, %v2546
    %v2548 = vadd.f32 %v2542, %v2546
    %v2549 = vpack.c.bf16 %v2548, %v2547
    %v2550 = vld [vmem:[#allocation6 + $0x80] sm:$0xf]
    %v2551 = vld [vmem:[#allocation6 + $0x84] sm:$0xf]
    %v2552 = vld [vmem:[#allocation6 + $0x88] sm:$0xf]
    %v2553 = vld [vmem:[#allocation6 + $0x8c] sm:$0xf]
    %v2554 = vld [vmem:[%s4 + $0xd] sm:$0x1]
    %v2555 = vlaneseq
    %v2556 = vshrl.u32 %v2555, 7
    %v2557 = vsub.s32 0, %v2556
    %v2558 = vrot.slane %v2554, %v2557
    %v2563 = vunpack.c.l.b16 %v2550
    %v2564 = vunpack.c.l.b16 %v2551
    %v2565 = vunpack.c.l.b16 %v2552
    %v2566 = vunpack.c.l.b16 %v2553
    %v2567 = vpack.c.b16 %v2564, %v2563
    %v2568 = vpack.c.b16 %v2566, %v2565
    %v2572 = vsel %vm61, %v2549, 0
    %2574 = vmatprep.subr.bf16.mxu0 0
    %2575 = vmatpush1.bf16.msra.mxu0 %v2567
    %2576 = vmatprep.subr.bf16.mxu0 0
    %2577 = vmatpush1.bf16.msra.mxu0 %v2568
    %2578 = vmatprep.subr.bf16.mxu0 0
    %2579 = vmatpush1.bf16.msra.mxu0 0
    %2580 = vmatprep.subr.bf16.mxu0 0
    %2581 = vmatpush1.bf16.msra.mxu0 0
    %2582 = vmatprep.subr.bf16.mxu0 0
    %2583 = vmatpush1.bf16.msra.mxu0 0
    %2584 = vmatprep.subr.bf16.mxu0 0
    %2585 = vmatpush1.bf16.msra.mxu0 0
    %2586 = vmatprep.subr.bf16.mxu0 0
    %2587 = vmatpush1.bf16.msra.mxu0 0
    %2588 = vmatprep.subr.bf16.mxu0 0
    %2589 = vmatpush1.bf16.msra.mxu0 0
    %2590 = vmatprep.subr.bf16.mxu0 0
    %2591 = vmatpush1.bf16.msra.mxu0 0
    %2592 = vmatprep.subr.bf16.mxu0 0
    %2593 = vmatpush1.bf16.msra.mxu0 0
    %2594 = vmatprep.subr.bf16.mxu0 0
    %2595 = vmatpush1.bf16.msra.mxu0 0
    %2596 = vmatprep.subr.bf16.mxu0 0
    %2597 = vmatpush1.bf16.msra.mxu0 0
    %2598 = vmatprep.subr.bf16.mxu0 0
    %2599 = vmatpush1.bf16.msra.mxu0 0
    %2600 = vmatprep.subr.bf16.mxu0 0
    %2601 = vmatpush1.bf16.msra.mxu0 0
    %2602 = vmatprep.subr.bf16.mxu0 0
    %2603 = vmatpush1.bf16.msra.mxu0 0
    %2604 = vmatprep.subr.bf16.mxu0 0
    %2605 = vmatpush1.bf16.msra.mxu0 0
    %2606 = vmatprep.mubr.bf16.mxu0 0
    %2607 = vmatmul.mubr.bf16.gmra.mrb[0].mxu0 %v2572
    %v2608 = vpop.f32.mrb[0].mxu0
    %v2609 = vadd.f32 %v2558, %v2608
    %v2610 = vpop.f32.mrb[0].mxu0
    %v2611 = vpop.f32.mrb[0].mxu0
    %v2612 = vadd.f32 %v2558, %v2611
    %v2613 = vpop.f32.mrb[0].mxu0
    %2614 = vdwg.mxu0
    %2615 = vrot.lane.b32.xlu0 %v2567, 96
    %v2616 = vpop.permute.xlu0 %2615
    %2617 = vrot.lane.b32.xlu0 %v2568, 96
    %v2618 = vpop.permute.xlu0 %2617
    %2622 = vrot.lane.b32.xlu0 %v2558, 96
    %v2623 = vpop.permute.xlu0 %2622
    %2625 = vmatprep.subr.bf16.mxu0 0
    %2626 = vmatpush1.bf16.msra.mxu0 %v2616
    %2627 = vmatprep.subr.bf16.mxu0 0
    %2628 = vmatpush1.bf16.msra.mxu0 %v2618
    %2629 = vmatprep.subr.bf16.mxu0 0
    %2630 = vmatpush1.bf16.msra.mxu0 0
    %2631 = vmatprep.subr.bf16.mxu0 0
    %2632 = vmatpush1.bf16.msra.mxu0 0
    %2633 = vmatprep.subr.bf16.mxu0 0
    %2634 = vmatpush1.bf16.msra.mxu0 0
    %2635 = vmatprep.subr.bf16.mxu0 0
    %2636 = vmatpush1.bf16.msra.mxu0 0
    %2637 = vmatprep.subr.bf16.mxu0 0
    %2638 = vmatpush1.bf16.msra.mxu0 0
    %2639 = vmatprep.subr.bf16.mxu0 0
    %2640 = vmatpush1.bf16.msra.mxu0 0
    %2641 = vmatprep.subr.bf16.mxu0 0
    %2642 = vmatpush1.bf16.msra.mxu0 0
    %2643 = vmatprep.subr.bf16.mxu0 0
    %2644 = vmatpush1.bf16.msra.mxu0 0
    %2645 = vmatprep.subr.bf16.mxu0 0
    %2646 = vmatpush1.bf16.msra.mxu0 0
    %2647 = vmatprep.subr.bf16.mxu0 0
    %2648 = vmatpush1.bf16.msra.mxu0 0
    %2649 = vmatprep.subr.bf16.mxu0 0
    %2650 = vmatpush1.bf16.msra.mxu0 0
    %2651 = vmatprep.subr.bf16.mxu0 0
    %2652 = vmatpush1.bf16.msra.mxu0 0
    %2653 = vmatprep.subr.bf16.mxu0 0
    %2654 = vmatpush1.bf16.msra.mxu0 0
    %2655 = vmatprep.subr.bf16.mxu0 0
    %2656 = vmatpush1.bf16.msra.mxu0 0
    %2657 = vmatprep.mubr.bf16.mxu0 0
    %2658 = vmatmul.mubr.bf16.gmra.mrb[0].mxu0 %v919
    %v2659 = vpop.f32.mrb[0].mxu0
    %v2660 = vadd.f32 %v2623, %v2659
    %v2661 = vpop.f32.mrb[0].mxu0
    %v2662 = vpop.f32.mrb[0].mxu0
    %v2663 = vadd.f32 %v2623, %v2662
    %v2664 = vpop.f32.mrb[0].mxu0
    %2665 = vdwg.mxu0
    %v2666 = vld [vmem:[#allocation6 + $0xa0] sm:$0xf]
    %v2667 = vld [vmem:[#allocation6 + $0xa4] sm:$0xf]
    %v2668 = vld [vmem:[#allocation6 + $0xa8] sm:$0xf]
    %v2669 = vld [vmem:[#allocation6 + $0xac] sm:$0xf]
    %v2670 = vld [vmem:[%s4 + $0xf] sm:$0x1]
    %v2671 = vpack.c.bf16 %v2612, %v2609
    %v2672 = vpack.c.bf16 %v2663, %v2660
    %v2674 = vsel %vm190, %v2671, 0
    %v2677 = vsel %vm190, %v2672, 0
    %2679 = vmatprep.subr.bf16.mxu0 0
    %2680 = vmatpush1.bf16.xpose.msra.mxu0 %v2677
    %2681 = vmatprep.subr.bf16.mxu0 0
    %2682 = vmatpush1.bf16.xpose.msra.mxu0 0
    %2683 = vmatprep.subr.bf16.mxu0 0
    %2684 = vmatpush1.bf16.xpose.msra.mxu0 0
    %2685 = vmatprep.subr.bf16.mxu0 0
    %2686 = vmatpush1.bf16.xpose.msra.mxu0 0
    %2687 = vmatprep.subr.bf16.mxu0 0
    %2688 = vmatpush1.bf16.xpose.msra.mxu0 0
    %2689 = vmatprep.subr.bf16.mxu0 0
    %2690 = vmatpush1.bf16.xpose.msra.mxu0 0
    %2691 = vmatprep.subr.bf16.mxu0 0
    %2692 = vmatpush1.bf16.xpose.msra.mxu0 0
    %2693 = vmatprep.subr.bf16.mxu0 0
    %2694 = vmatpush1.bf16.xpose.msra.mxu0 0
    %2695 = vmatprep.subr.bf16.mxu0 0
    %2696 = vmatpush1.bf16.xpose.msra.mxu0 0
    %2697 = vmatprep.subr.bf16.mxu0 0
    %2698 = vmatpush1.bf16.xpose.msra.mxu0 0
    %2699 = vmatprep.subr.bf16.mxu0 0
    %2700 = vmatpush1.bf16.xpose.msra.mxu0 0
    %2701 = vmatprep.subr.bf16.mxu0 0
    %2702 = vmatpush1.bf16.xpose.msra.mxu0 0
    %2703 = vmatprep.subr.bf16.mxu0 0
    %2704 = vmatpush1.bf16.xpose.msra.mxu0 0
    %2705 = vmatprep.subr.bf16.mxu0 0
    %2706 = vmatpush1.bf16.xpose.msra.mxu0 0
    %2707 = vmatprep.subr.bf16.mxu0 0
    %2708 = vmatpush1.bf16.xpose.msra.mxu0 0
    %2709 = vmatprep.subr.bf16.mxu0 0
    %2710 = vmatpush1.bf16.xpose.msra.mxu0 0
    %2711 = vmatprep.mubr.bf16.mxu0 0
    %2712 = vmatmul.mubr.bf16.gmra.mrb[0].mxu0 %v2674
    %v2713 = vpop.f32.mrb[0].mxu0
    %v2714 = vadd.f32 0.0, %v2713
    %v2715 = vpop.f32.mrb[0].mxu0
    %v2716 = vpop.f32.mrb[0].mxu0
    %v2717 = vadd.f32 0.0, %v2716
    %v2718 = vpop.f32.mrb[0].mxu0
    %2719 = vdwg.mxu0
    %v2720 = vmul.f32 %v2714, 0.35355338
    %v2721 = vmul.f32 %v2717, 0.35355338
    %v2722 = vadd.f32 %v2720, %v57
    %v2723 = vadd.f32 %v2721, %v58
    %v2724 = vsel %vm242, %v2722, -inf
    %2725 = vmax.xlane.f32.xlu0 %v2724
    %v2726 = vpop.xlane.xlu0 %2725
    %v2727 = vsel %vm242, %v2723, -inf
    %2728 = vmax.xlane.f32.xlu0 %v2727
    %v2729 = vpop.xlane.xlu0 %2728
    %v2730 = vsub.f32 %v2722, %v2726
    %v2731 = vsub.f32 %v2723, %v2729
    %v2732 = vmul.f32 %v2730, 1.442695
    %v2733 = vpow.pop %v2732
    %v2734 = vmul.f32 %v2731, 1.442695
    %v2735 = vpow.pop %v2734
    %v2736 = vsel %vm242, %v2733, 0.0
    %2737 = vadd.xlane.f32.xlu0 %v2736
    %v2738 = vpop.xlane.xlu0 %2737
    %v2739 = vsel %vm242, %v2735, 0.0
    %2740 = vadd.xlane.f32.xlu0 %v2739
    %v2741 = vpop.xlane.xlu0 %2740
    %v2742 = vrcp.pop %v2738
    %v2743 = vmul.f32 %v2733, %v2742
    %v2744 = vrcp.pop %v2741
    %v2745 = vmul.f32 %v2735, %v2744
    %v2746 = vpack.c.bf16 %v2745, %v2743
    %2748 = vrot.lane.b32.xlu0 %v2672, 96
    %v2749 = vpop.permute.xlu0 %2748
    %v2752 = vsel %vm242, %v2746, 0
    %2754 = vmatprep.subr.bf16.mxu0 0
    %2755 = vmatpush1.bf16.msra.mxu0 %v2749
    %2756 = vmatprep.subr.bf16.mxu0 0
    %2757 = vmatpush1.bf16.msra.mxu0 0
    %2758 = vmatprep.subr.bf16.mxu0 0
    %2759 = vmatpush1.bf16.msra.mxu0 0
    %2760 = vmatprep.subr.bf16.mxu0 0
    %2761 = vmatpush1.bf16.msra.mxu0 0
    %2762 = vmatprep.subr.bf16.mxu0 0
    %2763 = vmatpush1.bf16.msra.mxu0 0
    %2764 = vmatprep.subr.bf16.mxu0 0
    %2765 = vmatpush1.bf16.msra.mxu0 0
    %2766 = vmatprep.subr.bf16.mxu0 0
    %2767 = vmatpush1.bf16.msra.mxu0 0
    %2768 = vmatprep.subr.bf16.mxu0 0
    %2769 = vmatpush1.bf16.msra.mxu0 0
    %2770 = vmatprep.subr.bf16.mxu0 0
    %2771 = vmatpush1.bf16.msra.mxu0 0
    %2772 = vmatprep.subr.bf16.mxu0 0
    %2773 = vmatpush1.bf16.msra.mxu0 0
    %2774 = vmatprep.subr.bf16.mxu0 0
    %2775 = vmatpush1.bf16.msra.mxu0 0
    %2776 = vmatprep.subr.bf16.mxu0 0
    %2777 = vmatpush1.bf16.msra.mxu0 0
    %2778 = vmatprep.subr.bf16.mxu0 0
    %2779 = vmatpush1.bf16.msra.mxu0 0
    %2780 = vmatprep.subr.bf16.mxu0 0
    %2781 = vmatpush1.bf16.msra.mxu0 0
    %2782 = vmatprep.subr.bf16.mxu0 0
    %2783 = vmatpush1.bf16.msra.mxu0 0
    %2784 = vmatprep.subr.bf16.mxu0 0
    %2785 = vmatpush1.bf16.msra.mxu0 0
    %2786 = vmatprep.mubr.bf16.mxu0 0
    %2787 = vmatmul.mubr.bf16.gmra.mrb[0].mxu0 %v2752
    %v2788 = vpop.f32.mrb[0].mxu0
    %v2789 = vadd.f32 0.0, %v2788
    %v2790 = vpop.f32.mrb[0].mxu0
    %v2791 = vpop.f32.mrb[0].mxu0
    %v2792 = vadd.f32 0.0, %v2791
    %v2793 = vpop.f32.mrb[0].mxu0
    %2794 = vdwg.mxu0
    %2795 = vst.msk [vmem:[#allocation2] sm:$0xff] %vm190, %v2789
    %2796 = vst.msk [vmem:[#allocation2 + $0x8] sm:$0xff] %vm190, %v2792
    %2798 = vrot.lane.b32.xlu0 %v2671, 120
    %v2799 = vpop.permute.xlu0 %2798
    %2800 = vrot.lane.b32.xlu0 %v2672, 120
    %v2801 = vpop.permute.xlu0 %2800
    %v2803 = vsel %vm190, %v2799, 0
    %v2806 = vsel %vm190, %v2801, 0
    %2808 = vmatprep.subr.bf16.mxu0 0
    %2809 = vmatpush1.bf16.xpose.msra.mxu0 %v2806
    %2810 = vmatprep.subr.bf16.mxu0 0
    %2811 = vmatpush1.bf16.xpose.msra.mxu0 0
    %2812 = vmatprep.subr.bf16.mxu0 0
    %2813 = vmatpush1.bf16.xpose.msra.mxu0 0
    %2814 = vmatprep.subr.bf16.mxu0 0
    %2815 = vmatpush1.bf16.xpose.msra.mxu0 0
    %2816 = vmatprep.subr.bf16.mxu0 0
    %2817 = vmatpush1.bf16.xpose.msra.mxu0 0
    %2818 = vmatprep.subr.bf16.mxu0 0
    %2819 = vmatpush1.bf16.xpose.msra.mxu0 0
    %2820 = vmatprep.subr.bf16.mxu0 0
    %2821 = vmatpush1.bf16.xpose.msra.mxu0 0
    %2822 = vmatprep.subr.bf16.mxu0 0
    %2823 = vmatpush1.bf16.xpose.msra.mxu0 0
    %2824 = vmatprep.subr.bf16.mxu0 0
    %2825 = vmatpush1.bf16.xpose.msra.mxu0 0
    %2826 = vmatprep.subr.bf16.mxu0 0
    %2827 = vmatpush1.bf16.xpose.msra.mxu0 0
    %2828 = vmatprep.subr.bf16.mxu0 0
    %2829 = vmatpush1.bf16.xpose.msra.mxu0 0
    %2830 = vmatprep.subr.bf16.mxu0 0
    %2831 = vmatpush1.bf16.xpose.msra.mxu0 0
    %2832 = vmatprep.subr.bf16.mxu0 0
    %2833 = vmatpush1.bf16.xpose.msra.mxu0 0
    %2834 = vmatprep.subr.bf16.mxu0 0
    %2835 = vmatpush1.bf16.xpose.msra.mxu0 0
    %2836 = vmatprep.subr.bf16.mxu0 0
    %2837 = vmatpush1.bf16.xpose.msra.mxu0 0
    %2838 = vmatprep.subr.bf16.mxu0 0
    %2839 = vmatpush1.bf16.xpose.msra.mxu0 0
    %2840 = vmatprep.mubr.bf16.mxu0 0
    %2841 = vmatmul.mubr.bf16.gmra.mrb[0].mxu0 %v2803
    %v2842 = vpop.f32.mrb[0].mxu0
    %v2843 = vadd.f32 0.0, %v2842
    %v2844 = vpop.f32.mrb[0].mxu0
    %v2845 = vpop.f32.mrb[0].mxu0
    %v2846 = vadd.f32 0.0, %v2845
    %v2847 = vpop.f32.mrb[0].mxu0
    %2848 = vdwg.mxu0
    %v2849 = vmul.f32 %v2843, 0.35355338
    %v2850 = vmul.f32 %v2846, 0.35355338
    %v2851 = vadd.f32 %v2849, %v57
    %v2852 = vadd.f32 %v2850, %v58
    %v2853 = vsel %vm242, %v2851, -inf
    %2854 = vmax.xlane.f32.xlu0 %v2853
    %v2855 = vpop.xlane.xlu0 %2854
    %v2856 = vsel %vm242, %v2852, -inf
    %2857 = vmax.xlane.f32.xlu0 %v2856
    %v2858 = vpop.xlane.xlu0 %2857
    %v2859 = vsub.f32 %v2851, %v2855
    %v2860 = vsub.f32 %v2852, %v2858
    %v2861 = vmul.f32 %v2859, 1.442695
    %v2862 = vpow.pop %v2861
    %v2863 = vmul.f32 %v2860, 1.442695
    %v2864 = vpow.pop %v2863
    %v2865 = vsel %vm242, %v2862, 0.0
    %2866 = vadd.xlane.f32.xlu0 %v2865
    %v2867 = vpop.xlane.xlu0 %2866
    %v2868 = vsel %vm242, %v2864, 0.0
    %2869 = vadd.xlane.f32.xlu0 %v2868
    %v2870 = vpop.xlane.xlu0 %2869
    %v2871 = vrcp.pop %v2867
    %v2872 = vmul.f32 %v2862, %v2871
    %v2873 = vrcp.pop %v2870
    %v2874 = vmul.f32 %v2864, %v2873
    %v2875 = vpack.c.bf16 %v2874, %v2872
    %2876 = vrot.lane.b32.xlu0 %v2672, 88
    %v2877 = vpop.permute.xlu0 %2876
    %v2880 = vsel %vm242, %v2875, 0
    %2882 = vmatprep.subr.bf16.mxu0 0
    %2883 = vmatpush1.bf16.msra.mxu0 %v2877
    %2884 = vmatprep.subr.bf16.mxu0 0
    %2885 = vmatpush1.bf16.msra.mxu0 0
    %2886 = vmatprep.subr.bf16.mxu0 0
    %2887 = vmatpush1.bf16.msra.mxu0 0
    %2888 = vmatprep.subr.bf16.mxu0 0
    %2889 = vmatpush1.bf16.msra.mxu0 0
    %2890 = vmatprep.subr.bf16.mxu0 0
    %2891 = vmatpush1.bf16.msra.mxu0 0
    %2892 = vmatprep.subr.bf16.mxu0 0
    %2893 = vmatpush1.bf16.msra.mxu0 0
    %2894 = vmatprep.subr.bf16.mxu0 0
    %2895 = vmatpush1.bf16.msra.mxu0 0
    %2896 = vmatprep.subr.bf16.mxu0 0
    %2897 = vmatpush1.bf16.msra.mxu0 0
    %2898 = vmatprep.subr.bf16.mxu0 0
    %2899 = vmatpush1.bf16.msra.mxu0 0
    %2900 = vmatprep.subr.bf16.mxu0 0
    %2901 = vmatpush1.bf16.msra.mxu0 0
    %2902 = vmatprep.subr.bf16.mxu0 0
    %2903 = vmatpush1.bf16.msra.mxu0 0
    %2904 = vmatprep.subr.bf16.mxu0 0
    %2905 = vmatpush1.bf16.msra.mxu0 0
    %2906 = vmatprep.subr.bf16.mxu0 0
    %2907 = vmatpush1.bf16.msra.mxu0 0
    %2908 = vmatprep.subr.bf16.mxu0 0
    %2909 = vmatpush1.bf16.msra.mxu0 0
    %2910 = vmatprep.subr.bf16.mxu0 0
    %2911 = vmatpush1.bf16.msra.mxu0 0
    %2912 = vmatprep.subr.bf16.mxu0 0
    %2913 = vmatpush1.bf16.msra.mxu0 0
    %2914 = vmatprep.mubr.bf16.mxu0 0
    %2915 = vmatmul.mubr.bf16.gmra.mrb[0].mxu0 %v2880
    %v2916 = vpop.f32.mrb[0].mxu0
    %v2917 = vadd.f32 0.0, %v2916
    %v2918 = vpop.f32.mrb[0].mxu0
    %v2919 = vpop.f32.mrb[0].mxu0
    %v2920 = vadd.f32 0.0, %v2919
    %v2921 = vpop.f32.mrb[0].mxu0
    %2922 = vdwg.mxu0
    %2925 = vrot.lane.b32.xlu0 %v2917, 8
    %v2926 = vpop.permute.xlu0 %2925
    %2927 = vrot.lane.b32.xlu0 %v2920, 8
    %v2928 = vpop.permute.xlu0 %2927
    %2931 = vst.msk [vmem:[#allocation2] sm:$0xff] %vm448, %v2926
    %2932 = vst.msk [vmem:[#allocation2 + $0x8] sm:$0xff] %vm448, %v2928
    %2933 = vrot.lane.b32.xlu0 %v2671, 112
    %v2934 = vpop.permute.xlu0 %2933
    %2935 = vrot.lane.b32.xlu0 %v2672, 112
    %v2936 = vpop.permute.xlu0 %2935
    %v2938 = vsel %vm190, %v2934, 0
    %v2941 = vsel %vm190, %v2936, 0
    %2943 = vmatprep.subr.bf16.mxu0 0
    %2944 = vmatpush1.bf16.xpose.msra.mxu0 %v2941
    %2945 = vmatprep.subr.bf16.mxu0 0
    %2946 = vmatpush1.bf16.xpose.msra.mxu0 0
    %2947 = vmatprep.subr.bf16.mxu0 0
    %2948 = vmatpush1.bf16.xpose.msra.mxu0 0
    %2949 = vmatprep.subr.bf16.mxu0 0
    %2950 = vmatpush1.bf16.xpose.msra.mxu0 0
    %2951 = vmatprep.subr.bf16.mxu0 0
    %2952 = vmatpush1.bf16.xpose.msra.mxu0 0
    %2953 = vmatprep.subr.bf16.mxu0 0
    %2954 = vmatpush1.bf16.xpose.msra.mxu0 0
    %2955 = vmatprep.subr.bf16.mxu0 0
    %2956 = vmatpush1.bf16.xpose.msra.mxu0 0
    %2957 = vmatprep.subr.bf16.mxu0 0
    %2958 = vmatpush1.bf16.xpose.msra.mxu0 0
    %2959 = vmatprep.subr.bf16.mxu0 0
    %2960 = vmatpush1.bf16.xpose.msra.mxu0 0
    %2961 = vmatprep.subr.bf16.mxu0 0
    %2962 = vmatpush1.bf16.xpose.msra.mxu0 0
    %2963 = vmatprep.subr.bf16.mxu0 0
    %2964 = vmatpush1.bf16.xpose.msra.mxu0 0
    %2965 = vmatprep.subr.bf16.mxu0 0
    %2966 = vmatpush1.bf16.xpose.msra.mxu0 0
    %2967 = vmatprep.subr.bf16.mxu0 0
    %2968 = vmatpush1.bf16.xpose.msra.mxu0 0
    %2969 = vmatprep.subr.bf16.mxu0 0
    %2970 = vmatpush1.bf16.xpose.msra.mxu0 0
    %2971 = vmatprep.subr.bf16.mxu0 0
    %2972 = vmatpush1.bf16.xpose.msra.mxu0 0
    %2973 = vmatprep.subr.bf16.mxu0 0
    %2974 = vmatpush1.bf16.xpose.msra.mxu0 0
    %2975 = vmatprep.mubr.bf16.mxu0 0
    %2976 = vmatmul.mubr.bf16.gmra.mrb[0].mxu0 %v2938
    %v2977 = vpop.f32.mrb[0].mxu0
    %v2978 = vadd.f32 0.0, %v2977
    %v2979 = vpop.f32.mrb[0].mxu0
    %v2980 = vpop.f32.mrb[0].mxu0
    %v2981 = vadd.f32 0.0, %v2980
    %v2982 = vpop.f32.mrb[0].mxu0
    %2983 = vdwg.mxu0
    %v2984 = vmul.f32 %v2978, 0.35355338
    %v2985 = vmul.f32 %v2981, 0.35355338
    %v2986 = vadd.f32 %v2984, %v57
    %v2987 = vadd.f32 %v2985, %v58
    %v2988 = vsel %vm242, %v2986, -inf
    %2989 = vmax.xlane.f32.xlu0 %v2988
    %v2990 = vpop.xlane.xlu0 %2989
    %v2991 = vsel %vm242, %v2987, -inf
    %2992 = vmax.xlane.f32.xlu0 %v2991
    %v2993 = vpop.xlane.xlu0 %2992
    %v2994 = vsub.f32 %v2986, %v2990
    %v2995 = vsub.f32 %v2987, %v2993
    %v2996 = vmul.f32 %v2994, 1.442695
    %v2997 = vpow.pop %v2996
    %v2998 = vmul.f32 %v2995, 1.442695
    %v2999 = vpow.pop %v2998
    %v3000 = vsel %vm242, %v2997, 0.0
    %3001 = vadd.xlane.f32.xlu0 %v3000
    %v3002 = vpop.xlane.xlu0 %3001
    %v3003 = vsel %vm242, %v2999, 0.0
    %3004 = vadd.xlane.f32.xlu0 %v3003
    %v3005 = vpop.xlane.xlu0 %3004
    %v3006 = vrcp.pop %v3002
    %v3007 = vmul.f32 %v2997, %v3006
    %v3008 = vrcp.pop %v3005
    %v3009 = vmul.f32 %v2999, %v3008
    %v3010 = vpack.c.bf16 %v3009, %v3007
    %3011 = vrot.lane.b32.xlu0 %v2672, 80
    %v3012 = vpop.permute.xlu0 %3011
    %v3015 = vsel %vm242, %v3010, 0
    %3017 = vmatprep.subr.bf16.mxu0 0
    %3018 = vmatpush1.bf16.msra.mxu0 %v3012
    %3019 = vmatprep.subr.bf16.mxu0 0
    %3020 = vmatpush1.bf16.msra.mxu0 0
    %3021 = vmatprep.subr.bf16.mxu0 0
    %3022 = vmatpush1.bf16.msra.mxu0 0
    %3023 = vmatprep.subr.bf16.mxu0 0
    %3024 = vmatpush1.bf16.msra.mxu0 0
    %3025 = vmatprep.subr.bf16.mxu0 0
    %3026 = vmatpush1.bf16.msra.mxu0 0
    %3027 = vmatprep.subr.bf16.mxu0 0
    %3028 = vmatpush1.bf16.msra.mxu0 0
    %3029 = vmatprep.subr.bf16.mxu0 0
    %3030 = vmatpush1.bf16.msra.mxu0 0
    %3031 = vmatprep.subr.bf16.mxu0 0
    %3032 = vmatpush1.bf16.msra.mxu0 0
    %3033 = vmatprep.subr.bf16.mxu0 0
    %3034 = vmatpush1.bf16.msra.mxu0 0
    %3035 = vmatprep.subr.bf16.mxu0 0
    %3036 = vmatpush1.bf16.msra.mxu0 0
    %3037 = vmatprep.subr.bf16.mxu0 0
    %3038 = vmatpush1.bf16.msra.mxu0 0
    %3039 = vmatprep.subr.bf16.mxu0 0
    %3040 = vmatpush1.bf16.msra.mxu0 0
    %3041 = vmatprep.subr.bf16.mxu0 0
    %3042 = vmatpush1.bf16.msra.mxu0 0
    %3043 = vmatprep.subr.bf16.mxu0 0
    %3044 = vmatpush1.bf16.msra.mxu0 0
    %3045 = vmatprep.subr.bf16.mxu0 0
    %3046 = vmatpush1.bf16.msra.mxu0 0
    %3047 = vmatprep.subr.bf16.mxu0 0
    %3048 = vmatpush1.bf16.msra.mxu0 0
    %3049 = vmatprep.mubr.bf16.mxu0 0
    %3050 = vmatmul.mubr.bf16.gmra.mrb[0].mxu0 %v3015
    %v3051 = vpop.f32.mrb[0].mxu0
    %v3052 = vadd.f32 0.0, %v3051
    %v3053 = vpop.f32.mrb[0].mxu0
    %v3054 = vpop.f32.mrb[0].mxu0
    %v3055 = vadd.f32 0.0, %v3054
    %v3056 = vpop.f32.mrb[0].mxu0
    %3057 = vdwg.mxu0
    %3060 = vrot.lane.b32.xlu0 %v3052, 16
    %v3061 = vpop.permute.xlu0 %3060
    %3062 = vrot.lane.b32.xlu0 %v3055, 16
    %v3063 = vpop.permute.xlu0 %3062
    %3066 = vst.msk [vmem:[#allocation2] sm:$0xff] %vm584, %v3061
    %3067 = vst.msk [vmem:[#allocation2 + $0x8] sm:$0xff] %vm584, %v3063
    %3068 = vrot.lane.b32.xlu0 %v2671, 104
    %v3069 = vpop.permute.xlu0 %3068
    %3070 = vrot.lane.b32.xlu0 %v2672, 104
    %v3071 = vpop.permute.xlu0 %3070
    %v3073 = vsel %vm190, %v3069, 0
    %v3076 = vsel %vm190, %v3071, 0
    %3078 = vmatprep.subr.bf16.mxu0 0
    %3079 = vmatpush1.bf16.xpose.msra.mxu0 %v3076
    %3080 = vmatprep.subr.bf16.mxu0 0
    %3081 = vmatpush1.bf16.xpose.msra.mxu0 0
    %3082 = vmatprep.subr.bf16.mxu0 0
    %3083 = vmatpush1.bf16.xpose.msra.mxu0 0
    %3084 = vmatprep.subr.bf16.mxu0 0
    %3085 = vmatpush1.bf16.xpose.msra.mxu0 0
    %3086 = vmatprep.subr.bf16.mxu0 0
    %3087 = vmatpush1.bf16.xpose.msra.mxu0 0
    %3088 = vmatprep.subr.bf16.mxu0 0
    %3089 = vmatpush1.bf16.xpose.msra.mxu0 0
    %3090 = vmatprep.subr.bf16.mxu0 0
    %3091 = vmatpush1.bf16.xpose.msra.mxu0 0
    %3092 = vmatprep.subr.bf16.mxu0 0
    %3093 = vmatpush1.bf16.xpose.msra.mxu0 0
    %3094 = vmatprep.subr.bf16.mxu0 0
    %3095 = vmatpush1.bf16.xpose.msra.mxu0 0
    %3096 = vmatprep.subr.bf16.mxu0 0
    %3097 = vmatpush1.bf16.xpose.msra.mxu0 0
    %3098 = vmatprep.subr.bf16.mxu0 0
    %3099 = vmatpush1.bf16.xpose.msra.mxu0 0
    %3100 = vmatprep.subr.bf16.mxu0 0
    %3101 = vmatpush1.bf16.xpose.msra.mxu0 0
    %3102 = vmatprep.subr.bf16.mxu0 0
    %3103 = vmatpush1.bf16.xpose.msra.mxu0 0
    %3104 = vmatprep.subr.bf16.mxu0 0
    %3105 = vmatpush1.bf16.xpose.msra.mxu0 0
    %3106 = vmatprep.subr.bf16.mxu0 0
    %3107 = vmatpush1.bf16.xpose.msra.mxu0 0
    %3108 = vmatprep.subr.bf16.mxu0 0
    %3109 = vmatpush1.bf16.xpose.msra.mxu0 0
    %3110 = vmatprep.mubr.bf16.mxu0 0
    %3111 = vmatmul.mubr.bf16.gmra.mrb[0].mxu0 %v3073
    %v3112 = vpop.f32.mrb[0].mxu0
    %v3113 = vadd.f32 0.0, %v3112
    %v3114 = vpop.f32.mrb[0].mxu0
    %v3115 = vpop.f32.mrb[0].mxu0
    %v3116 = vadd.f32 0.0, %v3115
    %v3117 = vpop.f32.mrb[0].mxu0
    %3118 = vdwg.mxu0
    %v3119 = vmul.f32 %v3113, 0.35355338
    %v3120 = vmul.f32 %v3116, 0.35355338
    %v3121 = vadd.f32 %v3119, %v57
    %v3122 = vadd.f32 %v3120, %v58
    %v3123 = vsel %vm242, %v3121, -inf
    %3124 = vmax.xlane.f32.xlu0 %v3123
    %v3125 = vpop.xlane.xlu0 %3124
    %v3126 = vsel %vm242, %v3122, -inf
    %3127 = vmax.xlane.f32.xlu0 %v3126
    %v3128 = vpop.xlane.xlu0 %3127
    %v3129 = vsub.f32 %v3121, %v3125
    %v3130 = vsub.f32 %v3122, %v3128
    %v3131 = vmul.f32 %v3129, 1.442695
    %v3132 = vpow.pop %v3131
    %v3133 = vmul.f32 %v3130, 1.442695
    %v3134 = vpow.pop %v3133
    %v3135 = vsel %vm242, %v3132, 0.0
    %3136 = vadd.xlane.f32.xlu0 %v3135
    %v3137 = vpop.xlane.xlu0 %3136
    %v3138 = vsel %vm242, %v3134, 0.0
    %3139 = vadd.xlane.f32.xlu0 %v3138
    %v3140 = vpop.xlane.xlu0 %3139
    %v3141 = vrcp.pop %v3137
    %v3142 = vmul.f32 %v3132, %v3141
    %v3143 = vrcp.pop %v3140
    %v3144 = vmul.f32 %v3134, %v3143
    %v3145 = vpack.c.bf16 %v3144, %v3142
    %3146 = vrot.lane.b32.xlu0 %v2672, 72
    %v3147 = vpop.permute.xlu0 %3146
    %v3150 = vsel %vm242, %v3145, 0
    %3152 = vmatprep.subr.bf16.mxu0 0
    %3153 = vmatpush1.bf16.msra.mxu0 %v3147
    %3154 = vmatprep.subr.bf16.mxu0 0
    %3155 = vmatpush1.bf16.msra.mxu0 0
    %3156 = vmatprep.subr.bf16.mxu0 0
    %3157 = vmatpush1.bf16.msra.mxu0 0
    %3158 = vmatprep.subr.bf16.mxu0 0
    %3159 = vmatpush1.bf16.msra.mxu0 0
    %3160 = vmatprep.subr.bf16.mxu0 0
    %3161 = vmatpush1.bf16.msra.mxu0 0
    %3162 = vmatprep.subr.bf16.mxu0 0
    %3163 = vmatpush1.bf16.msra.mxu0 0
    %3164 = vmatprep.subr.bf16.mxu0 0
    %3165 = vmatpush1.bf16.msra.mxu0 0
    %3166 = vmatprep.subr.bf16.mxu0 0
    %3167 = vmatpush1.bf16.msra.mxu0 0
    %3168 = vmatprep.subr.bf16.mxu0 0
    %3169 = vmatpush1.bf16.msra.mxu0 0
    %3170 = vmatprep.subr.bf16.mxu0 0
    %3171 = vmatpush1.bf16.msra.mxu0 0
    %3172 = vmatprep.subr.bf16.mxu0 0
    %3173 = vmatpush1.bf16.msra.mxu0 0
    %3174 = vmatprep.subr.bf16.mxu0 0
    %3175 = vmatpush1.bf16.msra.mxu0 0
    %3176 = vmatprep.subr.bf16.mxu0 0
    %3177 = vmatpush1.bf16.msra.mxu0 0
    %3178 = vmatprep.subr.bf16.mxu0 0
    %3179 = vmatpush1.bf16.msra.mxu0 0
    %3180 = vmatprep.subr.bf16.mxu0 0
    %3181 = vmatpush1.bf16.msra.mxu0 0
    %3182 = vmatprep.subr.bf16.mxu0 0
    %3183 = vmatpush1.bf16.msra.mxu0 0
    %3184 = vmatprep.mubr.bf16.mxu0 0
    %3185 = vmatmul.mubr.bf16.gmra.mrb[0].mxu0 %v3150
    %v3186 = vpop.f32.mrb[0].mxu0
    %v3187 = vadd.f32 0.0, %v3186
    %v3188 = vpop.f32.mrb[0].mxu0
    %v3189 = vpop.f32.mrb[0].mxu0
    %v3190 = vadd.f32 0.0, %v3189
    %v3191 = vpop.f32.mrb[0].mxu0
    %3192 = vdwg.mxu0
    %3195 = vrot.lane.b32.xlu0 %v3187, 24
    %v3196 = vpop.permute.xlu0 %3195
    %3197 = vrot.lane.b32.xlu0 %v3190, 24
    %v3198 = vpop.permute.xlu0 %3197
    %3201 = vst.msk [vmem:[#allocation2] sm:$0xff] %vm720, %v3196
    %3202 = vst.msk [vmem:[#allocation2 + $0x8] sm:$0xff] %vm720, %v3198
    %v3203 = vld [vmem:[#allocation2] sm:$0xff]
    %v3204 = vld [vmem:[#allocation2 + $0x8] sm:$0xff]
    %v3205 = vpack.c.bf16 %v3204, %v3203
    %v3206 = vlaneseq
    %v3207 = vshrl.u32 %v3206, 7
    %v3208 = vsub.s32 0, %v3207
    %v3209 = vrot.slane %v2670, %v3208
    %v3214 = vunpack.c.l.b16 %v2666
    %v3215 = vunpack.c.l.b16 %v2667
    %v3216 = vunpack.c.l.b16 %v2668
    %v3217 = vunpack.c.l.b16 %v2669
    %v3218 = vpack.c.b16 %v3215, %v3214
    %v3219 = vpack.c.b16 %v3217, %v3216
    %v3223 = vsel %vm61, %v3205, 0
    %3225 = vmatprep.subr.bf16.mxu0 0
    %3226 = vmatpush1.bf16.msra.mxu0 %v3218
    %3227 = vmatprep.subr.bf16.mxu0 0
    %3228 = vmatpush1.bf16.msra.mxu0 %v3219
    %3229 = vmatprep.subr.bf16.mxu0 0
    %3230 = vmatpush1.bf16.msra.mxu0 0
    %3231 = vmatprep.subr.bf16.mxu0 0
    %3232 = vmatpush1.bf16.msra.mxu0 0
    %3233 = vmatprep.subr.bf16.mxu0 0
    %3234 = vmatpush1.bf16.msra.mxu0 0
    %3235 = vmatprep.subr.bf16.mxu0 0
    %3236 = vmatpush1.bf16.msra.mxu0 0
    %3237 = vmatprep.subr.bf16.mxu0 0
    %3238 = vmatpush1.bf16.msra.mxu0 0
    %3239 = vmatprep.subr.bf16.mxu0 0
    %3240 = vmatpush1.bf16.msra.mxu0 0
    %3241 = vmatprep.subr.bf16.mxu0 0
    %3242 = vmatpush1.bf16.msra.mxu0 0
    %3243 = vmatprep.subr.bf16.mxu0 0
    %3244 = vmatpush1.bf16.msra.mxu0 0
    %3245 = vmatprep.subr.bf16.mxu0 0
    %3246 = vmatpush1.bf16.msra.mxu0 0
    %3247 = vmatprep.subr.bf16.mxu0 0
    %3248 = vmatpush1.bf16.msra.mxu0 0
    %3249 = vmatprep.subr.bf16.mxu0 0
    %3250 = vmatpush1.bf16.msra.mxu0 0
    %3251 = vmatprep.subr.bf16.mxu0 0
    %3252 = vmatpush1.bf16.msra.mxu0 0
    %3253 = vmatprep.subr.bf16.mxu0 0
    %3254 = vmatpush1.bf16.msra.mxu0 0
    %3255 = vmatprep.subr.bf16.mxu0 0
    %3256 = vmatpush1.bf16.msra.mxu0 0
    %3257 = vmatprep.mubr.bf16.mxu0 0
    %3258 = vmatmul.mubr.bf16.gmra.mrb[0].mxu0 %v3223
    %v3259 = vpop.f32.mrb[0].mxu0
    %v3260 = vadd.f32 %v3209, %v3259
    %v3261 = vpop.f32.mrb[0].mxu0
    %v3262 = vpop.f32.mrb[0].mxu0
    %v3263 = vadd.f32 %v3209, %v3262
    %v3264 = vpop.f32.mrb[0].mxu0
    %3265 = vdwg.mxu0
    %v3266 = vadd.f32 %v2493, %v3260
    %v3267 = vadd.f32 %v2494, %v3263
    %v3268 = vld [vmem:[%s4 + $0x16] sm:$0x1]
    %v3269 = vld [vmem:[%s4 + $0x17] sm:$0x1]
    %v3270 = vsel %vm61, %v3266, 0.0
    %3271 = vadd.xlane.f32.xlu0 %v3270
    %v3272 = vpop.xlane.xlu0 %3271
    %v3273 = vsel %vm61, %v3267, 0.0
    %3274 = vadd.xlane.f32.xlu0 %v3273
    %v3275 = vpop.xlane.xlu0 %3274
    %v3276 = vmul.f32 %v3272, %v68
    %v3277 = vmul.f32 %v3275, %v68
    %v3278 = vsub.f32 %v3266, %v3276
    %v3279 = vsub.f32 %v3267, %v3277
    %v3280 = vmul.f32 %v3278, %v3278
    %v3281 = vmul.f32 %v3279, %v3279
    %v3282 = vsel %vm61, %v3280, 0.0
    %3283 = vadd.xlane.f32.xlu0 %v3282
    %v3284 = vpop.xlane.xlu0 %3283
    %v3285 = vsel %vm61, %v3281, 0.0
    %3286 = vadd.xlane.f32.xlu0 %v3285
    %v3287 = vpop.xlane.xlu0 %3286
    %v3288 = vmul.f32 %v3284, 0.032258064
    %v3289 = vmul.f32 %v3287, 0.032258064
    %v3290 = vlaneseq
    %v3291 = vshrl.u32 %v3290, 7
    %v3292 = vsub.s32 0, %v3291
    %v3293 = vrot.slane %v3268, %v3292
    %v3294 = vmul.f32 %v3293, %v3278
    %v3295 = vmul.f32 %v3293, %v3279
    %v3296 = vrsqrt.pop %v3288
    %v3297 = vmul.f32 %v3288, %v3296
    %vm3298 = vcmp.eq.f32.partialorder %v3288, inf
    %v3299 = vsel %vm3298, %v3288, %v3297
    %vm3300 = vcmp.eq.f32.partialorder %v3288, 0.0
    %v3301 = vand.u32 %v3288, 2147483648
    %v3302 = vsel %vm3300, %v3301, %v3299
    %v3303 = vrsqrt.pop %v3289
    %v3304 = vmul.f32 %v3289, %v3303
    %vm3305 = vcmp.eq.f32.partialorder %v3289, inf
    %v3306 = vsel %vm3305, %v3289, %v3304
    %vm3307 = vcmp.eq.f32.partialorder %v3289, 0.0
    %v3308 = vand.u32 %v3289, 2147483648
    %v3309 = vsel %vm3307, %v3308, %v3306
    %v3310 = vadd.f32 %v3302, 1e-06
    %v3311 = vadd.f32 %v3309, 1e-06
    %v3312 = vrcp.pop %v3310
    %v3313 = vmul.f32 %v3294, %v3312
    %v3314 = vrcp.pop %v3311
    %v3315 = vmul.f32 %v3295, %v3314
    %v3316 = vlaneseq
    %v3317 = vshrl.u32 %v3316, 7
    %v3318 = vsub.s32 0, %v3317
    %v3319 = vrot.slane %v3269, %v3318
    %v3320 = vadd.f32 %v3313, %v3319
    %v3321 = vadd.f32 %v3315, %v3319
    %v3322 = vpack.c.bf16 %v3321, %v3320
    %v3323 = vld [vmem:[#allocation6 + $0xb0] sm:$0xf]
    %v3324 = vld [vmem:[#allocation6 + $0xb4] sm:$0xf]
    %v3325 = vld [vmem:[#allocation6 + $0xb8] sm:$0xf]
    %v3326 = vld [vmem:[#allocation6 + $0xbc] sm:$0xf]
    %v3327 = vld [vmem:[%s4 + $0x10] sm:$0x1]
    %v3328 = vlaneseq
    %v3329 = vshrl.u32 %v3328, 7
    %v3330 = vsub.s32 0, %v3329
    %v3331 = vrot.slane %v3327, %v3330
    %v3336 = vunpack.c.l.b16 %v3323
    %v3337 = vunpack.c.l.b16 %v3324
    %v3338 = vunpack.c.l.b16 %v3325
    %v3339 = vunpack.c.l.b16 %v3326
    %v3340 = vpack.c.b16 %v3337, %v3336
    %v3341 = vpack.c.b16 %v3339, %v3338
    %v3345 = vsel %vm61, %v3322, 0
    %3347 = vmatprep.subr.bf16.mxu0 0
    %3348 = vmatpush1.bf16.msra.mxu0 %v3340
    %3349 = vmatprep.subr.bf16.mxu0 0
    %3350 = vmatpush1.bf16.msra.mxu0 %v3341
    %3351 = vmatprep.subr.bf16.mxu0 0
    %3352 = vmatpush1.bf16.msra.mxu0 0
    %3353 = vmatprep.subr.bf16.mxu0 0
    %3354 = vmatpush1.bf16.msra.mxu0 0
    %3355 = vmatprep.subr.bf16.mxu0 0
    %3356 = vmatpush1.bf16.msra.mxu0 0
    %3357 = vmatprep.subr.bf16.mxu0 0
    %3358 = vmatpush1.bf16.msra.mxu0 0
    %3359 = vmatprep.subr.bf16.mxu0 0
    %3360 = vmatpush1.bf16.msra.mxu0 0
    %3361 = vmatprep.subr.bf16.mxu0 0
    %3362 = vmatpush1.bf16.msra.mxu0 0
    %3363 = vmatprep.subr.bf16.mxu0 0
    %3364 = vmatpush1.bf16.msra.mxu0 0
    %3365 = vmatprep.subr.bf16.mxu0 0
    %3366 = vmatpush1.bf16.msra.mxu0 0
    %3367 = vmatprep.subr.bf16.mxu0 0
    %3368 = vmatpush1.bf16.msra.mxu0 0
    %3369 = vmatprep.subr.bf16.mxu0 0
    %3370 = vmatpush1.bf16.msra.mxu0 0
    %3371 = vmatprep.subr.bf16.mxu0 0
    %3372 = vmatpush1.bf16.msra.mxu0 0
    %3373 = vmatprep.subr.bf16.mxu0 0
    %3374 = vmatpush1.bf16.msra.mxu0 0
    %3375 = vmatprep.subr.bf16.mxu0 0
    %3376 = vmatpush1.bf16.msra.mxu0 0
    %3377 = vmatprep.subr.bf16.mxu0 0
    %3378 = vmatpush1.bf16.msra.mxu0 0
    %3379 = vmatprep.mubr.bf16.mxu0 0
    %3380 = vmatmul.mubr.bf16.gmra.mrb[0].mxu0 %v3345
    %v3381 = vpop.f32.mrb[0].mxu0
    %v3382 = vadd.f32 %v3331, %v3381
    %v3383 = vpop.f32.mrb[0].mxu0
    %v3384 = vpop.f32.mrb[0].mxu0
    %v3385 = vadd.f32 %v3331, %v3384
    %v3386 = vpop.f32.mrb[0].mxu0
    %3387 = vdwg.mxu0
    %v3388 = vmax.f32 %v3382, 0.0
    %v3389 = vmax.f32 %v3385, 0.0
    %v3390 = vpack.c.bf16 %v3389, %v3388
    %v3391 = vld [vmem:[#allocation6 + $0xc0] sm:$0xf]
    %v3392 = vld [vmem:[#allocation6 + $0xc4] sm:$0xf]
    %v3393 = vld [vmem:[#allocation6 + $0xc8] sm:$0xf]
    %v3394 = vld [vmem:[#allocation6 + $0xcc] sm:$0xf]
    %v3395 = vld [vmem:[#allocation6 + $0xd0] sm:$0xf]
    %v3396 = vld [vmem:[#allocation6 + $0xd4] sm:$0xf]
    %v3397 = vld [vmem:[#allocation6 + $0xd8] sm:$0xf]
    %v3398 = vld [vmem:[#allocation6 + $0xdc] sm:$0xf]
    %v3407 = vunpack.c.l.b16 %v3391
    %v3408 = vunpack.c.l.b16 %v3392
    %v3409 = vunpack.c.l.b16 %v3393
    %v3410 = vunpack.c.l.b16 %v3394
    %v3411 = vunpack.c.l.b16 %v3395
    %v3412 = vunpack.c.l.b16 %v3396
    %v3413 = vunpack.c.l.b16 %v3397
    %v3414 = vunpack.c.l.b16 %v3398
    %v3415 = vpack.c.b16 %v3408, %v3407
    %v3416 = vpack.c.b16 %v3410, %v3409
    %v3417 = vpack.c.b16 %v3412, %v3411
    %v3418 = vpack.c.b16 %v3414, %v3413
    %v3424 = vsel %vm1719, %v3390, 0
    %3426 = vmatprep.subr.bf16.mxu0 0
    %3427 = vmatpush1.bf16.msra.mxu0 %v3415
    %3428 = vmatprep.subr.bf16.mxu0 0
    %3429 = vmatpush1.bf16.msra.mxu0 %v3416
    %3430 = vmatprep.subr.bf16.mxu0 0
    %3431 = vmatpush1.bf16.msra.mxu0 %v3417
    %3432 = vmatprep.subr.bf16.mxu0 0
    %3433 = vmatpush1.bf16.msra.mxu0 %v3418
    %3434 = vmatprep.subr.bf16.mxu0 0
    %3435 = vmatpush1.bf16.msra.mxu0 0
    %3436 = vmatprep.subr.bf16.mxu0 0
    %3437 = vmatpush1.bf16.msra.mxu0 0
    %3438 = vmatprep.subr.bf16.mxu0 0
    %3439 = vmatpush1.bf16.msra.mxu0 0
    %3440 = vmatprep.subr.bf16.mxu0 0
    %3441 = vmatpush1.bf16.msra.mxu0 0
    %3442 = vmatprep.subr.bf16.mxu0 0
    %3443 = vmatpush1.bf16.msra.mxu0 0
    %3444 = vmatprep.subr.bf16.mxu0 0
    %3445 = vmatpush1.bf16.msra.mxu0 0
    %3446 = vmatprep.subr.bf16.mxu0 0
    %3447 = vmatpush1.bf16.msra.mxu0 0
    %3448 = vmatprep.subr.bf16.mxu0 0
    %3449 = vmatpush1.bf16.msra.mxu0 0
    %3450 = vmatprep.subr.bf16.mxu0 0
    %3451 = vmatpush1.bf16.msra.mxu0 0
    %3452 = vmatprep.subr.bf16.mxu0 0
    %3453 = vmatpush1.bf16.msra.mxu0 0
    %3454 = vmatprep.subr.bf16.mxu0 0
    %3455 = vmatpush1.bf16.msra.mxu0 0
    %3456 = vmatprep.subr.bf16.mxu0 0
    %3457 = vmatpush1.bf16.msra.mxu0 0
    %3458 = vmatprep.mubr.bf16.mxu0 0
    %3459 = vmatmul.mubr.bf16.gmra.mrb[0].mxu0 %v3424
    %v3460 = vpop.f32.mrb[0].mxu0
    %v3461 = vadd.f32 0.0, %v3460
    %v3462 = vpop.f32.mrb[0].mxu0
    %v3463 = vpop.f32.mrb[0].mxu0
    %v3464 = vadd.f32 0.0, %v3463
    %v3465 = vpop.f32.mrb[0].mxu0
    %3466 = vdwg.mxu0
    %v3467 = vadd.f32 %v3266, %v3461
    %v3468 = vadd.f32 %v3267, %v3464
    %v3469 = vld [vmem:[%s4 + $0x11] sm:$0x1]
    %v3470 = vlaneseq
    %v3471 = vshrl.u32 %v3470, 7
    %v3472 = vsub.s32 0, %v3471
    %v3473 = vrot.slane %v3469, %v3472
    %v3474 = vadd.f32 %v3467, %v3473
    %v3475 = vadd.f32 %v3468, %v3473
    %v3476 = vld [vmem:[%s4 + $0x18] sm:$0x1]
    %v3477 = vld [vmem:[%s4 + $0x19] sm:$0x1]
    %v3478 = vsel %vm61, %v3474, 0.0
    %3479 = vadd.xlane.f32.xlu0 %v3478
    %v3480 = vpop.xlane.xlu0 %3479
    %v3481 = vsel %vm61, %v3475, 0.0
    %3482 = vadd.xlane.f32.xlu0 %v3481
    %v3483 = vpop.xlane.xlu0 %3482
    %v3484 = vmul.f32 %v3480, %v68
    %v3485 = vmul.f32 %v3483, %v68
    %v3486 = vsub.f32 %v3474, %v3484
    %v3487 = vsub.f32 %v3475, %v3485
    %v3488 = vmul.f32 %v3486, %v3486
    %v3489 = vmul.f32 %v3487, %v3487
    %v3490 = vsel %vm61, %v3488, 0.0
    %3491 = vadd.xlane.f32.xlu0 %v3490
    %v3492 = vpop.xlane.xlu0 %3491
    %v3493 = vsel %vm61, %v3489, 0.0
    %3494 = vadd.xlane.f32.xlu0 %v3493
    %v3495 = vpop.xlane.xlu0 %3494
    %v3496 = vmul.f32 %v3492, 0.032258064
    %v3497 = vmul.f32 %v3495, 0.032258064
    %v3498 = vlaneseq
    %v3499 = vshrl.u32 %v3498, 7
    %v3500 = vsub.s32 0, %v3499
    %v3501 = vrot.slane %v3476, %v3500
    %v3502 = vmul.f32 %v3501, %v3486
    %v3503 = vmul.f32 %v3501, %v3487
    %v3504 = vrsqrt.pop %v3496
    %v3505 = vmul.f32 %v3496, %v3504
    %vm3506 = vcmp.eq.f32.partialorder %v3496, inf
    %v3507 = vsel %vm3506, %v3496, %v3505
    %vm3508 = vcmp.eq.f32.partialorder %v3496, 0.0
    %v3509 = vand.u32 %v3496, 2147483648
    %v3510 = vsel %vm3508, %v3509, %v3507
    %v3511 = vrsqrt.pop %v3497
    %v3512 = vmul.f32 %v3497, %v3511
    %vm3513 = vcmp.eq.f32.partialorder %v3497, inf
    %v3514 = vsel %vm3513, %v3497, %v3512
    %vm3515 = vcmp.eq.f32.partialorder %v3497, 0.0
    %v3516 = vand.u32 %v3497, 2147483648
    %v3517 = vsel %vm3515, %v3516, %v3514
    %v3518 = vadd.f32 %v3510, 1e-06
    %v3519 = vadd.f32 %v3517, 1e-06
    %v3520 = vrcp.pop %v3518
    %v3521 = vmul.f32 %v3502, %v3520
    %v3522 = vrcp.pop %v3519
    %v3523 = vmul.f32 %v3503, %v3522
    %v3524 = vlaneseq
    %v3525 = vshrl.u32 %v3524, 7
    %v3526 = vsub.s32 0, %v3525
    %v3527 = vrot.slane %v3477, %v3526
    %v3528 = vadd.f32 %v3521, %v3527
    %v3529 = vadd.f32 %v3523, %v3527
    %3530 = vst.msk [vmem:[#allocation8] sm:$0xff] %vm61, %v3528
    %3531 = vst.msk [vmem:[#allocation8 + $0x8] sm:$0xff] %vm61, %v3529
    // Predicated region
    $region30: #{tpu_custom_call.1} parent=1 // pred_check
      _
    $region31: #{tpu_custom_call.1} parent=1 // pred_check_branch
      %3533 = sbr.rel (0) target = $region33
    $region32: #{tpu_custom_call.1} parent=1 // pred_region
      %s3535 = ssub.s32 256, 256
      %3536 = vsyncadd [#allocation5], %s3535
      %s3537 = sshll.u32 [#allocation8], 4
      %s3538 = int_to_ptr.vmem [resolvable:$true] %s3537
      %3543 = dma.vmem_to_hbm [thread:$0]  %s3538, 256, %s5, [#allocation5], 128, 128, 8
    $region33: #{tpu_custom_call.1} parent=1 // pred_fallthru
      _
    // Predicated region
    $region34: #{tpu_custom_call.1} parent=1 // pred_check
      _
    $region35: #{tpu_custom_call.1} parent=1 // pred_check_branch
      %3545 = sbr.rel (0) target = $region37
    $region36: #{tpu_custom_call.1} parent=1 // pred_region
      %3546 = dma.done [#allocation5], 256
    $region37: #{tpu_custom_call.1} parent=1 // pred_fallthru
      _
    %3547 = vsyncpa [#allocation4], 1
    %3548 = vsyncpa [#allocation7], 1
    %3549 = vsyncpa [#allocation5], 1

</llo_original>
